<compile_context>
chip_gen: v6e
topology: v6e:2x2x1
jax: 0.10.0
libtpu: 0.0.40
codegen_flags: <defaults>
</compile_context>

<pallas_src>
import functools

import jax
import jax.numpy as jnp
from jax import lax
from jax.experimental import pallas as pl
from jax.experimental.pallas import tpu as pltpu

LANE = 128  # one vreg of lanes per gate / per hidden state


# --------------------------------------------------------------------------- #
# Kernel
# --------------------------------------------------------------------------- #
def lstm_encoder_kernel(x_ref, wih1_ref, b1_ref, whh1_ref, w2cat_ref, b2_ref,
                        out_ref, xw1_ref, *, seq_len, n_features):
    # ---- prologue: layer-1 input projection (off the recurrence path) ------
    # n_features == 1 -> the K=1 "matmul" is a VPU broadcast multiply, which
    # removes one MXU fill/drain and the lane-sparse relayout of x.
    if n_features == 1:
        xw1_ref[...] = x_ref[...] * wih1_ref[...] + b1_ref[...]
    else:
        xw1_ref[...] = (jnp.dot(x_ref[...], wih1_ref[...],
                                preferred_element_type=jnp.float32)
                        + b1_ref[...])

    # Layer-2 bias is tiny (4 vregs) — safe to keep live across the loop.
    b2 = b2_ref[...]                                      # (1, 4*LANE) f32

    def cell(gates, c):
        # Gate order (i, f, o, g): the three sigmoids run on one contiguous
        # (1, 384) slice, tanh on the last (1, 128) slice.  Padded lanes have
        # gates == 0 -> c_new = 0.5*0 + 0.5*0 = 0, h_new = 0.5*tanh(0) = 0:
        # padding stays exactly zero for the whole recurrence.
        s = jax.nn.sigmoid(gates[:, :3 * LANE])
        i = s[:, 0 * LANE:1 * LANE]
        f = s[:, 1 * LANE:2 * LANE]
        o = s[:, 2 * LANE:3 * LANE]
        g = jnp.tanh(gates[:, 3 * LANE:])
        c_new = f * c + i * g
        h_new = o * jnp.tanh(c_new)
        return h_new, c_new

    zero = jnp.zeros((1, LANE), jnp.float32)
    h1, c1, h2, c2 = zero, zero, zero, zero

    # ---- fused, fully-unrolled recurrence -----------------------------------
    # Per step: cell1(t) (needs h1(t-1)) then cell2(t) (needs h1(t), h2(t-1)).
    # Since cell1(t+1) does not depend on layer 2, the scheduler can overlap
    # cell2(t) with cell1(t+1), cutting the serial chain from ~2*seq_len to
    # ~seq_len+1 cell latencies.  bf16 recurrent weights are read from VMEM at
    # each dot site (not hoisted); dots accumulate in f32 on the MXU.
    for t in range(seq_len):
        g1 = xw1_ref[pl.ds(t, 1), :] + jnp.dot(
            h1.astype(jnp.bfloat16), whh1_ref[...],
            preferred_element_type=jnp.float32)
        h1, c1 = cell(g1, c1)

        # [h1_t | h2_{t-1}] concatenated at a 128-lane boundary -> one K=256
        # matmul against the concatenated [Wih2; Whh2] weight.
        hcat = jnp.concatenate([h1, h2], axis=-1).astype(jnp.bfloat16)  # (1,256)
        g2 = jnp.dot(hcat, w2cat_ref[...],
                     preferred_element_type=jnp.float32) + b2
        h2, c2 = cell(g2, c2)

    # "embedding" = final hidden state of rnn2 (lane-dense (1, 128) slab;
    # the wrapper slices the valid embedding_dim lanes).
    out_ref[...] = h2


# --------------------------------------------------------------------------- #
# Wrapper
# --------------------------------------------------------------------------- #
def _pad_gates(w, h, lane=LANE):
    """(in_dim, 4*h) PyTorch gate order (i,f,g,o) ->
       (in_dim, 4*lane) kernel gate order (i,f,o,g), each gate zero-padded."""
    in_dim = w.shape[0]
    w = w.reshape(in_dim, 4, h)
    w = w[:, (0, 1, 3, 2), :]                      # (i,f,g,o) -> (i,f,o,g)
    w = jnp.pad(w, ((0, 0), (0, 0), (0, lane - h)))
    return w.reshape(in_dim, 4 * lane)


def _pad_rows(w, rows):
    return jnp.pad(w, ((0, rows - w.shape[0]), (0, 0)))


def lstm_encoder(x, params, *, seq_len, n_features, embedding_dim):
    hidden_dim = 2 * embedding_dim
    assert hidden_dim <= LANE and embedding_dim <= LANE, \
        "this padding scheme assumes hidden sizes fit in one 128-lane vreg"
    wih1, whh1, b1, wih2, whh2, b2 = params

    # Same reshape the PyTorch forward does: x -> (1, seq_len, n_features).
    x2d = jnp.asarray(x, jnp.float32).reshape(seq_len, n_features)

    # Layer-1 input projection operands stay f32 (VPU broadcast path).
    wih1_p = _pad_gates(jnp.asarray(wih1, jnp.float32), hidden_dim)       # (n_features, 512)
    b1_p = _pad_gates(jnp.asarray(b1, jnp.float32), hidden_dim)           # (1, 512)
    b2_p = _pad_gates(jnp.asarray(b2, jnp.float32), embedding_dim)        # (1, 512)

    # Recurrent weights in bf16 for the MXU (zero padding stays exact in bf16).
    whh1_p = _pad_rows(_pad_gates(jnp.asarray(whh1, jnp.float32), hidden_dim),
                       LANE).astype(jnp.bfloat16)                         # (128, 512)
    wih2_p = _pad_rows(_pad_gates(jnp.asarray(wih2, jnp.float32), embedding_dim), LANE)
    whh2_p = _pad_rows(_pad_gates(jnp.asarray(whh2, jnp.float32), embedding_dim), LANE)
    # Concatenated layer-2 weight: rows 0..127 multiply h1_t, rows 128..255
    # multiply h2_{t-1}.
    w2cat = jnp.concatenate([wih2_p, whh2_p], axis=0).astype(jnp.bfloat16)  # (256, 512)

    kernel = functools.partial(lstm_encoder_kernel, seq_len=seq_len,
                               n_features=n_features)

    def full(shape):
        n = len(shape)
        return pl.BlockSpec(shape, lambda i, n=n: (0,) * n)

    out = pl.pallas_call(
        kernel,
        grid=(1,),
        out_shape=jax.ShapeDtypeStruct((1, LANE), jnp.float32),
        in_specs=[full(x2d.shape), full(wih1_p.shape), full(b1_p.shape),
                  full(whh1_p.shape), full(w2cat.shape), full(b2_p.shape)],
        out_specs=full((1, LANE)),
        scratch_shapes=[pltpu.VMEM((seq_len, 4 * LANE), jnp.float32)],  # xW1 + b1
        compiler_params=pltpu.CompilerParams(
            dimension_semantics=("arbitrary",)),
    )(x2d, wih1_p, b1_p, whh1_p, w2cat, b2_p)

    emb = out[:, :embedding_dim]
    # Matches the PyTorch module's final reshape; like the original module this
    # is only shape-valid when n_features == 1.
    return emb.reshape(n_features, embedding_dim)


# --------------------------------------------------------------------------- #
# Params (PyTorch-style uniform(-1/sqrt(H), 1/sqrt(H)) init, pre-transposed,
# PyTorch gate order (i, f, g, o))
# --------------------------------------------------------------------------- #
def init_params(key, n_features, embedding_dim):
    hidden_dim = 2 * embedding_dim
    ks = jax.random.split(key, 8)

    def u(k, shape, bound):
        return jax.random.uniform(k, shape, jnp.float32, -bound, bound)

    bnd1 = 1.0 / (hidden_dim ** 0.5)
    bnd2 = 1.0 / (embedding_dim ** 0.5)
    # layer 1: n_features -> hidden_dim
    wih1 = u(ks[0], (n_features, 4 * hidden_dim), bnd1)
    whh1 = u(ks[1], (hidden_dim, 4 * hidden_dim), bnd1)
    bias1 = u(ks[2], (1, 4 * hidden_dim), bnd1) + u(ks[3], (1, 4 * hidden_dim), bnd1)
    # layer 2: hidden_dim -> embedding_dim
    wih2 = u(ks[4], (hidden_dim, 4 * embedding_dim), bnd2)
    whh2 = u(ks[5], (embedding_dim, 4 * embedding_dim), bnd2)
    bias2 = u(ks[6], (1, 4 * embedding_dim), bnd2) + u(ks[7], (1, 4 * embedding_dim), bnd2)
    return wih1, whh1, bias1, wih2, whh2, bias2


# --------------------------------------------------------------------------- #
# Pure-JAX reference (same math, unpadded, f32) for a correctness check
# --------------------------------------------------------------------------- #
def _ref_lstm_layer(xs, w_ih, w_hh, b, H):
    def step(carry, x_t):
        h, c = carry
        gates = x_t @ w_ih + h @ w_hh + b
        i = jax.nn.sigmoid(gates[:, :H])
        f = jax.nn.sigmoid(gates[:, H:2 * H])
        g = jnp.tanh(gates[:, 2 * H:3 * H])
        o = jax.nn.sigmoid(gates[:, 3 * H:])
        c = f * c + i * g
        h = o * jnp.tanh(c)
        return (h, c), h

    init = (jnp.zeros((1, H), jnp.float32), jnp.zeros((1, H), jnp.float32))
    (h, _), hs = lax.scan(step, init, xs[:, None, :])
    return hs[:, 0, :], h


def lstm_encoder_ref(x, params, *, seq_len, n_features, embedding_dim):
    hidden_dim = 2 * embedding_dim
    wih1, whh1, b1, wih2, whh2, b2 = params
    x2d = jnp.asarray(x, jnp.float32).reshape(seq_len, n_features)
    h1_seq, _ = _ref_lstm_layer(x2d, wih1, whh1, b1, hidden_dim)
    _, h2_final = _ref_lstm_layer(h1_seq, wih2, whh2, b2, embedding_dim)
    return h2_final.reshape(n_features, embedding_dim)


if __name__ == "__main__":
    seq_len = 8
    n_features = 1          # required by the module's final reshape
    embedding_dim = 32      # hidden_dim = 64

    key = jax.random.PRNGKey(0)
    k_x, k_p = jax.random.split(key)
    x = jax.random.normal(k_x, (seq_len, n_features), jnp.float32)
    params = init_params(k_p, n_features, embedding_dim)

    emb = lstm_encoder(x, params, seq_len=seq_len,
                       n_features=n_features, embedding_dim=embedding_dim)
    emb = jax.block_until_ready(emb)

    ref = lstm_encoder_ref(x, params, seq_len=seq_len,
                           n_features=n_features, embedding_dim=embedding_dim)
    assert emb.shape == (n_features, embedding_dim)
    # bf16 recurrent matmuls (f32 accumulation) -> loosened tolerance.
    assert jnp.allclose(emb, ref, atol=2e-2, rtol=2e-2), "mismatch vs reference"

    print("KERNEL_OK")
</pallas_src>

<mosaic_0001>
module attributes {stable_mosaic.version = 11 : i64} {
  func.func @lstm_encoder_kernel(%arg0: i32, %arg1: memref<8x1xf32, #tpu.memory_space<vmem>>, %arg2: memref<1x512xf32, #tpu.memory_space<vmem>>, %arg3: memref<1x512xf32, #tpu.memory_space<vmem>>, %arg4: memref<128x512xbf16, #tpu.memory_space<vmem>>, %arg5: memref<256x512xbf16, #tpu.memory_space<vmem>>, %arg6: memref<1x512xf32, #tpu.memory_space<vmem>>, %arg7: memref<1x128xf32, #tpu.memory_space<vmem>>, %arg8: memref<8x512xf32, #tpu.memory_space<vmem>>) attributes {dimension_semantics = [#tpu.dimension_semantics<arbitrary>], iteration_bounds = array<i64: 1>, scalar_prefetch = 0 : i64, scratch_operands = 1 : i64, tpu.core_type = #tpu.core_type<tc>, window_params = [{pipeline_mode = #tpu.pipeline_mode<synchronous>, transform_indices = @transform_0, window_bounds = array<i64: 8, 1>}, {pipeline_mode = #tpu.pipeline_mode<synchronous>, transform_indices = @transform_1, window_bounds = array<i64: 1, 512>}, {pipeline_mode = #tpu.pipeline_mode<synchronous>, transform_indices = @transform_2, window_bounds = array<i64: 1, 512>}, {pipeline_mode = #tpu.pipeline_mode<synchronous>, transform_indices = @transform_3, window_bounds = array<i64: 128, 512>}, {pipeline_mode = #tpu.pipeline_mode<synchronous>, transform_indices = @transform_4, window_bounds = array<i64: 256, 512>}, {pipeline_mode = #tpu.pipeline_mode<synchronous>, transform_indices = @transform_5, window_bounds = array<i64: 1, 512>}, {pipeline_mode = #tpu.pipeline_mode<synchronous>, transform_indices = @transform_6, window_bounds = array<i64: 1, 128>}]} {
    %c0 = arith.constant 0 : index
    %c0_0 = arith.constant 0 : index
    %0 = vector.load %arg1[%c0, %c0_0] : memref<8x1xf32, #tpu.memory_space<vmem>>, vector<8x1xf32>
    %c0_1 = arith.constant 0 : index
    %c0_2 = arith.constant 0 : index
    %1 = vector.load %arg2[%c0_1, %c0_2] : memref<1x512xf32, #tpu.memory_space<vmem>>, vector<1x512xf32>
    %2 = vector.broadcast %0 : vector<8x1xf32> to vector<8x512xf32>
    %3 = vector.broadcast %1 : vector<1x512xf32> to vector<8x512xf32>
    %4 = arith.mulf %2, %3 : vector<8x512xf32>
    %c0_3 = arith.constant 0 : index
    %c0_4 = arith.constant 0 : index
    %5 = vector.load %arg3[%c0_3, %c0_4] : memref<1x512xf32, #tpu.memory_space<vmem>>, vector<1x512xf32>
    %6 = vector.broadcast %5 : vector<1x512xf32> to vector<8x512xf32>
    %7 = arith.addf %4, %6 : vector<8x512xf32>
    %c0_5 = arith.constant 0 : index
    %c0_6 = arith.constant 0 : index
    %8 = vector.load %arg8[%c0_5, %c0_6] : memref<8x512xf32, #tpu.memory_space<vmem>>, vector<8x512xf32>
    tpu.vector_store %arg8[%c0_5, %c0_6], %7 {strides = array<i32>} : memref<8x512xf32, #tpu.memory_space<vmem>>, vector<8x512xf32>,
    %c0_7 = arith.constant 0 : index
    %c0_8 = arith.constant 0 : index
    %9 = vector.load %arg6[%c0_7, %c0_8] : memref<1x512xf32, #tpu.memory_space<vmem>>, vector<1x512xf32>
    %cst = arith.constant 0.000000e+00 : f32
    %10 = vector.broadcast %cst : f32 to vector<1x128xf32>
    %c0_9 = arith.constant 0 : index
    %c0_10 = arith.constant 0 : index
    %11 = vector.load %arg8[%c0_9, %c0_10] : memref<8x512xf32, #tpu.memory_space<vmem>>, vector<1x512xf32>
    %12 = arith.truncf %10 : vector<1x128xf32> to vector<1x128xbf16>
    %c0_11 = arith.constant 0 : index
    %c0_12 = arith.constant 0 : index
    %13 = vector.load %arg4[%c0_11, %c0_12] : memref<128x512xbf16, #tpu.memory_space<vmem>>, vector<128x512xbf16>
    %cst_13 = arith.constant dense<0.000000e+00> : vector<1x512xf32>
    %14 = tpu.matmul %12, %13, %cst_13 {dimension_numbers = #tpu.dot_dimension_numbers<[1], [0], [0], [1], [0, 0, 1, 1], [], []>} : vector<1x128xbf16>, vector<128x512xbf16>, vector<1x512xf32> -> vector<1x512xf32>
    %15 = arith.addf %11, %14 : vector<1x512xf32>
    %16 = vector.extract_strided_slice %15 {offsets = [0, 0], sizes = [1, 384], strides = [1, 1]} : vector<1x512xf32> to vector<1x384xf32>
    %17 = arith.negf %16 : vector<1x384xf32>
    %18 = math.exp %17 : vector<1x384xf32>
    %cst_14 = arith.constant 1.000000e+00 : f32
    %19 = vector.broadcast %cst_14 : f32 to vector<1x384xf32>
    %20 = arith.addf %19, %18 : vector<1x384xf32>
    %21 = arith.divf %19, %20 : vector<1x384xf32>
    %22 = vector.extract_strided_slice %21 {offsets = [0, 0], sizes = [1, 128], strides = [1, 1]} : vector<1x384xf32> to vector<1x128xf32>
    %23 = vector.extract_strided_slice %21 {offsets = [0, 128], sizes = [1, 128], strides = [1, 1]} : vector<1x384xf32> to vector<1x128xf32>
    %24 = vector.extract_strided_slice %21 {offsets = [0, 256], sizes = [1, 128], strides = [1, 1]} : vector<1x384xf32> to vector<1x128xf32>
    %25 = vector.extract_strided_slice %15 {offsets = [0, 384], sizes = [1, 128], strides = [1, 1]} : vector<1x512xf32> to vector<1x128xf32>
    %26 = math.tanh %25 : vector<1x128xf32>
    %27 = arith.mulf %23, %10 : vector<1x128xf32>
    %28 = arith.mulf %22, %26 : vector<1x128xf32>
    %29 = arith.addf %27, %28 : vector<1x128xf32>
    %30 = math.tanh %29 : vector<1x128xf32>
    %31 = arith.mulf %24, %30 : vector<1x128xf32>
    %32 = tpu.concatenate %31, %10 in 1 : vector<1x128xf32>, vector<1x128xf32> -> vector<1x256xf32>
    %33 = arith.truncf %32 : vector<1x256xf32> to vector<1x256xbf16>
    %c0_15 = arith.constant 0 : index
    %c0_16 = arith.constant 0 : index
    %34 = vector.load %arg5[%c0_15, %c0_16] : memref<256x512xbf16, #tpu.memory_space<vmem>>, vector<256x512xbf16>
    %cst_17 = arith.constant dense<0.000000e+00> : vector<1x512xf32>
    %35 = tpu.matmul %33, %34, %cst_17 {dimension_numbers = #tpu.dot_dimension_numbers<[1], [0], [0], [1], [0, 0, 1, 1], [], []>} : vector<1x256xbf16>, vector<256x512xbf16>, vector<1x512xf32> -> vector<1x512xf32>
    %36 = arith.addf %35, %9 : vector<1x512xf32>
    %37 = vector.extract_strided_slice %36 {offsets = [0, 0], sizes = [1, 384], strides = [1, 1]} : vector<1x512xf32> to vector<1x384xf32>
    %38 = arith.negf %37 : vector<1x384xf32>
    %39 = math.exp %38 : vector<1x384xf32>
    %cst_18 = arith.constant 1.000000e+00 : f32
    %40 = vector.broadcast %cst_18 : f32 to vector<1x384xf32>
    %41 = arith.addf %40, %39 : vector<1x384xf32>
    %42 = arith.divf %40, %41 : vector<1x384xf32>
    %43 = vector.extract_strided_slice %42 {offsets = [0, 0], sizes = [1, 128], strides = [1, 1]} : vector<1x384xf32> to vector<1x128xf32>
    %44 = vector.extract_strided_slice %42 {offsets = [0, 128], sizes = [1, 128], strides = [1, 1]} : vector<1x384xf32> to vector<1x128xf32>
    %45 = vector.extract_strided_slice %42 {offsets = [0, 256], sizes = [1, 128], strides = [1, 1]} : vector<1x384xf32> to vector<1x128xf32>
    %46 = vector.extract_strided_slice %36 {offsets = [0, 384], sizes = [1, 128], strides = [1, 1]} : vector<1x512xf32> to vector<1x128xf32>
    %47 = math.tanh %46 : vector<1x128xf32>
    %48 = arith.mulf %44, %10 : vector<1x128xf32>
    %49 = arith.mulf %43, %47 : vector<1x128xf32>
    %50 = arith.addf %48, %49 : vector<1x128xf32>
    %51 = math.tanh %50 : vector<1x128xf32>
    %52 = arith.mulf %45, %51 : vector<1x128xf32>
    %c1 = arith.constant 1 : index
    %c0_19 = arith.constant 0 : index
    %53 = vector.load %arg8[%c1, %c0_19] : memref<8x512xf32, #tpu.memory_space<vmem>>, vector<1x512xf32>
    %54 = arith.truncf %31 : vector<1x128xf32> to vector<1x128xbf16>
    %c0_20 = arith.constant 0 : index
    %c0_21 = arith.constant 0 : index
    %55 = vector.load %arg4[%c0_20, %c0_21] : memref<128x512xbf16, #tpu.memory_space<vmem>>, vector<128x512xbf16>
    %cst_22 = arith.constant dense<0.000000e+00> : vector<1x512xf32>
    %56 = tpu.matmul %54, %55, %cst_22 {dimension_numbers = #tpu.dot_dimension_numbers<[1], [0], [0], [1], [0, 0, 1, 1], [], []>} : vector<1x128xbf16>, vector<128x512xbf16>, vector<1x512xf32> -> vector<1x512xf32>
    %57 = arith.addf %53, %56 : vector<1x512xf32>
    %58 = vector.extract_strided_slice %57 {offsets = [0, 0], sizes = [1, 384], strides = [1, 1]} : vector<1x512xf32> to vector<1x384xf32>
    %59 = arith.negf %58 : vector<1x384xf32>
    %60 = math.exp %59 : vector<1x384xf32>
    %cst_23 = arith.constant 1.000000e+00 : f32
    %61 = vector.broadcast %cst_23 : f32 to vector<1x384xf32>
    %62 = arith.addf %61, %60 : vector<1x384xf32>
    %63 = arith.divf %61, %62 : vector<1x384xf32>
    %64 = vector.extract_strided_slice %63 {offsets = [0, 0], sizes = [1, 128], strides = [1, 1]} : vector<1x384xf32> to vector<1x128xf32>
    %65 = vector.extract_strided_slice %63 {offsets = [0, 128], sizes = [1, 128], strides = [1, 1]} : vector<1x384xf32> to vector<1x128xf32>
    %66 = vector.extract_strided_slice %63 {offsets = [0, 256], sizes = [1, 128], strides = [1, 1]} : vector<1x384xf32> to vector<1x128xf32>
    %67 = vector.extract_strided_slice %57 {offsets = [0, 384], sizes = [1, 128], strides = [1, 1]} : vector<1x512xf32> to vector<1x128xf32>
    %68 = math.tanh %67 : vector<1x128xf32>
    %69 = arith.mulf %65, %29 : vector<1x128xf32>
    %70 = arith.mulf %64, %68 : vector<1x128xf32>
    %71 = arith.addf %69, %70 : vector<1x128xf32>
    %72 = math.tanh %71 : vector<1x128xf32>
    %73 = arith.mulf %66, %72 : vector<1x128xf32>
    %74 = tpu.concatenate %73, %52 in 1 : vector<1x128xf32>, vector<1x128xf32> -> vector<1x256xf32>
    %75 = arith.truncf %74 : vector<1x256xf32> to vector<1x256xbf16>
    %c0_24 = arith.constant 0 : index
    %c0_25 = arith.constant 0 : index
    %76 = vector.load %arg5[%c0_24, %c0_25] : memref<256x512xbf16, #tpu.memory_space<vmem>>, vector<256x512xbf16>
    %cst_26 = arith.constant dense<0.000000e+00> : vector<1x512xf32>
    %77 = tpu.matmul %75, %76, %cst_26 {dimension_numbers = #tpu.dot_dimension_numbers<[1], [0], [0], [1], [0, 0, 1, 1], [], []>} : vector<1x256xbf16>, vector<256x512xbf16>, vector<1x512xf32> -> vector<1x512xf32>
    %78 = arith.addf %77, %9 : vector<1x512xf32>
    %79 = vector.extract_strided_slice %78 {offsets = [0, 0], sizes = [1, 384], strides = [1, 1]} : vector<1x512xf32> to vector<1x384xf32>
    %80 = arith.negf %79 : vector<1x384xf32>
    %81 = math.exp %80 : vector<1x384xf32>
    %cst_27 = arith.constant 1.000000e+00 : f32
    %82 = vector.broadcast %cst_27 : f32 to vector<1x384xf32>
    %83 = arith.addf %82, %81 : vector<1x384xf32>
    %84 = arith.divf %82, %83 : vector<1x384xf32>
    %85 = vector.extract_strided_slice %84 {offsets = [0, 0], sizes = [1, 128], strides = [1, 1]} : vector<1x384xf32> to vector<1x128xf32>
    %86 = vector.extract_strided_slice %84 {offsets = [0, 128], sizes = [1, 128], strides = [1, 1]} : vector<1x384xf32> to vector<1x128xf32>
    %87 = vector.extract_strided_slice %84 {offsets = [0, 256], sizes = [1, 128], strides = [1, 1]} : vector<1x384xf32> to vector<1x128xf32>
    %88 = vector.extract_strided_slice %78 {offsets = [0, 384], sizes = [1, 128], strides = [1, 1]} : vector<1x512xf32> to vector<1x128xf32>
    %89 = math.tanh %88 : vector<1x128xf32>
    %90 = arith.mulf %86, %50 : vector<1x128xf32>
    %91 = arith.mulf %85, %89 : vector<1x128xf32>
    %92 = arith.addf %90, %91 : vector<1x128xf32>
    %93 = math.tanh %92 : vector<1x128xf32>
    %94 = arith.mulf %87, %93 : vector<1x128xf32>
    %c2 = arith.constant 2 : index
    %c0_28 = arith.constant 0 : index
    %95 = vector.load %arg8[%c2, %c0_28] : memref<8x512xf32, #tpu.memory_space<vmem>>, vector<1x512xf32>
    %96 = arith.truncf %73 : vector<1x128xf32> to vector<1x128xbf16>
    %c0_29 = arith.constant 0 : index
    %c0_30 = arith.constant 0 : index
    %97 = vector.load %arg4[%c0_29, %c0_30] : memref<128x512xbf16, #tpu.memory_space<vmem>>, vector<128x512xbf16>
    %cst_31 = arith.constant dense<0.000000e+00> : vector<1x512xf32>
    %98 = tpu.matmul %96, %97, %cst_31 {dimension_numbers = #tpu.dot_dimension_numbers<[1], [0], [0], [1], [0, 0, 1, 1], [], []>} : vector<1x128xbf16>, vector<128x512xbf16>, vector<1x512xf32> -> vector<1x512xf32>
    %99 = arith.addf %95, %98 : vector<1x512xf32>
    %100 = vector.extract_strided_slice %99 {offsets = [0, 0], sizes = [1, 384], strides = [1, 1]} : vector<1x512xf32> to vector<1x384xf32>
    %101 = arith.negf %100 : vector<1x384xf32>
    %102 = math.exp %101 : vector<1x384xf32>
    %cst_32 = arith.constant 1.000000e+00 : f32
    %103 = vector.broadcast %cst_32 : f32 to vector<1x384xf32>
    %104 = arith.addf %103, %102 : vector<1x384xf32>
    %105 = arith.divf %103, %104 : vector<1x384xf32>
    %106 = vector.extract_strided_slice %105 {offsets = [0, 0], sizes = [1, 128], strides = [1, 1]} : vector<1x384xf32> to vector<1x128xf32>
    %107 = vector.extract_strided_slice %105 {offsets = [0, 128], sizes = [1, 128], strides = [1, 1]} : vector<1x384xf32> to vector<1x128xf32>
    %108 = vector.extract_strided_slice %105 {offsets = [0, 256], sizes = [1, 128], strides = [1, 1]} : vector<1x384xf32> to vector<1x128xf32>
    %109 = vector.extract_strided_slice %99 {offsets = [0, 384], sizes = [1, 128], strides = [1, 1]} : vector<1x512xf32> to vector<1x128xf32>
    %110 = math.tanh %109 : vector<1x128xf32>
    %111 = arith.mulf %107, %71 : vector<1x128xf32>
    %112 = arith.mulf %106, %110 : vector<1x128xf32>
    %113 = arith.addf %111, %112 : vector<1x128xf32>
    %114 = math.tanh %113 : vector<1x128xf32>
    %115 = arith.mulf %108, %114 : vector<1x128xf32>
    %116 = tpu.concatenate %115, %94 in 1 : vector<1x128xf32>, vector<1x128xf32> -> vector<1x256xf32>
    %117 = arith.truncf %116 : vector<1x256xf32> to vector<1x256xbf16>
    %c0_33 = arith.constant 0 : index
    %c0_34 = arith.constant 0 : index
    %118 = vector.load %arg5[%c0_33, %c0_34] : memref<256x512xbf16, #tpu.memory_space<vmem>>, vector<256x512xbf16>
    %cst_35 = arith.constant dense<0.000000e+00> : vector<1x512xf32>
    %119 = tpu.matmul %117, %118, %cst_35 {dimension_numbers = #tpu.dot_dimension_numbers<[1], [0], [0], [1], [0, 0, 1, 1], [], []>} : vector<1x256xbf16>, vector<256x512xbf16>, vector<1x512xf32> -> vector<1x512xf32>
    %120 = arith.addf %119, %9 : vector<1x512xf32>
    %121 = vector.extract_strided_slice %120 {offsets = [0, 0], sizes = [1, 384], strides = [1, 1]} : vector<1x512xf32> to vector<1x384xf32>
    %122 = arith.negf %121 : vector<1x384xf32>
    %123 = math.exp %122 : vector<1x384xf32>
    %cst_36 = arith.constant 1.000000e+00 : f32
    %124 = vector.broadcast %cst_36 : f32 to vector<1x384xf32>
    %125 = arith.addf %124, %123 : vector<1x384xf32>
    %126 = arith.divf %124, %125 : vector<1x384xf32>
    %127 = vector.extract_strided_slice %126 {offsets = [0, 0], sizes = [1, 128], strides = [1, 1]} : vector<1x384xf32> to vector<1x128xf32>
    %128 = vector.extract_strided_slice %126 {offsets = [0, 128], sizes = [1, 128], strides = [1, 1]} : vector<1x384xf32> to vector<1x128xf32>
    %129 = vector.extract_strided_slice %126 {offsets = [0, 256], sizes = [1, 128], strides = [1, 1]} : vector<1x384xf32> to vector<1x128xf32>
    %130 = vector.extract_strided_slice %120 {offsets = [0, 384], sizes = [1, 128], strides = [1, 1]} : vector<1x512xf32> to vector<1x128xf32>
    %131 = math.tanh %130 : vector<1x128xf32>
    %132 = arith.mulf %128, %92 : vector<1x128xf32>
    %133 = arith.mulf %127, %131 : vector<1x128xf32>
    %134 = arith.addf %132, %133 : vector<1x128xf32>
    %135 = math.tanh %134 : vector<1x128xf32>
    %136 = arith.mulf %129, %135 : vector<1x128xf32>
    %c3 = arith.constant 3 : index
    %c0_37 = arith.constant 0 : index
    %137 = vector.load %arg8[%c3, %c0_37] : memref<8x512xf32, #tpu.memory_space<vmem>>, vector<1x512xf32>
    %138 = arith.truncf %115 : vector<1x128xf32> to vector<1x128xbf16>
    %c0_38 = arith.constant 0 : index
    %c0_39 = arith.constant 0 : index
    %139 = vector.load %arg4[%c0_38, %c0_39] : memref<128x512xbf16, #tpu.memory_space<vmem>>, vector<128x512xbf16>
    %cst_40 = arith.constant dense<0.000000e+00> : vector<1x512xf32>
    %140 = tpu.matmul %138, %139, %cst_40 {dimension_numbers = #tpu.dot_dimension_numbers<[1], [0], [0], [1], [0, 0, 1, 1], [], []>} : vector<1x128xbf16>, vector<128x512xbf16>, vector<1x512xf32> -> vector<1x512xf32>
    %141 = arith.addf %137, %140 : vector<1x512xf32>
    %142 = vector.extract_strided_slice %141 {offsets = [0, 0], sizes = [1, 384], strides = [1, 1]} : vector<1x512xf32> to vector<1x384xf32>
    %143 = arith.negf %142 : vector<1x384xf32>
    %144 = math.exp %143 : vector<1x384xf32>
    %cst_41 = arith.constant 1.000000e+00 : f32
    %145 = vector.broadcast %cst_41 : f32 to vector<1x384xf32>
    %146 = arith.addf %145, %144 : vector<1x384xf32>
    %147 = arith.divf %145, %146 : vector<1x384xf32>
    %148 = vector.extract_strided_slice %147 {offsets = [0, 0], sizes = [1, 128], strides = [1, 1]} : vector<1x384xf32> to vector<1x128xf32>
    %149 = vector.extract_strided_slice %147 {offsets = [0, 128], sizes = [1, 128], strides = [1, 1]} : vector<1x384xf32> to vector<1x128xf32>
    %150 = vector.extract_strided_slice %147 {offsets = [0, 256], sizes = [1, 128], strides = [1, 1]} : vector<1x384xf32> to vector<1x128xf32>
    %151 = vector.extract_strided_slice %141 {offsets = [0, 384], sizes = [1, 128], strides = [1, 1]} : vector<1x512xf32> to vector<1x128xf32>
    %152 = math.tanh %151 : vector<1x128xf32>
    %153 = arith.mulf %149, %113 : vector<1x128xf32>
    %154 = arith.mulf %148, %152 : vector<1x128xf32>
    %155 = arith.addf %153, %154 : vector<1x128xf32>
    %156 = math.tanh %155 : vector<1x128xf32>
    %157 = arith.mulf %150, %156 : vector<1x128xf32>
    %158 = tpu.concatenate %157, %136 in 1 : vector<1x128xf32>, vector<1x128xf32> -> vector<1x256xf32>
    %159 = arith.truncf %158 : vector<1x256xf32> to vector<1x256xbf16>
    %c0_42 = arith.constant 0 : index
    %c0_43 = arith.constant 0 : index
    %160 = vector.load %arg5[%c0_42, %c0_43] : memref<256x512xbf16, #tpu.memory_space<vmem>>, vector<256x512xbf16>
    %cst_44 = arith.constant dense<0.000000e+00> : vector<1x512xf32>
    %161 = tpu.matmul %159, %160, %cst_44 {dimension_numbers = #tpu.dot_dimension_numbers<[1], [0], [0], [1], [0, 0, 1, 1], [], []>} : vector<1x256xbf16>, vector<256x512xbf16>, vector<1x512xf32> -> vector<1x512xf32>
    %162 = arith.addf %161, %9 : vector<1x512xf32>
    %163 = vector.extract_strided_slice %162 {offsets = [0, 0], sizes = [1, 384], strides = [1, 1]} : vector<1x512xf32> to vector<1x384xf32>
    %164 = arith.negf %163 : vector<1x384xf32>
    %165 = math.exp %164 : vector<1x384xf32>
    %cst_45 = arith.constant 1.000000e+00 : f32
    %166 = vector.broadcast %cst_45 : f32 to vector<1x384xf32>
    %167 = arith.addf %166, %165 : vector<1x384xf32>
    %168 = arith.divf %166, %167 : vector<1x384xf32>
    %169 = vector.extract_strided_slice %168 {offsets = [0, 0], sizes = [1, 128], strides = [1, 1]} : vector<1x384xf32> to vector<1x128xf32>
    %170 = vector.extract_strided_slice %168 {offsets = [0, 128], sizes = [1, 128], strides = [1, 1]} : vector<1x384xf32> to vector<1x128xf32>
    %171 = vector.extract_strided_slice %168 {offsets = [0, 256], sizes = [1, 128], strides = [1, 1]} : vector<1x384xf32> to vector<1x128xf32>
    %172 = vector.extract_strided_slice %162 {offsets = [0, 384], sizes = [1, 128], strides = [1, 1]} : vector<1x512xf32> to vector<1x128xf32>
    %173 = math.tanh %172 : vector<1x128xf32>
    %174 = arith.mulf %170, %134 : vector<1x128xf32>
    %175 = arith.mulf %169, %173 : vector<1x128xf32>
    %176 = arith.addf %174, %175 : vector<1x128xf32>
    %177 = math.tanh %176 : vector<1x128xf32>
    %178 = arith.mulf %171, %177 : vector<1x128xf32>
    %c4 = arith.constant 4 : index
    %c0_46 = arith.constant 0 : index
    %179 = vector.load %arg8[%c4, %c0_46] : memref<8x512xf32, #tpu.memory_space<vmem>>, vector<1x512xf32>
    %180 = arith.truncf %157 : vector<1x128xf32> to vector<1x128xbf16>
    %c0_47 = arith.constant 0 : index
    %c0_48 = arith.constant 0 : index
    %181 = vector.load %arg4[%c0_47, %c0_48] : memref<128x512xbf16, #tpu.memory_space<vmem>>, vector<128x512xbf16>
    %cst_49 = arith.constant dense<0.000000e+00> : vector<1x512xf32>
    %182 = tpu.matmul %180, %181, %cst_49 {dimension_numbers = #tpu.dot_dimension_numbers<[1], [0], [0], [1], [0, 0, 1, 1], [], []>} : vector<1x128xbf16>, vector<128x512xbf16>, vector<1x512xf32> -> vector<1x512xf32>
    %183 = arith.addf %179, %182 : vector<1x512xf32>
    %184 = vector.extract_strided_slice %183 {offsets = [0, 0], sizes = [1, 384], strides = [1, 1]} : vector<1x512xf32> to vector<1x384xf32>
    %185 = arith.negf %184 : vector<1x384xf32>
    %186 = math.exp %185 : vector<1x384xf32>
    %cst_50 = arith.constant 1.000000e+00 : f32
    %187 = vector.broadcast %cst_50 : f32 to vector<1x384xf32>
    %188 = arith.addf %187, %186 : vector<1x384xf32>
    %189 = arith.divf %187, %188 : vector<1x384xf32>
    %190 = vector.extract_strided_slice %189 {offsets = [0, 0], sizes = [1, 128], strides = [1, 1]} : vector<1x384xf32> to vector<1x128xf32>
    %191 = vector.extract_strided_slice %189 {offsets = [0, 128], sizes = [1, 128], strides = [1, 1]} : vector<1x384xf32> to vector<1x128xf32>
    %192 = vector.extract_strided_slice %189 {offsets = [0, 256], sizes = [1, 128], strides = [1, 1]} : vector<1x384xf32> to vector<1x128xf32>
    %193 = vector.extract_strided_slice %183 {offsets = [0, 384], sizes = [1, 128], strides = [1, 1]} : vector<1x512xf32> to vector<1x128xf32>
    %194 = math.tanh %193 : vector<1x128xf32>
    %195 = arith.mulf %191, %155 : vector<1x128xf32>
    %196 = arith.mulf %190, %194 : vector<1x128xf32>
    %197 = arith.addf %195, %196 : vector<1x128xf32>
    %198 = math.tanh %197 : vector<1x128xf32>
    %199 = arith.mulf %192, %198 : vector<1x128xf32>
    %200 = tpu.concatenate %199, %178 in 1 : vector<1x128xf32>, vector<1x128xf32> -> vector<1x256xf32>
    %201 = arith.truncf %200 : vector<1x256xf32> to vector<1x256xbf16>
    %c0_51 = arith.constant 0 : index
    %c0_52 = arith.constant 0 : index
    %202 = vector.load %arg5[%c0_51, %c0_52] : memref<256x512xbf16, #tpu.memory_space<vmem>>, vector<256x512xbf16>
    %cst_53 = arith.constant dense<0.000000e+00> : vector<1x512xf32>
    %203 = tpu.matmul %201, %202, %cst_53 {dimension_numbers = #tpu.dot_dimension_numbers<[1], [0], [0], [1], [0, 0, 1, 1], [], []>} : vector<1x256xbf16>, vector<256x512xbf16>, vector<1x512xf32> -> vector<1x512xf32>
    %204 = arith.addf %203, %9 : vector<1x512xf32>
    %205 = vector.extract_strided_slice %204 {offsets = [0, 0], sizes = [1, 384], strides = [1, 1]} : vector<1x512xf32> to vector<1x384xf32>
    %206 = arith.negf %205 : vector<1x384xf32>
    %207 = math.exp %206 : vector<1x384xf32>
    %cst_54 = arith.constant 1.000000e+00 : f32
    %208 = vector.broadcast %cst_54 : f32 to vector<1x384xf32>
    %209 = arith.addf %208, %207 : vector<1x384xf32>
    %210 = arith.divf %208, %209 : vector<1x384xf32>
    %211 = vector.extract_strided_slice %210 {offsets = [0, 0], sizes = [1, 128], strides = [1, 1]} : vector<1x384xf32> to vector<1x128xf32>
    %212 = vector.extract_strided_slice %210 {offsets = [0, 128], sizes = [1, 128], strides = [1, 1]} : vector<1x384xf32> to vector<1x128xf32>
    %213 = vector.extract_strided_slice %210 {offsets = [0, 256], sizes = [1, 128], strides = [1, 1]} : vector<1x384xf32> to vector<1x128xf32>
    %214 = vector.extract_strided_slice %204 {offsets = [0, 384], sizes = [1, 128], strides = [1, 1]} : vector<1x512xf32> to vector<1x128xf32>
    %215 = math.tanh %214 : vector<1x128xf32>
    %216 = arith.mulf %212, %176 : vector<1x128xf32>
    %217 = arith.mulf %211, %215 : vector<1x128xf32>
    %218 = arith.addf %216, %217 : vector<1x128xf32>
    %219 = math.tanh %218 : vector<1x128xf32>
    %220 = arith.mulf %213, %219 : vector<1x128xf32>
    %c5 = arith.constant 5 : index
    %c0_55 = arith.constant 0 : index
    %221 = vector.load %arg8[%c5, %c0_55] : memref<8x512xf32, #tpu.memory_space<vmem>>, vector<1x512xf32>
    %222 = arith.truncf %199 : vector<1x128xf32> to vector<1x128xbf16>
    %c0_56 = arith.constant 0 : index
    %c0_57 = arith.constant 0 : index
    %223 = vector.load %arg4[%c0_56, %c0_57] : memref<128x512xbf16, #tpu.memory_space<vmem>>, vector<128x512xbf16>
    %cst_58 = arith.constant dense<0.000000e+00> : vector<1x512xf32>
    %224 = tpu.matmul %222, %223, %cst_58 {dimension_numbers = #tpu.dot_dimension_numbers<[1], [0], [0], [1], [0, 0, 1, 1], [], []>} : vector<1x128xbf16>, vector<128x512xbf16>, vector<1x512xf32> -> vector<1x512xf32>
    %225 = arith.addf %221, %224 : vector<1x512xf32>
    %226 = vector.extract_strided_slice %225 {offsets = [0, 0], sizes = [1, 384], strides = [1, 1]} : vector<1x512xf32> to vector<1x384xf32>
    %227 = arith.negf %226 : vector<1x384xf32>
    %228 = math.exp %227 : vector<1x384xf32>
    %cst_59 = arith.constant 1.000000e+00 : f32
    %229 = vector.broadcast %cst_59 : f32 to vector<1x384xf32>
    %230 = arith.addf %229, %228 : vector<1x384xf32>
    %231 = arith.divf %229, %230 : vector<1x384xf32>
    %232 = vector.extract_strided_slice %231 {offsets = [0, 0], sizes = [1, 128], strides = [1, 1]} : vector<1x384xf32> to vector<1x128xf32>
    %233 = vector.extract_strided_slice %231 {offsets = [0, 128], sizes = [1, 128], strides = [1, 1]} : vector<1x384xf32> to vector<1x128xf32>
    %234 = vector.extract_strided_slice %231 {offsets = [0, 256], sizes = [1, 128], strides = [1, 1]} : vector<1x384xf32> to vector<1x128xf32>
    %235 = vector.extract_strided_slice %225 {offsets = [0, 384], sizes = [1, 128], strides = [1, 1]} : vector<1x512xf32> to vector<1x128xf32>
    %236 = math.tanh %235 : vector<1x128xf32>
    %237 = arith.mulf %233, %197 : vector<1x128xf32>
    %238 = arith.mulf %232, %236 : vector<1x128xf32>
    %239 = arith.addf %237, %238 : vector<1x128xf32>
    %240 = math.tanh %239 : vector<1x128xf32>
    %241 = arith.mulf %234, %240 : vector<1x128xf32>
    %242 = tpu.concatenate %241, %220 in 1 : vector<1x128xf32>, vector<1x128xf32> -> vector<1x256xf32>
    %243 = arith.truncf %242 : vector<1x256xf32> to vector<1x256xbf16>
    %c0_60 = arith.constant 0 : index
    %c0_61 = arith.constant 0 : index
    %244 = vector.load %arg5[%c0_60, %c0_61] : memref<256x512xbf16, #tpu.memory_space<vmem>>, vector<256x512xbf16>
    %cst_62 = arith.constant dense<0.000000e+00> : vector<1x512xf32>
    %245 = tpu.matmul %243, %244, %cst_62 {dimension_numbers = #tpu.dot_dimension_numbers<[1], [0], [0], [1], [0, 0, 1, 1], [], []>} : vector<1x256xbf16>, vector<256x512xbf16>, vector<1x512xf32> -> vector<1x512xf32>
    %246 = arith.addf %245, %9 : vector<1x512xf32>
    %247 = vector.extract_strided_slice %246 {offsets = [0, 0], sizes = [1, 384], strides = [1, 1]} : vector<1x512xf32> to vector<1x384xf32>
    %248 = arith.negf %247 : vector<1x384xf32>
    %249 = math.exp %248 : vector<1x384xf32>
    %cst_63 = arith.constant 1.000000e+00 : f32
    %250 = vector.broadcast %cst_63 : f32 to vector<1x384xf32>
    %251 = arith.addf %250, %249 : vector<1x384xf32>
    %252 = arith.divf %250, %251 : vector<1x384xf32>
    %253 = vector.extract_strided_slice %252 {offsets = [0, 0], sizes = [1, 128], strides = [1, 1]} : vector<1x384xf32> to vector<1x128xf32>
    %254 = vector.extract_strided_slice %252 {offsets = [0, 128], sizes = [1, 128], strides = [1, 1]} : vector<1x384xf32> to vector<1x128xf32>
    %255 = vector.extract_strided_slice %252 {offsets = [0, 256], sizes = [1, 128], strides = [1, 1]} : vector<1x384xf32> to vector<1x128xf32>
    %256 = vector.extract_strided_slice %246 {offsets = [0, 384], sizes = [1, 128], strides = [1, 1]} : vector<1x512xf32> to vector<1x128xf32>
    %257 = math.tanh %256 : vector<1x128xf32>
    %258 = arith.mulf %254, %218 : vector<1x128xf32>
    %259 = arith.mulf %253, %257 : vector<1x128xf32>
    %260 = arith.addf %258, %259 : vector<1x128xf32>
    %261 = math.tanh %260 : vector<1x128xf32>
    %262 = arith.mulf %255, %261 : vector<1x128xf32>
    %c6 = arith.constant 6 : index
    %c0_64 = arith.constant 0 : index
    %263 = vector.load %arg8[%c6, %c0_64] : memref<8x512xf32, #tpu.memory_space<vmem>>, vector<1x512xf32>
    %264 = arith.truncf %241 : vector<1x128xf32> to vector<1x128xbf16>
    %c0_65 = arith.constant 0 : index
    %c0_66 = arith.constant 0 : index
    %265 = vector.load %arg4[%c0_65, %c0_66] : memref<128x512xbf16, #tpu.memory_space<vmem>>, vector<128x512xbf16>
    %cst_67 = arith.constant dense<0.000000e+00> : vector<1x512xf32>
    %266 = tpu.matmul %264, %265, %cst_67 {dimension_numbers = #tpu.dot_dimension_numbers<[1], [0], [0], [1], [0, 0, 1, 1], [], []>} : vector<1x128xbf16>, vector<128x512xbf16>, vector<1x512xf32> -> vector<1x512xf32>
    %267 = arith.addf %263, %266 : vector<1x512xf32>
    %268 = vector.extract_strided_slice %267 {offsets = [0, 0], sizes = [1, 384], strides = [1, 1]} : vector<1x512xf32> to vector<1x384xf32>
    %269 = arith.negf %268 : vector<1x384xf32>
    %270 = math.exp %269 : vector<1x384xf32>
    %cst_68 = arith.constant 1.000000e+00 : f32
    %271 = vector.broadcast %cst_68 : f32 to vector<1x384xf32>
    %272 = arith.addf %271, %270 : vector<1x384xf32>
    %273 = arith.divf %271, %272 : vector<1x384xf32>
    %274 = vector.extract_strided_slice %273 {offsets = [0, 0], sizes = [1, 128], strides = [1, 1]} : vector<1x384xf32> to vector<1x128xf32>
    %275 = vector.extract_strided_slice %273 {offsets = [0, 128], sizes = [1, 128], strides = [1, 1]} : vector<1x384xf32> to vector<1x128xf32>
    %276 = vector.extract_strided_slice %273 {offsets = [0, 256], sizes = [1, 128], strides = [1, 1]} : vector<1x384xf32> to vector<1x128xf32>
    %277 = vector.extract_strided_slice %267 {offsets = [0, 384], sizes = [1, 128], strides = [1, 1]} : vector<1x512xf32> to vector<1x128xf32>
    %278 = math.tanh %277 : vector<1x128xf32>
    %279 = arith.mulf %275, %239 : vector<1x128xf32>
    %280 = arith.mulf %274, %278 : vector<1x128xf32>
    %281 = arith.addf %279, %280 : vector<1x128xf32>
    %282 = math.tanh %281 : vector<1x128xf32>
    %283 = arith.mulf %276, %282 : vector<1x128xf32>
    %284 = tpu.concatenate %283, %262 in 1 : vector<1x128xf32>, vector<1x128xf32> -> vector<1x256xf32>
    %285 = arith.truncf %284 : vector<1x256xf32> to vector<1x256xbf16>
    %c0_69 = arith.constant 0 : index
    %c0_70 = arith.constant 0 : index
    %286 = vector.load %arg5[%c0_69, %c0_70] : memref<256x512xbf16, #tpu.memory_space<vmem>>, vector<256x512xbf16>
    %cst_71 = arith.constant dense<0.000000e+00> : vector<1x512xf32>
    %287 = tpu.matmul %285, %286, %cst_71 {dimension_numbers = #tpu.dot_dimension_numbers<[1], [0], [0], [1], [0, 0, 1, 1], [], []>} : vector<1x256xbf16>, vector<256x512xbf16>, vector<1x512xf32> -> vector<1x512xf32>
    %288 = arith.addf %287, %9 : vector<1x512xf32>
    %289 = vector.extract_strided_slice %288 {offsets = [0, 0], sizes = [1, 384], strides = [1, 1]} : vector<1x512xf32> to vector<1x384xf32>
    %290 = arith.negf %289 : vector<1x384xf32>
    %291 = math.exp %290 : vector<1x384xf32>
    %cst_72 = arith.constant 1.000000e+00 : f32
    %292 = vector.broadcast %cst_72 : f32 to vector<1x384xf32>
    %293 = arith.addf %292, %291 : vector<1x384xf32>
    %294 = arith.divf %292, %293 : vector<1x384xf32>
    %295 = vector.extract_strided_slice %294 {offsets = [0, 0], sizes = [1, 128], strides = [1, 1]} : vector<1x384xf32> to vector<1x128xf32>
    %296 = vector.extract_strided_slice %294 {offsets = [0, 128], sizes = [1, 128], strides = [1, 1]} : vector<1x384xf32> to vector<1x128xf32>
    %297 = vector.extract_strided_slice %294 {offsets = [0, 256], sizes = [1, 128], strides = [1, 1]} : vector<1x384xf32> to vector<1x128xf32>
    %298 = vector.extract_strided_slice %288 {offsets = [0, 384], sizes = [1, 128], strides = [1, 1]} : vector<1x512xf32> to vector<1x128xf32>
    %299 = math.tanh %298 : vector<1x128xf32>
    %300 = arith.mulf %296, %260 : vector<1x128xf32>
    %301 = arith.mulf %295, %299 : vector<1x128xf32>
    %302 = arith.addf %300, %301 : vector<1x128xf32>
    %303 = math.tanh %302 : vector<1x128xf32>
    %304 = arith.mulf %297, %303 : vector<1x128xf32>
    %c7 = arith.constant 7 : index
    %c0_73 = arith.constant 0 : index
    %305 = vector.load %arg8[%c7, %c0_73] : memref<8x512xf32, #tpu.memory_space<vmem>>, vector<1x512xf32>
    %306 = arith.truncf %283 : vector<1x128xf32> to vector<1x128xbf16>
    %c0_74 = arith.constant 0 : index
    %c0_75 = arith.constant 0 : index
    %307 = vector.load %arg4[%c0_74, %c0_75] : memref<128x512xbf16, #tpu.memory_space<vmem>>, vector<128x512xbf16>
    %cst_76 = arith.constant dense<0.000000e+00> : vector<1x512xf32>
    %308 = tpu.matmul %306, %307, %cst_76 {dimension_numbers = #tpu.dot_dimension_numbers<[1], [0], [0], [1], [0, 0, 1, 1], [], []>} : vector<1x128xbf16>, vector<128x512xbf16>, vector<1x512xf32> -> vector<1x512xf32>
    %309 = arith.addf %305, %308 : vector<1x512xf32>
    %310 = vector.extract_strided_slice %309 {offsets = [0, 0], sizes = [1, 384], strides = [1, 1]} : vector<1x512xf32> to vector<1x384xf32>
    %311 = arith.negf %310 : vector<1x384xf32>
    %312 = math.exp %311 : vector<1x384xf32>
    %cst_77 = arith.constant 1.000000e+00 : f32
    %313 = vector.broadcast %cst_77 : f32 to vector<1x384xf32>
    %314 = arith.addf %313, %312 : vector<1x384xf32>
    %315 = arith.divf %313, %314 : vector<1x384xf32>
    %316 = vector.extract_strided_slice %315 {offsets = [0, 0], sizes = [1, 128], strides = [1, 1]} : vector<1x384xf32> to vector<1x128xf32>
    %317 = vector.extract_strided_slice %315 {offsets = [0, 128], sizes = [1, 128], strides = [1, 1]} : vector<1x384xf32> to vector<1x128xf32>
    %318 = vector.extract_strided_slice %315 {offsets = [0, 256], sizes = [1, 128], strides = [1, 1]} : vector<1x384xf32> to vector<1x128xf32>
    %319 = vector.extract_strided_slice %309 {offsets = [0, 384], sizes = [1, 128], strides = [1, 1]} : vector<1x512xf32> to vector<1x128xf32>
    %320 = math.tanh %319 : vector<1x128xf32>
    %321 = arith.mulf %317, %281 : vector<1x128xf32>
    %322 = arith.mulf %316, %320 : vector<1x128xf32>
    %323 = arith.addf %321, %322 : vector<1x128xf32>
    %324 = math.tanh %323 : vector<1x128xf32>
    %325 = arith.mulf %318, %324 : vector<1x128xf32>
    %326 = tpu.concatenate %325, %304 in 1 : vector<1x128xf32>, vector<1x128xf32> -> vector<1x256xf32>
    %327 = arith.truncf %326 : vector<1x256xf32> to vector<1x256xbf16>
    %c0_78 = arith.constant 0 : index
    %c0_79 = arith.constant 0 : index
    %328 = vector.load %arg5[%c0_78, %c0_79] : memref<256x512xbf16, #tpu.memory_space<vmem>>, vector<256x512xbf16>
    %cst_80 = arith.constant dense<0.000000e+00> : vector<1x512xf32>
    %329 = tpu.matmul %327, %328, %cst_80 {dimension_numbers = #tpu.dot_dimension_numbers<[1], [0], [0], [1], [0, 0, 1, 1], [], []>} : vector<1x256xbf16>, vector<256x512xbf16>, vector<1x512xf32> -> vector<1x512xf32>
    %330 = arith.addf %329, %9 : vector<1x512xf32>
    %331 = vector.extract_strided_slice %330 {offsets = [0, 0], sizes = [1, 384], strides = [1, 1]} : vector<1x512xf32> to vector<1x384xf32>
    %332 = arith.negf %331 : vector<1x384xf32>
    %333 = math.exp %332 : vector<1x384xf32>
    %cst_81 = arith.constant 1.000000e+00 : f32
    %334 = vector.broadcast %cst_81 : f32 to vector<1x384xf32>
    %335 = arith.addf %334, %333 : vector<1x384xf32>
    %336 = arith.divf %334, %335 : vector<1x384xf32>
    %337 = vector.extract_strided_slice %336 {offsets = [0, 0], sizes = [1, 128], strides = [1, 1]} : vector<1x384xf32> to vector<1x128xf32>
    %338 = vector.extract_strided_slice %336 {offsets = [0, 128], sizes = [1, 128], strides = [1, 1]} : vector<1x384xf32> to vector<1x128xf32>
    %339 = vector.extract_strided_slice %336 {offsets = [0, 256], sizes = [1, 128], strides = [1, 1]} : vector<1x384xf32> to vector<1x128xf32>
    %340 = vector.extract_strided_slice %330 {offsets = [0, 384], sizes = [1, 128], strides = [1, 1]} : vector<1x512xf32> to vector<1x128xf32>
    %341 = math.tanh %340 : vector<1x128xf32>
    %342 = arith.mulf %338, %302 : vector<1x128xf32>
    %343 = arith.mulf %337, %341 : vector<1x128xf32>
    %344 = arith.addf %342, %343 : vector<1x128xf32>
    %345 = math.tanh %344 : vector<1x128xf32>
    %346 = arith.mulf %339, %345 : vector<1x128xf32>
    %c0_82 = arith.constant 0 : index
    %c0_83 = arith.constant 0 : index
    %347 = vector.load %arg7[%c0_82, %c0_83] : memref<1x128xf32, #tpu.memory_space<vmem>>, vector<1x128xf32>
    tpu.vector_store %arg7[%c0_82, %c0_83], %346 {strides = array<i32>} : memref<1x128xf32, #tpu.memory_space<vmem>>, vector<1x128xf32>,
    return
  }
  func.func @transform_0(%arg0: i32) -> (i32, i32) {
    %c0_i32 = arith.constant 0 : i32
    %c0_i32_0 = arith.constant 0 : i32
    %c0_i32_1 = arith.constant 0 : i32
    return %c0_i32, %c0_i32_0 : i32, i32
  }
  func.func @transform_1(%arg0: i32) -> (i32, i32) {
    %c0_i32 = arith.constant 0 : i32
    %c0_i32_0 = arith.constant 0 : i32
    %c0_i32_1 = arith.constant 0 : i32
    return %c0_i32, %c0_i32_0 : i32, i32
  }
  func.func @transform_2(%arg0: i32) -> (i32, i32) {
    %c0_i32 = arith.constant 0 : i32
    %c0_i32_0 = arith.constant 0 : i32
    %c0_i32_1 = arith.constant 0 : i32
    return %c0_i32, %c0_i32_0 : i32, i32
  }
  func.func @transform_3(%arg0: i32) -> (i32, i32) {
    %c0_i32 = arith.constant 0 : i32
    %c0_i32_0 = arith.constant 0 : i32
    %c0_i32_1 = arith.constant 0 : i32
    return %c0_i32, %c0_i32_0 : i32, i32
  }
  func.func @transform_4(%arg0: i32) -> (i32, i32) {
    %c0_i32 = arith.constant 0 : i32
    %c0_i32_0 = arith.constant 0 : i32
    %c0_i32_1 = arith.constant 0 : i32
    return %c0_i32, %c0_i32_0 : i32, i32
  }
  func.func @transform_5(%arg0: i32) -> (i32, i32) {
    %c0_i32 = arith.constant 0 : i32
    %c0_i32_0 = arith.constant 0 : i32
    %c0_i32_1 = arith.constant 0 : i32
    return %c0_i32, %c0_i32_0 : i32, i32
  }
  func.func @transform_6(%arg0: i32) -> (i32, i32) {
    %c0_i32 = arith.constant 0 : i32
    %c0_i32_0 = arith.constant 0 : i32
    %c0_i32_1 = arith.constant 0 : i32
    return %c0_i32, %c0_i32_0 : i32, i32
  }
}

</mosaic_0001>

<llo_original>
// kernel: tpu_custom_call.1
$region0: #{tpu_custom_call.1}
  #allocation0 [shape = 'u32[]', space=smem, size = 0x4, offset = 0x4, fixed_abs, tag = 'smem constant byte address 0x4 - core index']
  #allocation1 [shape = 'u32[144,128]{1,0:T(1,128)}', space=vmem, size = 0x12000, scoped, tag = 'internal scratch']
  #allocation2 [shape = 'f32[8,512]{1,0:T(8,128)}', space=vmem, size = 0x4000, scoped, tag = 'scratch operand']
  %s0 = inlined_call_operand.vmem [shape: f32[8,1], index: 0, kind: input, shape index: {}]
  %s1 = inlined_call_operand.vmem [shape: f32[1,512], index: 1, kind: input, shape index: {}]
  %s2 = inlined_call_operand.vmem [shape: f32[1,512], index: 2, kind: input, shape index: {}]
  %s3 = inlined_call_operand.hbm [shape: bf16[128,512], index: 3, kind: input, shape index: {}]
  %s4 = inlined_call_operand.hbm [shape: bf16[256,512], index: 4, kind: input, shape index: {}]
  %s5 = inlined_call_operand.vmem [shape: f32[1,512], index: 5, kind: input, shape index: {}]
  %s6 = inlined_call_operand.hbm [shape: f32[1,128], index: 6, kind: output, shape index: {}]
  %s7 = sld [smem:[#allocation0]]
  $region42: #{tpu_custom_call.1} parent=0
    _
  %s9 = ssub.s32 1, %s7
  %s10 = scalar_select 0, %s9, %s7
  $region1: #{tpu_custom_call.1} parent=0
    #allocation3 [shape = 'u8[131072]{0}', space=vmem, size = 0x20000, scoped, tag = 'input window, operand 3, single buffered']
    #allocation4 [shape = 's32[1]{0}', space=sflag, size = 0x4, scoped, tag = 'scoped memory for tpu_custom_call.1']
    #allocation5 [shape = 's32[1]{0}', space=sflag, size = 0x4, scoped, tag = 'scoped memory for tpu_custom_call.1']
    #allocation6 [shape = 'u8[262144]{0}', space=vmem, size = 0x40000, scoped, tag = 'input window, operand 4, single buffered']
    #allocation7 [shape = 's32[1]{0}', space=sflag, size = 0x4, scoped, tag = 'scoped memory for tpu_custom_call.1']
    #allocation8 [shape = 'u8[512]{0}', space=vmem, size = 0x400, scoped, tag = 'output window, operand 0, single buffered']
    %11 = vsyncpa [#allocation4], 0
    %12 = vsyncpa [#allocation7], 0
    %13 = vsyncpa [#allocation5], 0
    // Predicated region
    $region2: #{tpu_custom_call.1} parent=1 // pred_check
      _
    $region3: #{tpu_custom_call.1} parent=1 // pred_check_branch
      %15 = sbr.rel (0) target = $region5
    $region4: #{tpu_custom_call.1} parent=1 // pred_region
      _
    $region5: #{tpu_custom_call.1} parent=1 // pred_fallthru
      _
    // Predicated region
    $region6: #{tpu_custom_call.1} parent=1 // pred_check
      _
    $region7: #{tpu_custom_call.1} parent=1 // pred_check_branch
      %17 = sbr.rel (0) target = $region9
    $region8: #{tpu_custom_call.1} parent=1 // pred_region
      _
    $region9: #{tpu_custom_call.1} parent=1 // pred_fallthru
      _
    // Predicated region
    $region10: #{tpu_custom_call.1} parent=1 // pred_check
      _
    $region11: #{tpu_custom_call.1} parent=1 // pred_check_branch
      %19 = sbr.rel (0) target = $region13
    $region12: #{tpu_custom_call.1} parent=1 // pred_region
      _
    $region13: #{tpu_custom_call.1} parent=1 // pred_fallthru
      _
    // Predicated region
    $region14: #{tpu_custom_call.1} parent=1 // pred_check
      _
    $region15: #{tpu_custom_call.1} parent=1 // pred_check_branch
      %21 = sbr.rel (0) target = $region17
    $region16: #{tpu_custom_call.1} parent=1 // pred_region
      %s23 = ssub.s32 4096, 4096
      %24 = vsyncadd [#allocation4], %s23
      %s25 = sshll.u32 [#allocation3], 4
      %s26 = int_to_ptr.vmem [resolvable:$true] %s25
      %31 = dma.hbm_to_vmem [thread:$0]  %s3, 4096, %s26, [#allocation4], 256, 256, 16
    $region17: #{tpu_custom_call.1} parent=1 // pred_fallthru
      _
    // Predicated region
    $region18: #{tpu_custom_call.1} parent=1 // pred_check
      _
    $region19: #{tpu_custom_call.1} parent=1 // pred_check_branch
      %33 = sbr.rel (0) target = $region21
    $region20: #{tpu_custom_call.1} parent=1 // pred_region
      %s35 = ssub.s32 8192, 8192
      %36 = vsyncadd [#allocation7], %s35
      %s37 = sshll.u32 [#allocation6], 4
      %s38 = int_to_ptr.vmem [resolvable:$true] %s37
      %43 = dma.hbm_to_vmem [thread:$0]  %s4, 8192, %s38, [#allocation7], 256, 256, 16
    $region21: #{tpu_custom_call.1} parent=1 // pred_fallthru
      _
    // Predicated region
    $region22: #{tpu_custom_call.1} parent=1 // pred_check
      _
    $region23: #{tpu_custom_call.1} parent=1 // pred_check_branch
      %45 = sbr.rel (0) target = $region25
    $region24: #{tpu_custom_call.1} parent=1 // pred_region
      _
    $region25: #{tpu_custom_call.1} parent=1 // pred_fallthru
      _
    // Predicated region
    $region26: #{tpu_custom_call.1} parent=1 // pred_check
      _
    $region27: #{tpu_custom_call.1} parent=1 // pred_check_branch
      %47 = sbr.rel (0) target = $region29
    $region28: #{tpu_custom_call.1} parent=1 // pred_region
      %48 = dma.done [#allocation4], 4096
    $region29: #{tpu_custom_call.1} parent=1 // pred_fallthru
      _
    // Predicated region
    $region30: #{tpu_custom_call.1} parent=1 // pred_check
      _
    $region31: #{tpu_custom_call.1} parent=1 // pred_check_branch
      %50 = sbr.rel (0) target = $region33
    $region32: #{tpu_custom_call.1} parent=1 // pred_region
      %51 = dma.done [#allocation7], 8192
    $region33: #{tpu_custom_call.1} parent=1 // pred_fallthru
      _
    %v53 = vld [vmem:[%s0] sm:$0xff]
    %v54 = vld [vmem:[%s1] sm:$0xf]
    %56 = vset.pattern.permute.xlu0 0
    %57 = vperm.xlu0 %56, %v53
    %v58 = vpop.permute.xlu0 %57
    %v61 = vlaneseq
    %v62 = vshrl.u32 %v61, 7
    %v63 = vsub.s32 0, %v62
    %v64 = vrot.slane %v54, %v63
    %v65 = vlaneseq
    %v66 = vshrl.u32 %v65, 7
    %v67 = vsub.s32 1, %v66
    %v68 = vrot.slane %v54, %v67
    %v69 = vlaneseq
    %v70 = vshrl.u32 %v69, 7
    %v71 = vsub.s32 2, %v70
    %v72 = vrot.slane %v54, %v71
    %v73 = vlaneseq
    %v74 = vshrl.u32 %v73, 7
    %v75 = vsub.s32 3, %v74
    %v76 = vrot.slane %v54, %v75
    %v81 = vmul.f32 %v58, %v64
    %v82 = vmul.f32 %v58, %v68
    %v83 = vmul.f32 %v58, %v72
    %v84 = vmul.f32 %v58, %v76
    %v85 = vld [vmem:[%s2] sm:$0xf]
    %v87 = vlaneseq
    %v88 = vshrl.u32 %v87, 7
    %v89 = vsub.s32 0, %v88
    %v90 = vrot.slane %v85, %v89
    %v91 = vlaneseq
    %v92 = vshrl.u32 %v91, 7
    %v93 = vsub.s32 1, %v92
    %v94 = vrot.slane %v85, %v93
    %v95 = vlaneseq
    %v96 = vshrl.u32 %v95, 7
    %v97 = vsub.s32 2, %v96
    %v98 = vrot.slane %v85, %v97
    %v99 = vlaneseq
    %v100 = vshrl.u32 %v99, 7
    %v101 = vsub.s32 3, %v100
    %v102 = vrot.slane %v85, %v101
    %v107 = vadd.f32 %v81, %v90
    %v108 = vadd.f32 %v82, %v94
    %v109 = vadd.f32 %v83, %v98
    %v110 = vadd.f32 %v84, %v102
    %111 = vst [vmem:[#allocation2] sm:$0xff] %v107
    %112 = vst [vmem:[#allocation2 + $0x8] sm:$0xff] %v108
    %113 = vst [vmem:[#allocation2 + $0x10] sm:$0xff] %v109
    %114 = vst [vmem:[#allocation2 + $0x18] sm:$0xff] %v110
    %v115 = vld [vmem:[%s5] sm:$0xf]
    %v116 = vld [vmem:[#allocation2] ss:$8 sm:$0xf]
    %v117 = vld [vmem:[#allocation3] sm:$0xff]
    %v118 = vld [vmem:[#allocation3 + $0x8] sm:$0xff]
    %v119 = vld [vmem:[#allocation3 + $0x10] sm:$0xff]
    %v120 = vld [vmem:[#allocation3 + $0x18] sm:$0xff]
    %v121 = vld [vmem:[#allocation3 + $0x20] sm:$0xff]
    %v122 = vld [vmem:[#allocation3 + $0x28] sm:$0xff]
    %v123 = vld [vmem:[#allocation3 + $0x30] sm:$0xff]
    %v124 = vld [vmem:[#allocation3 + $0x38] sm:$0xff]
    %v125 = vld [vmem:[#allocation3 + $0x40] sm:$0xff]
    %v126 = vld [vmem:[#allocation3 + $0x48] sm:$0xff]
    %v127 = vld [vmem:[#allocation3 + $0x50] sm:$0xff]
    %v128 = vld [vmem:[#allocation3 + $0x58] sm:$0xff]
    %v129 = vld [vmem:[#allocation3 + $0x60] sm:$0xff]
    %v130 = vld [vmem:[#allocation3 + $0x68] sm:$0xff]
    %v131 = vld [vmem:[#allocation3 + $0x70] sm:$0xff]
    %v132 = vld [vmem:[#allocation3 + $0x78] sm:$0xff]
    %v133 = vld [vmem:[#allocation3 + $0x80] sm:$0xff]
    %v134 = vld [vmem:[#allocation3 + $0x88] sm:$0xff]
    %v135 = vld [vmem:[#allocation3 + $0x90] sm:$0xff]
    %v136 = vld [vmem:[#allocation3 + $0x98] sm:$0xff]
    %v137 = vld [vmem:[#allocation3 + $0xa0] sm:$0xff]
    %v138 = vld [vmem:[#allocation3 + $0xa8] sm:$0xff]
    %v139 = vld [vmem:[#allocation3 + $0xb0] sm:$0xff]
    %v140 = vld [vmem:[#allocation3 + $0xb8] sm:$0xff]
    %v141 = vld [vmem:[#allocation3 + $0xc0] sm:$0xff]
    %v142 = vld [vmem:[#allocation3 + $0xc8] sm:$0xff]
    %v143 = vld [vmem:[#allocation3 + $0xd0] sm:$0xff]
    %v144 = vld [vmem:[#allocation3 + $0xd8] sm:$0xff]
    %v145 = vld [vmem:[#allocation3 + $0xe0] sm:$0xff]
    %v146 = vld [vmem:[#allocation3 + $0xe8] sm:$0xff]
    %v147 = vld [vmem:[#allocation3 + $0xf0] sm:$0xff]
    %v148 = vld [vmem:[#allocation3 + $0xf8] sm:$0xff]
    %v181 = vunpack.c.l.b16 %v117
    %v182 = vunpack.c.h.b16 %v117
    %v183 = vunpack.c.l.b16 %v118
    %v184 = vunpack.c.h.b16 %v118
    %v185 = vunpack.c.l.b16 %v119
    %v186 = vunpack.c.h.b16 %v119
    %v187 = vunpack.c.l.b16 %v120
    %v188 = vunpack.c.h.b16 %v120
    %v189 = vunpack.c.l.b16 %v121
    %v190 = vunpack.c.h.b16 %v121
    %v191 = vunpack.c.l.b16 %v122
    %v192 = vunpack.c.h.b16 %v122
    %v193 = vunpack.c.l.b16 %v123
    %v194 = vunpack.c.h.b16 %v123
    %v195 = vunpack.c.l.b16 %v124
    %v196 = vunpack.c.h.b16 %v124
    %v197 = vunpack.c.l.b16 %v125
    %v198 = vunpack.c.h.b16 %v125
    %v199 = vunpack.c.l.b16 %v126
    %v200 = vunpack.c.h.b16 %v126
    %v201 = vunpack.c.l.b16 %v127
    %v202 = vunpack.c.h.b16 %v127
    %v203 = vunpack.c.l.b16 %v128
    %v204 = vunpack.c.h.b16 %v128
    %v205 = vunpack.c.l.b16 %v129
    %v206 = vunpack.c.h.b16 %v129
    %v207 = vunpack.c.l.b16 %v130
    %v208 = vunpack.c.h.b16 %v130
    %v209 = vunpack.c.l.b16 %v131
    %v210 = vunpack.c.h.b16 %v131
    %v211 = vunpack.c.l.b16 %v132
    %v212 = vunpack.c.h.b16 %v132
    %v213 = vunpack.c.l.b16 %v133
    %v214 = vunpack.c.h.b16 %v133
    %v215 = vunpack.c.l.b16 %v134
    %v216 = vunpack.c.h.b16 %v134
    %v217 = vunpack.c.l.b16 %v135
    %v218 = vunpack.c.h.b16 %v135
    %v219 = vunpack.c.l.b16 %v136
    %v220 = vunpack.c.h.b16 %v136
    %v221 = vunpack.c.l.b16 %v137
    %v222 = vunpack.c.h.b16 %v137
    %v223 = vunpack.c.l.b16 %v138
    %v224 = vunpack.c.h.b16 %v138
    %v225 = vunpack.c.l.b16 %v139
    %v226 = vunpack.c.h.b16 %v139
    %v227 = vunpack.c.l.b16 %v140
    %v228 = vunpack.c.h.b16 %v140
    %v229 = vunpack.c.l.b16 %v141
    %v230 = vunpack.c.h.b16 %v141
    %v231 = vunpack.c.l.b16 %v142
    %v232 = vunpack.c.h.b16 %v142
    %v233 = vunpack.c.l.b16 %v143
    %v234 = vunpack.c.h.b16 %v143
    %v235 = vunpack.c.l.b16 %v144
    %v236 = vunpack.c.h.b16 %v144
    %v237 = vunpack.c.l.b16 %v145
    %v238 = vunpack.c.h.b16 %v145
    %v239 = vunpack.c.l.b16 %v146
    %v240 = vunpack.c.h.b16 %v146
    %v241 = vunpack.c.l.b16 %v147
    %v242 = vunpack.c.h.b16 %v147
    %v243 = vunpack.c.l.b16 %v148
    %v244 = vunpack.c.h.b16 %v148
    %v245 = vpack.c.b16 %v185, %v181
    %v246 = vpack.c.b16 %v186, %v182
    %v247 = vpack.c.b16 %v187, %v183
    %v248 = vpack.c.b16 %v188, %v184
    %v249 = vpack.c.b16 %v193, %v189
    %v250 = vpack.c.b16 %v194, %v190
    %v251 = vpack.c.b16 %v195, %v191
    %v252 = vpack.c.b16 %v196, %v192
    %v253 = vpack.c.b16 %v201, %v197
    %v254 = vpack.c.b16 %v202, %v198
    %v255 = vpack.c.b16 %v203, %v199
    %v256 = vpack.c.b16 %v204, %v200
    %v257 = vpack.c.b16 %v209, %v205
    %v258 = vpack.c.b16 %v210, %v206
    %v259 = vpack.c.b16 %v211, %v207
    %v260 = vpack.c.b16 %v212, %v208
    %v261 = vpack.c.b16 %v217, %v213
    %v262 = vpack.c.b16 %v218, %v214
    %v263 = vpack.c.b16 %v219, %v215
    %v264 = vpack.c.b16 %v220, %v216
    %v265 = vpack.c.b16 %v225, %v221
    %v266 = vpack.c.b16 %v226, %v222
    %v267 = vpack.c.b16 %v227, %v223
    %v268 = vpack.c.b16 %v228, %v224
    %v269 = vpack.c.b16 %v233, %v229
    %v270 = vpack.c.b16 %v234, %v230
    %v271 = vpack.c.b16 %v235, %v231
    %v272 = vpack.c.b16 %v236, %v232
    %v273 = vpack.c.b16 %v241, %v237
    %v274 = vpack.c.b16 %v242, %v238
    %v275 = vpack.c.b16 %v243, %v239
    %v276 = vpack.c.b16 %v244, %v240
    %309 = vmatprep.subr.bf16.mxu0 %v274
    %310 = vmatpush1.bf16.msra.mxu0 %v273
    %311 = vmatprep.subr.bf16.mxu0 %v270
    %312 = vmatpush1.bf16.msra.mxu0 %v269
    %313 = vmatprep.subr.bf16.mxu0 %v266
    %314 = vmatpush1.bf16.msra.mxu0 %v265
    %315 = vmatprep.subr.bf16.mxu0 %v262
    %316 = vmatpush1.bf16.msra.mxu0 %v261
    %317 = vmatprep.subr.bf16.mxu0 %v258
    %318 = vmatpush1.bf16.msra.mxu0 %v257
    %319 = vmatprep.subr.bf16.mxu0 %v254
    %320 = vmatpush1.bf16.msra.mxu0 %v253
    %321 = vmatprep.subr.bf16.mxu0 %v250
    %322 = vmatpush1.bf16.msra.mxu0 %v249
    %323 = vmatprep.subr.bf16.mxu0 %v246
    %324 = vmatpush1.bf16.msra.mxu0 %v245
    %325 = vmatprep.subr.bf16.mxu0 0
    %326 = vmatpush2.bf16.msra.mxu0 0
    %327 = vmatprep.subr.bf16.mxu0 0
    %328 = vmatpush2.bf16.msra.mxu0 0
    %329 = vmatprep.subr.bf16.mxu0 0
    %330 = vmatpush2.bf16.msra.mxu0 0
    %331 = vmatprep.subr.bf16.mxu0 0
    %332 = vmatpush2.bf16.msra.mxu0 0
    %333 = vmatprep.subr.bf16.mxu0 0
    %334 = vmatpush2.bf16.msra.mxu0 0
    %335 = vmatprep.subr.bf16.mxu0 0
    %336 = vmatpush2.bf16.msra.mxu0 0
    %337 = vmatprep.subr.bf16.mxu0 0
    %338 = vmatpush2.bf16.msra.mxu0 0
    %339 = vmatprep.subr.bf16.mxu0 0
    %340 = vmatpush2.bf16.msra.mxu0 0
    %341 = vmatprep.mubr.bf16.mxu0 0
    %342 = vmatmul.mubr.bf16.gmra.mxu0 0
    %v343 = vpop.f32.mrf.mxu0
    %v344 = vadd.f32 0.0, %v343
    %v345 = vpop.f32.mrf.mxu0
    %v346 = vadd.f32 0.0, %v345
    %v347 = vpop.f32.mrf.mxu0
    %v348 = vpop.f32.mrf.mxu0
    %349 = vdwg.mxu0
    %350 = vmatprep.subr.bf16.mxu0 %v276
    %351 = vmatpush1.bf16.msra.mxu0 %v275
    %352 = vmatprep.subr.bf16.mxu0 %v272
    %353 = vmatpush1.bf16.msra.mxu0 %v271
    %354 = vmatprep.subr.bf16.mxu0 %v268
    %355 = vmatpush1.bf16.msra.mxu0 %v267
    %356 = vmatprep.subr.bf16.mxu0 %v264
    %357 = vmatpush1.bf16.msra.mxu0 %v263
    %358 = vmatprep.subr.bf16.mxu0 %v260
    %359 = vmatpush1.bf16.msra.mxu0 %v259
    %360 = vmatprep.subr.bf16.mxu0 %v256
    %361 = vmatpush1.bf16.msra.mxu0 %v255
    %362 = vmatprep.subr.bf16.mxu0 %v252
    %363 = vmatpush1.bf16.msra.mxu0 %v251
    %364 = vmatprep.subr.bf16.mxu0 %v248
    %365 = vmatpush1.bf16.msra.mxu0 %v247
    %366 = vmatprep.subr.bf16.mxu0 0
    %367 = vmatpush2.bf16.msra.mxu0 0
    %368 = vmatprep.subr.bf16.mxu0 0
    %369 = vmatpush2.bf16.msra.mxu0 0
    %370 = vmatprep.subr.bf16.mxu0 0
    %371 = vmatpush2.bf16.msra.mxu0 0
    %372 = vmatprep.subr.bf16.mxu0 0
    %373 = vmatpush2.bf16.msra.mxu0 0
    %374 = vmatprep.subr.bf16.mxu0 0
    %375 = vmatpush2.bf16.msra.mxu0 0
    %376 = vmatprep.subr.bf16.mxu0 0
    %377 = vmatpush2.bf16.msra.mxu0 0
    %378 = vmatprep.subr.bf16.mxu0 0
    %379 = vmatpush2.bf16.msra.mxu0 0
    %380 = vmatprep.subr.bf16.mxu0 0
    %381 = vmatpush2.bf16.msra.mxu0 0
    %382 = vmatprep.mubr.bf16.mxu0 0
    %383 = vmatmul.mubr.bf16.gmra.mxu0 0
    %v384 = vpop.f32.mrf.mxu0
    %v385 = vadd.f32 0.0, %v384
    %v386 = vpop.f32.mrf.mxu0
    %v387 = vadd.f32 0.0, %v386
    %v388 = vpop.f32.mrf.mxu0
    %v389 = vpop.f32.mrf.mxu0
    %390 = vdwg.mxu0
    %v395 = vcombine.low %v344, %v346
    %v396 = vcombine.low %v385, %v387
    %v398 = vunpack.c.l.s4 1966171168
    %v399 = vunpack.c.0.s8 %v398
    %v400 = vlaneseq
    %v401 = vshrl.u32 %v400, 7
    %v402 = vsub.s32 %v399, %v401
    %v403 = vrot.slane %v395, %v402
    %v405 = vunpack.c.l.s4 1966171168
    %v406 = vunpack.c.0.s8 %v405
    %v407 = vlaneseq
    %v408 = vshrl.u32 %v407, 7
    %v409 = vsub.s32 %v406, %v408
    %v410 = vrot.slane %v396, %v409
    %v411 = vcombine.low %v403, %v410
    %v413 = vunpack.c.l.s4 1966171168
    %v414 = vunpack.c.0.s8 %v413
    %v415 = vlaneseq
    %v416 = vshrl.u32 %v415, 7
    %v417 = vsub.s32 %v414, %v416
    %v418 = vrot.slane %v411, %v417
    %v420 = vadd.f32 %v116, %v418
    %v421 = vxor.u32 %v420, 2147483648
    %v422 = vmul.f32 %v421, 1.442695
    %v423 = vpow.pop %v422
    %v424 = vadd.f32 %v423, 1.0
    %v425 = vrcp.pop %v424
    %v426 = vmul.f32 1.0, %v425
    %v428 = vrot.slane %v420, 3
    %v430 = vtanh.pop %v428
    %v432 = vrot.slane %v426, 1
    %v434 = vmul.f32 %v432, 0.0
    %v435 = vmul.f32 %v426, %v430
    %v436 = vadd.f32 %v434, %v435
    %v437 = vtanh.pop %v436
    %v438 = vrot.slane %v426, 2
    %v440 = vmul.f32 %v438, %v437
    %v441 = vpack.c.bf16 %v440, %v440
    %v442 = vpack.c.bf16 0.0, 0.0
    %v443 = vld [vmem:[#allocation6] sm:$0xff]
    %v444 = vld [vmem:[#allocation6 + $0x8] sm:$0xff]
    %v445 = vld [vmem:[#allocation6 + $0x10] sm:$0xff]
    %v446 = vld [vmem:[#allocation6 + $0x18] sm:$0xff]
    %v447 = vld [vmem:[#allocation6 + $0x20] sm:$0xff]
    %v448 = vld [vmem:[#allocation6 + $0x28] sm:$0xff]
    %v449 = vld [vmem:[#allocation6 + $0x30] sm:$0xff]
    %v450 = vld [vmem:[#allocation6 + $0x38] sm:$0xff]
    %v451 = vld [vmem:[#allocation6 + $0x40] sm:$0xff]
    %v452 = vld [vmem:[#allocation6 + $0x48] sm:$0xff]
    %v453 = vld [vmem:[#allocation6 + $0x50] sm:$0xff]
    %v454 = vld [vmem:[#allocation6 + $0x58] sm:$0xff]
    %v455 = vld [vmem:[#allocation6 + $0x60] sm:$0xff]
    %v456 = vld [vmem:[#allocation6 + $0x68] sm:$0xff]
    %v457 = vld [vmem:[#allocation6 + $0x70] sm:$0xff]
    %v458 = vld [vmem:[#allocation6 + $0x78] sm:$0xff]
    %v459 = vld [vmem:[#allocation6 + $0x80] sm:$0xff]
    %v460 = vld [vmem:[#allocation6 + $0x88] sm:$0xff]
    %v461 = vld [vmem:[#allocation6 + $0x90] sm:$0xff]
    %v462 = vld [vmem:[#allocation6 + $0x98] sm:$0xff]
    %v463 = vld [vmem:[#allocation6 + $0xa0] sm:$0xff]
    %v464 = vld [vmem:[#allocation6 + $0xa8] sm:$0xff]
    %v465 = vld [vmem:[#allocation6 + $0xb0] sm:$0xff]
    %v466 = vld [vmem:[#allocation6 + $0xb8] sm:$0xff]
    %v467 = vld [vmem:[#allocation6 + $0xc0] sm:$0xff]
    %v468 = vld [vmem:[#allocation6 + $0xc8] sm:$0xff]
    %v469 = vld [vmem:[#allocation6 + $0xd0] sm:$0xff]
    %v470 = vld [vmem:[#allocation6 + $0xd8] sm:$0xff]
    %v471 = vld [vmem:[#allocation6 + $0xe0] sm:$0xff]
    %v472 = vld [vmem:[#allocation6 + $0xe8] sm:$0xff]
    %v473 = vld [vmem:[#allocation6 + $0xf0] sm:$0xff]
    %v474 = vld [vmem:[#allocation6 + $0xf8] sm:$0xff]
    %v475 = vld [vmem:[#allocation6 + $0x100] sm:$0xff]
    %v476 = vld [vmem:[#allocation6 + $0x108] sm:$0xff]
    %v477 = vld [vmem:[#allocation6 + $0x110] sm:$0xff]
    %v478 = vld [vmem:[#allocation6 + $0x118] sm:$0xff]
    %v479 = vld [vmem:[#allocation6 + $0x120] sm:$0xff]
    %v480 = vld [vmem:[#allocation6 + $0x128] sm:$0xff]
    %v481 = vld [vmem:[#allocation6 + $0x130] sm:$0xff]
    %v482 = vld [vmem:[#allocation6 + $0x138] sm:$0xff]
    %v483 = vld [vmem:[#allocation6 + $0x140] sm:$0xff]
    %v484 = vld [vmem:[#allocation6 + $0x148] sm:$0xff]
    %v485 = vld [vmem:[#allocation6 + $0x150] sm:$0xff]
    %v486 = vld [vmem:[#allocation6 + $0x158] sm:$0xff]
    %v487 = vld [vmem:[#allocation6 + $0x160] sm:$0xff]
    %v488 = vld [vmem:[#allocation6 + $0x168] sm:$0xff]
    %v489 = vld [vmem:[#allocation6 + $0x170] sm:$0xff]
    %v490 = vld [vmem:[#allocation6 + $0x178] sm:$0xff]
    %v491 = vld [vmem:[#allocation6 + $0x180] sm:$0xff]
    %v492 = vld [vmem:[#allocation6 + $0x188] sm:$0xff]
    %v493 = vld [vmem:[#allocation6 + $0x190] sm:$0xff]
    %v494 = vld [vmem:[#allocation6 + $0x198] sm:$0xff]
    %v495 = vld [vmem:[#allocation6 + $0x1a0] sm:$0xff]
    %v496 = vld [vmem:[#allocation6 + $0x1a8] sm:$0xff]
    %v497 = vld [vmem:[#allocation6 + $0x1b0] sm:$0xff]
    %v498 = vld [vmem:[#allocation6 + $0x1b8] sm:$0xff]
    %v499 = vld [vmem:[#allocation6 + $0x1c0] sm:$0xff]
    %v500 = vld [vmem:[#allocation6 + $0x1c8] sm:$0xff]
    %v501 = vld [vmem:[#allocation6 + $0x1d0] sm:$0xff]
    %v502 = vld [vmem:[#allocation6 + $0x1d8] sm:$0xff]
    %v503 = vld [vmem:[#allocation6 + $0x1e0] sm:$0xff]
    %v504 = vld [vmem:[#allocation6 + $0x1e8] sm:$0xff]
    %v505 = vld [vmem:[#allocation6 + $0x1f0] sm:$0xff]
    %v506 = vld [vmem:[#allocation6 + $0x1f8] sm:$0xff]
    %v571 = vunpack.c.l.b16 %v443
    %v572 = vunpack.c.h.b16 %v443
    %v573 = vunpack.c.l.b16 %v444
    %v574 = vunpack.c.h.b16 %v444
    %v575 = vunpack.c.l.b16 %v445
    %v576 = vunpack.c.h.b16 %v445
    %v577 = vunpack.c.l.b16 %v446
    %v578 = vunpack.c.h.b16 %v446
    %v579 = vunpack.c.l.b16 %v447
    %v580 = vunpack.c.h.b16 %v447
    %v581 = vunpack.c.l.b16 %v448
    %v582 = vunpack.c.h.b16 %v448
    %v583 = vunpack.c.l.b16 %v449
    %v584 = vunpack.c.h.b16 %v449
    %v585 = vunpack.c.l.b16 %v450
    %v586 = vunpack.c.h.b16 %v450
    %v587 = vunpack.c.l.b16 %v451
    %v588 = vunpack.c.h.b16 %v451
    %v589 = vunpack.c.l.b16 %v452
    %v590 = vunpack.c.h.b16 %v452
    %v591 = vunpack.c.l.b16 %v453
    %v592 = vunpack.c.h.b16 %v453
    %v593 = vunpack.c.l.b16 %v454
    %v594 = vunpack.c.h.b16 %v454
    %v595 = vunpack.c.l.b16 %v455
    %v596 = vunpack.c.h.b16 %v455
    %v597 = vunpack.c.l.b16 %v456
    %v598 = vunpack.c.h.b16 %v456
    %v599 = vunpack.c.l.b16 %v457
    %v600 = vunpack.c.h.b16 %v457
    %v601 = vunpack.c.l.b16 %v458
    %v602 = vunpack.c.h.b16 %v458
    %v603 = vunpack.c.l.b16 %v459
    %v604 = vunpack.c.h.b16 %v459
    %v605 = vunpack.c.l.b16 %v460
    %v606 = vunpack.c.h.b16 %v460
    %v607 = vunpack.c.l.b16 %v461
    %v608 = vunpack.c.h.b16 %v461
    %v609 = vunpack.c.l.b16 %v462
    %v610 = vunpack.c.h.b16 %v462
    %v611 = vunpack.c.l.b16 %v463
    %v612 = vunpack.c.h.b16 %v463
    %v613 = vunpack.c.l.b16 %v464
    %v614 = vunpack.c.h.b16 %v464
    %v615 = vunpack.c.l.b16 %v465
    %v616 = vunpack.c.h.b16 %v465
    %v617 = vunpack.c.l.b16 %v466
    %v618 = vunpack.c.h.b16 %v466
    %v619 = vunpack.c.l.b16 %v467
    %v620 = vunpack.c.h.b16 %v467
    %v621 = vunpack.c.l.b16 %v468
    %v622 = vunpack.c.h.b16 %v468
    %v623 = vunpack.c.l.b16 %v469
    %v624 = vunpack.c.h.b16 %v469
    %v625 = vunpack.c.l.b16 %v470
    %v626 = vunpack.c.h.b16 %v470
    %v627 = vunpack.c.l.b16 %v471
    %v628 = vunpack.c.h.b16 %v471
    %v629 = vunpack.c.l.b16 %v472
    %v630 = vunpack.c.h.b16 %v472
    %v631 = vunpack.c.l.b16 %v473
    %v632 = vunpack.c.h.b16 %v473
    %v633 = vunpack.c.l.b16 %v474
    %v634 = vunpack.c.h.b16 %v474
    %v635 = vunpack.c.l.b16 %v475
    %v636 = vunpack.c.h.b16 %v475
    %v637 = vunpack.c.l.b16 %v476
    %v638 = vunpack.c.h.b16 %v476
    %v639 = vunpack.c.l.b16 %v477
    %v640 = vunpack.c.h.b16 %v477
    %v641 = vunpack.c.l.b16 %v478
    %v642 = vunpack.c.h.b16 %v478
    %v643 = vunpack.c.l.b16 %v479
    %v644 = vunpack.c.h.b16 %v479
    %v645 = vunpack.c.l.b16 %v480
    %v646 = vunpack.c.h.b16 %v480
    %v647 = vunpack.c.l.b16 %v481
    %v648 = vunpack.c.h.b16 %v481
    %v649 = vunpack.c.l.b16 %v482
    %v650 = vunpack.c.h.b16 %v482
    %v651 = vunpack.c.l.b16 %v483
    %v652 = vunpack.c.h.b16 %v483
    %v653 = vunpack.c.l.b16 %v484
    %v654 = vunpack.c.h.b16 %v484
    %v655 = vunpack.c.l.b16 %v485
    %v656 = vunpack.c.h.b16 %v485
    %v657 = vunpack.c.l.b16 %v486
    %v658 = vunpack.c.h.b16 %v486
    %v659 = vunpack.c.l.b16 %v487
    %v660 = vunpack.c.h.b16 %v487
    %v661 = vunpack.c.l.b16 %v488
    %v662 = vunpack.c.h.b16 %v488
    %v663 = vunpack.c.l.b16 %v489
    %v664 = vunpack.c.h.b16 %v489
    %v665 = vunpack.c.l.b16 %v490
    %v666 = vunpack.c.h.b16 %v490
    %v667 = vunpack.c.l.b16 %v491
    %v668 = vunpack.c.h.b16 %v491
    %v669 = vunpack.c.l.b16 %v492
    %v670 = vunpack.c.h.b16 %v492
    %v671 = vunpack.c.l.b16 %v493
    %v672 = vunpack.c.h.b16 %v493
    %v673 = vunpack.c.l.b16 %v494
    %v674 = vunpack.c.h.b16 %v494
    %v675 = vunpack.c.l.b16 %v495
    %v676 = vunpack.c.h.b16 %v495
    %v677 = vunpack.c.l.b16 %v496
    %v678 = vunpack.c.h.b16 %v496
    %v679 = vunpack.c.l.b16 %v497
    %v680 = vunpack.c.h.b16 %v497
    %v681 = vunpack.c.l.b16 %v498
    %v682 = vunpack.c.h.b16 %v498
    %v683 = vunpack.c.l.b16 %v499
    %v684 = vunpack.c.h.b16 %v499
    %v685 = vunpack.c.l.b16 %v500
    %v686 = vunpack.c.h.b16 %v500
    %v687 = vunpack.c.l.b16 %v501
    %v688 = vunpack.c.h.b16 %v501
    %v689 = vunpack.c.l.b16 %v502
    %v690 = vunpack.c.h.b16 %v502
    %v691 = vunpack.c.l.b16 %v503
    %v692 = vunpack.c.h.b16 %v503
    %v693 = vunpack.c.l.b16 %v504
    %v694 = vunpack.c.h.b16 %v504
    %v695 = vunpack.c.l.b16 %v505
    %v696 = vunpack.c.h.b16 %v505
    %v697 = vunpack.c.l.b16 %v506
    %v698 = vunpack.c.h.b16 %v506
    %v699 = vpack.c.b16 %v575, %v571
    %v700 = vpack.c.b16 %v576, %v572
    %v701 = vpack.c.b16 %v577, %v573
    %v702 = vpack.c.b16 %v578, %v574
    %v703 = vpack.c.b16 %v583, %v579
    %v704 = vpack.c.b16 %v584, %v580
    %v705 = vpack.c.b16 %v585, %v581
    %v706 = vpack.c.b16 %v586, %v582
    %v707 = vpack.c.b16 %v591, %v587
    %v708 = vpack.c.b16 %v592, %v588
    %v709 = vpack.c.b16 %v593, %v589
    %v710 = vpack.c.b16 %v594, %v590
    %v711 = vpack.c.b16 %v599, %v595
    %v712 = vpack.c.b16 %v600, %v596
    %v713 = vpack.c.b16 %v601, %v597
    %v714 = vpack.c.b16 %v602, %v598
    %v715 = vpack.c.b16 %v607, %v603
    %v716 = vpack.c.b16 %v608, %v604
    %v717 = vpack.c.b16 %v609, %v605
    %v718 = vpack.c.b16 %v610, %v606
    %v719 = vpack.c.b16 %v615, %v611
    %v720 = vpack.c.b16 %v616, %v612
    %v721 = vpack.c.b16 %v617, %v613
    %v722 = vpack.c.b16 %v618, %v614
    %v723 = vpack.c.b16 %v623, %v619
    %v724 = vpack.c.b16 %v624, %v620
    %v725 = vpack.c.b16 %v625, %v621
    %v726 = vpack.c.b16 %v626, %v622
    %v727 = vpack.c.b16 %v631, %v627
    %v728 = vpack.c.b16 %v632, %v628
    %v729 = vpack.c.b16 %v633, %v629
    %v730 = vpack.c.b16 %v634, %v630
    %v731 = vpack.c.b16 %v639, %v635
    %v732 = vpack.c.b16 %v640, %v636
    %v733 = vpack.c.b16 %v641, %v637
    %v734 = vpack.c.b16 %v642, %v638
    %v735 = vpack.c.b16 %v647, %v643
    %v736 = vpack.c.b16 %v648, %v644
    %v737 = vpack.c.b16 %v649, %v645
    %v738 = vpack.c.b16 %v650, %v646
    %v739 = vpack.c.b16 %v655, %v651
    %v740 = vpack.c.b16 %v656, %v652
    %v741 = vpack.c.b16 %v657, %v653
    %v742 = vpack.c.b16 %v658, %v654
    %v743 = vpack.c.b16 %v663, %v659
    %v744 = vpack.c.b16 %v664, %v660
    %v745 = vpack.c.b16 %v665, %v661
    %v746 = vpack.c.b16 %v666, %v662
    %v747 = vpack.c.b16 %v671, %v667
    %v748 = vpack.c.b16 %v672, %v668
    %v749 = vpack.c.b16 %v673, %v669
    %v750 = vpack.c.b16 %v674, %v670
    %v751 = vpack.c.b16 %v679, %v675
    %v752 = vpack.c.b16 %v680, %v676
    %v753 = vpack.c.b16 %v681, %v677
    %v754 = vpack.c.b16 %v682, %v678
    %v755 = vpack.c.b16 %v687, %v683
    %v756 = vpack.c.b16 %v688, %v684
    %v757 = vpack.c.b16 %v689, %v685
    %v758 = vpack.c.b16 %v690, %v686
    %v759 = vpack.c.b16 %v695, %v691
    %v760 = vpack.c.b16 %v696, %v692
    %v761 = vpack.c.b16 %v697, %v693
    %v762 = vpack.c.b16 %v698, %v694
    %v828 = vlaneseq
    %v829 = vshrl.u32 %v828, 7
    %v830 = vsub.s32 0, %v829
    %v831 = vrot.slane %v115, %v830
    %v832 = vlaneseq
    %v833 = vshrl.u32 %v832, 7
    %v834 = vsub.s32 1, %v833
    %v835 = vrot.slane %v115, %v834
    %v836 = vlaneseq
    %v837 = vshrl.u32 %v836, 7
    %v838 = vsub.s32 2, %v837
    %v839 = vrot.slane %v115, %v838
    %v840 = vlaneseq
    %v841 = vshrl.u32 %v840, 7
    %v842 = vsub.s32 3, %v841
    %v843 = vrot.slane %v115, %v842
    %848 = vmatprep.subr.bf16.mxu0 %v728
    %849 = vmatpush1.bf16.msra.mxu0 %v727
    %850 = vmatprep.subr.bf16.mxu0 %v724
    %851 = vmatpush1.bf16.msra.mxu0 %v723
    %852 = vmatprep.subr.bf16.mxu0 %v720
    %853 = vmatpush1.bf16.msra.mxu0 %v719
    %854 = vmatprep.subr.bf16.mxu0 %v716
    %855 = vmatpush1.bf16.msra.mxu0 %v715
    %856 = vmatprep.subr.bf16.mxu0 %v712
    %857 = vmatpush1.bf16.msra.mxu0 %v711
    %858 = vmatprep.subr.bf16.mxu0 %v708
    %859 = vmatpush1.bf16.msra.mxu0 %v707
    %860 = vmatprep.subr.bf16.mxu0 %v704
    %861 = vmatpush1.bf16.msra.mxu0 %v703
    %862 = vmatprep.subr.bf16.mxu0 %v700
    %863 = vmatpush1.bf16.msra.mxu0 %v699
    %864 = vmatprep.subr.bf16.mxu0 %v760
    %865 = vmatpush2.bf16.msra.mxu0 %v759
    %866 = vmatprep.subr.bf16.mxu0 %v756
    %867 = vmatpush2.bf16.msra.mxu0 %v755
    %868 = vmatprep.subr.bf16.mxu0 %v752
    %869 = vmatpush2.bf16.msra.mxu0 %v751
    %870 = vmatprep.subr.bf16.mxu0 %v748
    %871 = vmatpush2.bf16.msra.mxu0 %v747
    %872 = vmatprep.subr.bf16.mxu0 %v744
    %873 = vmatpush2.bf16.msra.mxu0 %v743
    %874 = vmatprep.subr.bf16.mxu0 %v740
    %875 = vmatpush2.bf16.msra.mxu0 %v739
    %876 = vmatprep.subr.bf16.mxu0 %v736
    %877 = vmatpush2.bf16.msra.mxu0 %v735
    %878 = vmatprep.subr.bf16.mxu0 %v732
    %879 = vmatpush2.bf16.msra.mxu0 %v731
    %880 = vmatprep.mubr.bf16.mxu0 %v442
    %881 = vmatmul.mubr.bf16.gmra.mxu0 %v441
    %v882 = vpop.f32.mrf.mxu0
    %v883 = vadd.f32 %v831, %v882
    %v884 = vpop.f32.mrf.mxu0
    %v885 = vadd.f32 %v835, %v884
    %v886 = vpop.f32.mrf.mxu0
    %v887 = vpop.f32.mrf.mxu0
    %888 = vdwg.mxu0
    %889 = vmatprep.subr.bf16.mxu0 %v730
    %890 = vmatpush1.bf16.msra.mxu0 %v729
    %891 = vmatprep.subr.bf16.mxu0 %v726
    %892 = vmatpush1.bf16.msra.mxu0 %v725
    %893 = vmatprep.subr.bf16.mxu0 %v722
    %894 = vmatpush1.bf16.msra.mxu0 %v721
    %895 = vmatprep.subr.bf16.mxu0 %v718
    %896 = vmatpush1.bf16.msra.mxu0 %v717
    %897 = vmatprep.subr.bf16.mxu0 %v714
    %898 = vmatpush1.bf16.msra.mxu0 %v713
    %899 = vmatprep.subr.bf16.mxu0 %v710
    %900 = vmatpush1.bf16.msra.mxu0 %v709
    %901 = vmatprep.subr.bf16.mxu0 %v706
    %902 = vmatpush1.bf16.msra.mxu0 %v705
    %903 = vmatprep.subr.bf16.mxu0 %v702
    %904 = vmatpush1.bf16.msra.mxu0 %v701
    %905 = vmatprep.subr.bf16.mxu0 %v762
    %906 = vmatpush2.bf16.msra.mxu0 %v761
    %907 = vmatprep.subr.bf16.mxu0 %v758
    %908 = vmatpush2.bf16.msra.mxu0 %v757
    %909 = vmatprep.subr.bf16.mxu0 %v754
    %910 = vmatpush2.bf16.msra.mxu0 %v753
    %911 = vmatprep.subr.bf16.mxu0 %v750
    %912 = vmatpush2.bf16.msra.mxu0 %v749
    %913 = vmatprep.subr.bf16.mxu0 %v746
    %914 = vmatpush2.bf16.msra.mxu0 %v745
    %915 = vmatprep.subr.bf16.mxu0 %v742
    %916 = vmatpush2.bf16.msra.mxu0 %v741
    %917 = vmatprep.subr.bf16.mxu0 %v738
    %918 = vmatpush2.bf16.msra.mxu0 %v737
    %919 = vmatprep.subr.bf16.mxu0 %v734
    %920 = vmatpush2.bf16.msra.mxu0 %v733
    %921 = vmatprep.mubr.bf16.mxu0 %v442
    %922 = vmatmul.mubr.bf16.gmra.mxu0 %v441
    %v923 = vpop.f32.mrf.mxu0
    %v924 = vadd.f32 %v839, %v923
    %v925 = vpop.f32.mrf.mxu0
    %v926 = vadd.f32 %v843, %v925
    %v927 = vpop.f32.mrf.mxu0
    %v928 = vpop.f32.mrf.mxu0
    %929 = vdwg.mxu0
    %v930 = vxor.u32 %v883, 2147483648
    %v931 = vxor.u32 %v885, 2147483648
    %v932 = vxor.u32 %v924, 2147483648
    %v933 = vmul.f32 %v930, 1.442695
    %v934 = vpow.pop %v933
    %v935 = vmul.f32 %v931, 1.442695
    %v936 = vpow.pop %v935
    %v937 = vmul.f32 %v932, 1.442695
    %v938 = vpow.pop %v937
    %v939 = vadd.f32 %v934, 1.0
    %v940 = vadd.f32 %v936, 1.0
    %v941 = vadd.f32 %v938, 1.0
    %v942 = vrcp.pop %v939
    %v943 = vmul.f32 1.0, %v942
    %v944 = vrcp.pop %v940
    %v945 = vmul.f32 1.0, %v944
    %v946 = vrcp.pop %v941
    %v947 = vmul.f32 1.0, %v946
    %v948 = vtanh.pop %v926
    %v949 = vmul.f32 %v945, 0.0
    %v950 = vmul.f32 %v943, %v948
    %v951 = vadd.f32 %v949, %v950
    %v952 = vtanh.pop %v951
    %v953 = vmul.f32 %v947, %v952
    %s954 = scalar_lea.vmem [#allocation2], 1
    %v955 = vld [vmem:[%s954] ss:$8 sm:$0xf]
    %956 = vmatprep.subr.bf16.mxu0 %v274
    %957 = vmatpush1.bf16.msra.mxu0 %v273
    %958 = vmatprep.subr.bf16.mxu0 %v270
    %959 = vmatpush1.bf16.msra.mxu0 %v269
    %960 = vmatprep.subr.bf16.mxu0 %v266
    %961 = vmatpush1.bf16.msra.mxu0 %v265
    %962 = vmatprep.subr.bf16.mxu0 %v262
    %963 = vmatpush1.bf16.msra.mxu0 %v261
    %964 = vmatprep.subr.bf16.mxu0 %v258
    %965 = vmatpush1.bf16.msra.mxu0 %v257
    %966 = vmatprep.subr.bf16.mxu0 %v254
    %967 = vmatpush1.bf16.msra.mxu0 %v253
    %968 = vmatprep.subr.bf16.mxu0 %v250
    %969 = vmatpush1.bf16.msra.mxu0 %v249
    %970 = vmatprep.subr.bf16.mxu0 %v246
    %971 = vmatpush1.bf16.msra.mxu0 %v245
    %972 = vmatprep.subr.bf16.mxu0 0
    %973 = vmatpush2.bf16.msra.mxu0 0
    %974 = vmatprep.subr.bf16.mxu0 0
    %975 = vmatpush2.bf16.msra.mxu0 0
    %976 = vmatprep.subr.bf16.mxu0 0
    %977 = vmatpush2.bf16.msra.mxu0 0
    %978 = vmatprep.subr.bf16.mxu0 0
    %979 = vmatpush2.bf16.msra.mxu0 0
    %980 = vmatprep.subr.bf16.mxu0 0
    %981 = vmatpush2.bf16.msra.mxu0 0
    %982 = vmatprep.subr.bf16.mxu0 0
    %983 = vmatpush2.bf16.msra.mxu0 0
    %984 = vmatprep.subr.bf16.mxu0 0
    %985 = vmatpush2.bf16.msra.mxu0 0
    %986 = vmatprep.subr.bf16.mxu0 0
    %987 = vmatpush2.bf16.msra.mxu0 0
    %988 = vmatprep.mubr.bf16.mxu0 0
    %989 = vmatmul.mubr.bf16.gmra.mxu0 %v441
    %v990 = vpop.f32.mrf.mxu0
    %v991 = vadd.f32 0.0, %v990
    %v992 = vpop.f32.mrf.mxu0
    %v993 = vadd.f32 0.0, %v992
    %v994 = vpop.f32.mrf.mxu0
    %v995 = vpop.f32.mrf.mxu0
    %996 = vdwg.mxu0
    %997 = vmatprep.subr.bf16.mxu0 %v276
    %998 = vmatpush1.bf16.msra.mxu0 %v275
    %999 = vmatprep.subr.bf16.mxu0 %v272
    %1000 = vmatpush1.bf16.msra.mxu0 %v271
    %1001 = vmatprep.subr.bf16.mxu0 %v268
    %1002 = vmatpush1.bf16.msra.mxu0 %v267
    %1003 = vmatprep.subr.bf16.mxu0 %v264
    %1004 = vmatpush1.bf16.msra.mxu0 %v263
    %1005 = vmatprep.subr.bf16.mxu0 %v260
    %1006 = vmatpush1.bf16.msra.mxu0 %v259
    %1007 = vmatprep.subr.bf16.mxu0 %v256
    %1008 = vmatpush1.bf16.msra.mxu0 %v255
    %1009 = vmatprep.subr.bf16.mxu0 %v252
    %1010 = vmatpush1.bf16.msra.mxu0 %v251
    %1011 = vmatprep.subr.bf16.mxu0 %v248
    %1012 = vmatpush1.bf16.msra.mxu0 %v247
    %1013 = vmatprep.subr.bf16.mxu0 0
    %1014 = vmatpush2.bf16.msra.mxu0 0
    %1015 = vmatprep.subr.bf16.mxu0 0
    %1016 = vmatpush2.bf16.msra.mxu0 0
    %1017 = vmatprep.subr.bf16.mxu0 0
    %1018 = vmatpush2.bf16.msra.mxu0 0
    %1019 = vmatprep.subr.bf16.mxu0 0
    %1020 = vmatpush2.bf16.msra.mxu0 0
    %1021 = vmatprep.subr.bf16.mxu0 0
    %1022 = vmatpush2.bf16.msra.mxu0 0
    %1023 = vmatprep.subr.bf16.mxu0 0
    %1024 = vmatpush2.bf16.msra.mxu0 0
    %1025 = vmatprep.subr.bf16.mxu0 0
    %1026 = vmatpush2.bf16.msra.mxu0 0
    %1027 = vmatprep.subr.bf16.mxu0 0
    %1028 = vmatpush2.bf16.msra.mxu0 0
    %1029 = vmatprep.mubr.bf16.mxu0 0
    %1030 = vmatmul.mubr.bf16.gmra.mxu0 %v441
    %v1031 = vpop.f32.mrf.mxu0
    %v1032 = vadd.f32 0.0, %v1031
    %v1033 = vpop.f32.mrf.mxu0
    %v1034 = vadd.f32 0.0, %v1033
    %v1035 = vpop.f32.mrf.mxu0
    %v1036 = vpop.f32.mrf.mxu0
    %1037 = vdwg.mxu0
    %v1042 = vcombine.low %v991, %v993
    %v1043 = vcombine.low %v1032, %v1034
    %v1045 = vunpack.c.l.s4 1966171168
    %v1046 = vunpack.c.0.s8 %v1045
    %v1047 = vlaneseq
    %v1048 = vshrl.u32 %v1047, 7
    %v1049 = vsub.s32 %v1046, %v1048
    %v1050 = vrot.slane %v1042, %v1049
    %v1052 = vunpack.c.l.s4 1966171168
    %v1053 = vunpack.c.0.s8 %v1052
    %v1054 = vlaneseq
    %v1055 = vshrl.u32 %v1054, 7
    %v1056 = vsub.s32 %v1053, %v1055
    %v1057 = vrot.slane %v1043, %v1056
    %v1058 = vcombine.low %v1050, %v1057
    %v1060 = vunpack.c.l.s4 1966171168
    %v1061 = vunpack.c.0.s8 %v1060
    %v1062 = vlaneseq
    %v1063 = vshrl.u32 %v1062, 7
    %v1064 = vsub.s32 %v1061, %v1063
    %v1065 = vrot.slane %v1058, %v1064
    %v1067 = vadd.f32 %v955, %v1065
    %v1068 = vxor.u32 %v1067, 2147483648
    %v1069 = vmul.f32 %v1068, 1.442695
    %v1070 = vpow.pop %v1069
    %v1071 = vadd.f32 %v1070, 1.0
    %v1072 = vrcp.pop %v1071
    %v1073 = vmul.f32 1.0, %v1072
    %v1075 = vrot.slane %v1067, 3
    %v1077 = vtanh.pop %v1075
    %v1079 = vrot.slane %v1073, 1
    %v1081 = vmul.f32 %v1079, %v436
    %v1082 = vmul.f32 %v1073, %v1077
    %v1083 = vadd.f32 %v1081, %v1082
    %v1084 = vtanh.pop %v1083
    %v1085 = vrot.slane %v1073, 2
    %v1087 = vmul.f32 %v1085, %v1084
    %v1088 = vpack.c.bf16 %v1087, %v1087
    %v1089 = vpack.c.bf16 %v953, %v953
    %1090 = vmatprep.subr.bf16.mxu0 %v728
    %1091 = vmatpush1.bf16.msra.mxu0 %v727
    %1092 = vmatprep.subr.bf16.mxu0 %v724
    %1093 = vmatpush1.bf16.msra.mxu0 %v723
    %1094 = vmatprep.subr.bf16.mxu0 %v720
    %1095 = vmatpush1.bf16.msra.mxu0 %v719
    %1096 = vmatprep.subr.bf16.mxu0 %v716
    %1097 = vmatpush1.bf16.msra.mxu0 %v715
    %1098 = vmatprep.subr.bf16.mxu0 %v712
    %1099 = vmatpush1.bf16.msra.mxu0 %v711
    %1100 = vmatprep.subr.bf16.mxu0 %v708
    %1101 = vmatpush1.bf16.msra.mxu0 %v707
    %1102 = vmatprep.subr.bf16.mxu0 %v704
    %1103 = vmatpush1.bf16.msra.mxu0 %v703
    %1104 = vmatprep.subr.bf16.mxu0 %v700
    %1105 = vmatpush1.bf16.msra.mxu0 %v699
    %1106 = vmatprep.subr.bf16.mxu0 %v760
    %1107 = vmatpush2.bf16.msra.mxu0 %v759
    %1108 = vmatprep.subr.bf16.mxu0 %v756
    %1109 = vmatpush2.bf16.msra.mxu0 %v755
    %1110 = vmatprep.subr.bf16.mxu0 %v752
    %1111 = vmatpush2.bf16.msra.mxu0 %v751
    %1112 = vmatprep.subr.bf16.mxu0 %v748
    %1113 = vmatpush2.bf16.msra.mxu0 %v747
    %1114 = vmatprep.subr.bf16.mxu0 %v744
    %1115 = vmatpush2.bf16.msra.mxu0 %v743
    %1116 = vmatprep.subr.bf16.mxu0 %v740
    %1117 = vmatpush2.bf16.msra.mxu0 %v739
    %1118 = vmatprep.subr.bf16.mxu0 %v736
    %1119 = vmatpush2.bf16.msra.mxu0 %v735
    %1120 = vmatprep.subr.bf16.mxu0 %v732
    %1121 = vmatpush2.bf16.msra.mxu0 %v731
    %1122 = vmatprep.mubr.bf16.mxu0 %v1089
    %1123 = vmatmul.mubr.bf16.gmra.mxu0 %v1088
    %v1124 = vpop.f32.mrf.mxu0
    %v1125 = vadd.f32 %v831, %v1124
    %v1126 = vpop.f32.mrf.mxu0
    %v1127 = vadd.f32 %v835, %v1126
    %v1128 = vpop.f32.mrf.mxu0
    %v1129 = vpop.f32.mrf.mxu0
    %1130 = vdwg.mxu0
    %1131 = vmatprep.subr.bf16.mxu0 %v730
    %1132 = vmatpush1.bf16.msra.mxu0 %v729
    %1133 = vmatprep.subr.bf16.mxu0 %v726
    %1134 = vmatpush1.bf16.msra.mxu0 %v725
    %1135 = vmatprep.subr.bf16.mxu0 %v722
    %1136 = vmatpush1.bf16.msra.mxu0 %v721
    %1137 = vmatprep.subr.bf16.mxu0 %v718
    %1138 = vmatpush1.bf16.msra.mxu0 %v717
    %1139 = vmatprep.subr.bf16.mxu0 %v714
    %1140 = vmatpush1.bf16.msra.mxu0 %v713
    %1141 = vmatprep.subr.bf16.mxu0 %v710
    %1142 = vmatpush1.bf16.msra.mxu0 %v709
    %1143 = vmatprep.subr.bf16.mxu0 %v706
    %1144 = vmatpush1.bf16.msra.mxu0 %v705
    %1145 = vmatprep.subr.bf16.mxu0 %v702
    %1146 = vmatpush1.bf16.msra.mxu0 %v701
    %1147 = vmatprep.subr.bf16.mxu0 %v762
    %1148 = vmatpush2.bf16.msra.mxu0 %v761
    %1149 = vmatprep.subr.bf16.mxu0 %v758
    %1150 = vmatpush2.bf16.msra.mxu0 %v757
    %1151 = vmatprep.subr.bf16.mxu0 %v754
    %1152 = vmatpush2.bf16.msra.mxu0 %v753
    %1153 = vmatprep.subr.bf16.mxu0 %v750
    %1154 = vmatpush2.bf16.msra.mxu0 %v749
    %1155 = vmatprep.subr.bf16.mxu0 %v746
    %1156 = vmatpush2.bf16.msra.mxu0 %v745
    %1157 = vmatprep.subr.bf16.mxu0 %v742
    %1158 = vmatpush2.bf16.msra.mxu0 %v741
    %1159 = vmatprep.subr.bf16.mxu0 %v738
    %1160 = vmatpush2.bf16.msra.mxu0 %v737
    %1161 = vmatprep.subr.bf16.mxu0 %v734
    %1162 = vmatpush2.bf16.msra.mxu0 %v733
    %1163 = vmatprep.mubr.bf16.mxu0 %v1089
    %1164 = vmatmul.mubr.bf16.gmra.mxu0 %v1088
    %v1165 = vpop.f32.mrf.mxu0
    %v1166 = vadd.f32 %v839, %v1165
    %v1167 = vpop.f32.mrf.mxu0
    %v1168 = vadd.f32 %v843, %v1167
    %v1169 = vpop.f32.mrf.mxu0
    %v1170 = vpop.f32.mrf.mxu0
    %1171 = vdwg.mxu0
    %v1172 = vxor.u32 %v1125, 2147483648
    %v1173 = vxor.u32 %v1127, 2147483648
    %v1174 = vxor.u32 %v1166, 2147483648
    %v1175 = vmul.f32 %v1172, 1.442695
    %v1176 = vpow.pop %v1175
    %v1177 = vmul.f32 %v1173, 1.442695
    %v1178 = vpow.pop %v1177
    %v1179 = vmul.f32 %v1174, 1.442695
    %v1180 = vpow.pop %v1179
    %v1181 = vadd.f32 %v1176, 1.0
    %v1182 = vadd.f32 %v1178, 1.0
    %v1183 = vadd.f32 %v1180, 1.0
    %v1184 = vrcp.pop %v1181
    %v1185 = vmul.f32 1.0, %v1184
    %v1186 = vrcp.pop %v1182
    %v1187 = vmul.f32 1.0, %v1186
    %v1188 = vrcp.pop %v1183
    %v1189 = vmul.f32 1.0, %v1188
    %v1190 = vtanh.pop %v1168
    %v1191 = vmul.f32 %v1187, %v951
    %v1192 = vmul.f32 %v1185, %v1190
    %v1193 = vadd.f32 %v1191, %v1192
    %v1194 = vtanh.pop %v1193
    %v1195 = vmul.f32 %v1189, %v1194
    %s1196 = scalar_lea.vmem [#allocation2], 2
    %v1197 = vld [vmem:[%s1196] ss:$8 sm:$0xf]
    %1198 = vmatprep.subr.bf16.mxu0 %v274
    %1199 = vmatpush1.bf16.msra.mxu0 %v273
    %1200 = vmatprep.subr.bf16.mxu0 %v270
    %1201 = vmatpush1.bf16.msra.mxu0 %v269
    %1202 = vmatprep.subr.bf16.mxu0 %v266
    %1203 = vmatpush1.bf16.msra.mxu0 %v265
    %1204 = vmatprep.subr.bf16.mxu0 %v262
    %1205 = vmatpush1.bf16.msra.mxu0 %v261
    %1206 = vmatprep.subr.bf16.mxu0 %v258
    %1207 = vmatpush1.bf16.msra.mxu0 %v257
    %1208 = vmatprep.subr.bf16.mxu0 %v254
    %1209 = vmatpush1.bf16.msra.mxu0 %v253
    %1210 = vmatprep.subr.bf16.mxu0 %v250
    %1211 = vmatpush1.bf16.msra.mxu0 %v249
    %1212 = vmatprep.subr.bf16.mxu0 %v246
    %1213 = vmatpush1.bf16.msra.mxu0 %v245
    %1214 = vmatprep.subr.bf16.mxu0 0
    %1215 = vmatpush2.bf16.msra.mxu0 0
    %1216 = vmatprep.subr.bf16.mxu0 0
    %1217 = vmatpush2.bf16.msra.mxu0 0
    %1218 = vmatprep.subr.bf16.mxu0 0
    %1219 = vmatpush2.bf16.msra.mxu0 0
    %1220 = vmatprep.subr.bf16.mxu0 0
    %1221 = vmatpush2.bf16.msra.mxu0 0
    %1222 = vmatprep.subr.bf16.mxu0 0
    %1223 = vmatpush2.bf16.msra.mxu0 0
    %1224 = vmatprep.subr.bf16.mxu0 0
    %1225 = vmatpush2.bf16.msra.mxu0 0
    %1226 = vmatprep.subr.bf16.mxu0 0
    %1227 = vmatpush2.bf16.msra.mxu0 0
    %1228 = vmatprep.subr.bf16.mxu0 0
    %1229 = vmatpush2.bf16.msra.mxu0 0
    %1230 = vmatprep.mubr.bf16.mxu0 0
    %1231 = vmatmul.mubr.bf16.gmra.mxu0 %v1088
    %v1232 = vpop.f32.mrf.mxu0
    %v1233 = vadd.f32 0.0, %v1232
    %v1234 = vpop.f32.mrf.mxu0
    %v1235 = vadd.f32 0.0, %v1234
    %v1236 = vpop.f32.mrf.mxu0
    %v1237 = vpop.f32.mrf.mxu0
    %1238 = vdwg.mxu0
    %1239 = vmatprep.subr.bf16.mxu0 %v276
    %1240 = vmatpush1.bf16.msra.mxu0 %v275
    %1241 = vmatprep.subr.bf16.mxu0 %v272
    %1242 = vmatpush1.bf16.msra.mxu0 %v271
    %1243 = vmatprep.subr.bf16.mxu0 %v268
    %1244 = vmatpush1.bf16.msra.mxu0 %v267
    %1245 = vmatprep.subr.bf16.mxu0 %v264
    %1246 = vmatpush1.bf16.msra.mxu0 %v263
    %1247 = vmatprep.subr.bf16.mxu0 %v260
    %1248 = vmatpush1.bf16.msra.mxu0 %v259
    %1249 = vmatprep.subr.bf16.mxu0 %v256
    %1250 = vmatpush1.bf16.msra.mxu0 %v255
    %1251 = vmatprep.subr.bf16.mxu0 %v252
    %1252 = vmatpush1.bf16.msra.mxu0 %v251
    %1253 = vmatprep.subr.bf16.mxu0 %v248
    %1254 = vmatpush1.bf16.msra.mxu0 %v247
    %1255 = vmatprep.subr.bf16.mxu0 0
    %1256 = vmatpush2.bf16.msra.mxu0 0
    %1257 = vmatprep.subr.bf16.mxu0 0
    %1258 = vmatpush2.bf16.msra.mxu0 0
    %1259 = vmatprep.subr.bf16.mxu0 0
    %1260 = vmatpush2.bf16.msra.mxu0 0
    %1261 = vmatprep.subr.bf16.mxu0 0
    %1262 = vmatpush2.bf16.msra.mxu0 0
    %1263 = vmatprep.subr.bf16.mxu0 0
    %1264 = vmatpush2.bf16.msra.mxu0 0
    %1265 = vmatprep.subr.bf16.mxu0 0
    %1266 = vmatpush2.bf16.msra.mxu0 0
    %1267 = vmatprep.subr.bf16.mxu0 0
    %1268 = vmatpush2.bf16.msra.mxu0 0
    %1269 = vmatprep.subr.bf16.mxu0 0
    %1270 = vmatpush2.bf16.msra.mxu0 0
    %1271 = vmatprep.mubr.bf16.mxu0 0
    %1272 = vmatmul.mubr.bf16.gmra.mxu0 %v1088
    %v1273 = vpop.f32.mrf.mxu0
    %v1274 = vadd.f32 0.0, %v1273
    %v1275 = vpop.f32.mrf.mxu0
    %v1276 = vadd.f32 0.0, %v1275
    %v1277 = vpop.f32.mrf.mxu0
    %v1278 = vpop.f32.mrf.mxu0
    %1279 = vdwg.mxu0
    %v1284 = vcombine.low %v1233, %v1235
    %v1285 = vcombine.low %v1274, %v1276
    %v1287 = vunpack.c.l.s4 1966171168
    %v1288 = vunpack.c.0.s8 %v1287
    %v1289 = vlaneseq
    %v1290 = vshrl.u32 %v1289, 7
    %v1291 = vsub.s32 %v1288, %v1290
    %v1292 = vrot.slane %v1284, %v1291
    %v1294 = vunpack.c.l.s4 1966171168
    %v1295 = vunpack.c.0.s8 %v1294
    %v1296 = vlaneseq
    %v1297 = vshrl.u32 %v1296, 7
    %v1298 = vsub.s32 %v1295, %v1297
    %v1299 = vrot.slane %v1285, %v1298
    %v1300 = vcombine.low %v1292, %v1299
    %v1302 = vunpack.c.l.s4 1966171168
    %v1303 = vunpack.c.0.s8 %v1302
    %v1304 = vlaneseq
    %v1305 = vshrl.u32 %v1304, 7
    %v1306 = vsub.s32 %v1303, %v1305
    %v1307 = vrot.slane %v1300, %v1306
    %v1309 = vadd.f32 %v1197, %v1307
    %v1310 = vxor.u32 %v1309, 2147483648
    %v1311 = vmul.f32 %v1310, 1.442695
    %v1312 = vpow.pop %v1311
    %v1313 = vadd.f32 %v1312, 1.0
    %v1314 = vrcp.pop %v1313
    %v1315 = vmul.f32 1.0, %v1314
    %v1317 = vrot.slane %v1309, 3
    %v1319 = vtanh.pop %v1317
    %v1321 = vrot.slane %v1315, 1
    %v1323 = vmul.f32 %v1321, %v1083
    %v1324 = vmul.f32 %v1315, %v1319
    %v1325 = vadd.f32 %v1323, %v1324
    %v1326 = vtanh.pop %v1325
    %v1327 = vrot.slane %v1315, 2
    %v1329 = vmul.f32 %v1327, %v1326
    %v1330 = vpack.c.bf16 %v1329, %v1329
    %v1331 = vpack.c.bf16 %v1195, %v1195
    %1332 = vmatprep.subr.bf16.mxu0 %v728
    %1333 = vmatpush1.bf16.msra.mxu0 %v727
    %1334 = vmatprep.subr.bf16.mxu0 %v724
    %1335 = vmatpush1.bf16.msra.mxu0 %v723
    %1336 = vmatprep.subr.bf16.mxu0 %v720
    %1337 = vmatpush1.bf16.msra.mxu0 %v719
    %1338 = vmatprep.subr.bf16.mxu0 %v716
    %1339 = vmatpush1.bf16.msra.mxu0 %v715
    %1340 = vmatprep.subr.bf16.mxu0 %v712
    %1341 = vmatpush1.bf16.msra.mxu0 %v711
    %1342 = vmatprep.subr.bf16.mxu0 %v708
    %1343 = vmatpush1.bf16.msra.mxu0 %v707
    %1344 = vmatprep.subr.bf16.mxu0 %v704
    %1345 = vmatpush1.bf16.msra.mxu0 %v703
    %1346 = vmatprep.subr.bf16.mxu0 %v700
    %1347 = vmatpush1.bf16.msra.mxu0 %v699
    %1348 = vmatprep.subr.bf16.mxu0 %v760
    %1349 = vmatpush2.bf16.msra.mxu0 %v759
    %1350 = vmatprep.subr.bf16.mxu0 %v756
    %1351 = vmatpush2.bf16.msra.mxu0 %v755
    %1352 = vmatprep.subr.bf16.mxu0 %v752
    %1353 = vmatpush2.bf16.msra.mxu0 %v751
    %1354 = vmatprep.subr.bf16.mxu0 %v748
    %1355 = vmatpush2.bf16.msra.mxu0 %v747
    %1356 = vmatprep.subr.bf16.mxu0 %v744
    %1357 = vmatpush2.bf16.msra.mxu0 %v743
    %1358 = vmatprep.subr.bf16.mxu0 %v740
    %1359 = vmatpush2.bf16.msra.mxu0 %v739
    %1360 = vmatprep.subr.bf16.mxu0 %v736
    %1361 = vmatpush2.bf16.msra.mxu0 %v735
    %1362 = vmatprep.subr.bf16.mxu0 %v732
    %1363 = vmatpush2.bf16.msra.mxu0 %v731
    %1364 = vmatprep.mubr.bf16.mxu0 %v1331
    %1365 = vmatmul.mubr.bf16.gmra.mxu0 %v1330
    %v1366 = vpop.f32.mrf.mxu0
    %v1367 = vadd.f32 %v831, %v1366
    %v1368 = vpop.f32.mrf.mxu0
    %v1369 = vadd.f32 %v835, %v1368
    %v1370 = vpop.f32.mrf.mxu0
    %v1371 = vpop.f32.mrf.mxu0
    %1372 = vdwg.mxu0
    %1373 = vmatprep.subr.bf16.mxu0 %v730
    %1374 = vmatpush1.bf16.msra.mxu0 %v729
    %1375 = vmatprep.subr.bf16.mxu0 %v726
    %1376 = vmatpush1.bf16.msra.mxu0 %v725
    %1377 = vmatprep.subr.bf16.mxu0 %v722
    %1378 = vmatpush1.bf16.msra.mxu0 %v721
    %1379 = vmatprep.subr.bf16.mxu0 %v718
    %1380 = vmatpush1.bf16.msra.mxu0 %v717
    %1381 = vmatprep.subr.bf16.mxu0 %v714
    %1382 = vmatpush1.bf16.msra.mxu0 %v713
    %1383 = vmatprep.subr.bf16.mxu0 %v710
    %1384 = vmatpush1.bf16.msra.mxu0 %v709
    %1385 = vmatprep.subr.bf16.mxu0 %v706
    %1386 = vmatpush1.bf16.msra.mxu0 %v705
    %1387 = vmatprep.subr.bf16.mxu0 %v702
    %1388 = vmatpush1.bf16.msra.mxu0 %v701
    %1389 = vmatprep.subr.bf16.mxu0 %v762
    %1390 = vmatpush2.bf16.msra.mxu0 %v761
    %1391 = vmatprep.subr.bf16.mxu0 %v758
    %1392 = vmatpush2.bf16.msra.mxu0 %v757
    %1393 = vmatprep.subr.bf16.mxu0 %v754
    %1394 = vmatpush2.bf16.msra.mxu0 %v753
    %1395 = vmatprep.subr.bf16.mxu0 %v750
    %1396 = vmatpush2.bf16.msra.mxu0 %v749
    %1397 = vmatprep.subr.bf16.mxu0 %v746
    %1398 = vmatpush2.bf16.msra.mxu0 %v745
    %1399 = vmatprep.subr.bf16.mxu0 %v742
    %1400 = vmatpush2.bf16.msra.mxu0 %v741
    %1401 = vmatprep.subr.bf16.mxu0 %v738
    %1402 = vmatpush2.bf16.msra.mxu0 %v737
    %1403 = vmatprep.subr.bf16.mxu0 %v734
    %1404 = vmatpush2.bf16.msra.mxu0 %v733
    %1405 = vmatprep.mubr.bf16.mxu0 %v1331
    %1406 = vmatmul.mubr.bf16.gmra.mxu0 %v1330
    %v1407 = vpop.f32.mrf.mxu0
    %v1408 = vadd.f32 %v839, %v1407
    %v1409 = vpop.f32.mrf.mxu0
    %v1410 = vadd.f32 %v843, %v1409
    %v1411 = vpop.f32.mrf.mxu0
    %v1412 = vpop.f32.mrf.mxu0
    %1413 = vdwg.mxu0
    %v1414 = vxor.u32 %v1367, 2147483648
    %v1415 = vxor.u32 %v1369, 2147483648
    %v1416 = vxor.u32 %v1408, 2147483648
    %v1417 = vmul.f32 %v1414, 1.442695
    %v1418 = vpow.pop %v1417
    %v1419 = vmul.f32 %v1415, 1.442695
    %v1420 = vpow.pop %v1419
    %v1421 = vmul.f32 %v1416, 1.442695
    %v1422 = vpow.pop %v1421
    %v1423 = vadd.f32 %v1418, 1.0
    %v1424 = vadd.f32 %v1420, 1.0
    %v1425 = vadd.f32 %v1422, 1.0
    %v1426 = vrcp.pop %v1423
    %v1427 = vmul.f32 1.0, %v1426
    %v1428 = vrcp.pop %v1424
    %v1429 = vmul.f32 1.0, %v1428
    %v1430 = vrcp.pop %v1425
    %v1431 = vmul.f32 1.0, %v1430
    %v1432 = vtanh.pop %v1410
    %v1433 = vmul.f32 %v1429, %v1193
    %v1434 = vmul.f32 %v1427, %v1432
    %v1435 = vadd.f32 %v1433, %v1434
    %v1436 = vtanh.pop %v1435
    %v1437 = vmul.f32 %v1431, %v1436
    %s1438 = scalar_lea.vmem [#allocation2], 3
    %v1439 = vld [vmem:[%s1438] ss:$8 sm:$0xf]
    %1440 = vmatprep.subr.bf16.mxu0 %v274
    %1441 = vmatpush1.bf16.msra.mxu0 %v273
    %1442 = vmatprep.subr.bf16.mxu0 %v270
    %1443 = vmatpush1.bf16.msra.mxu0 %v269
    %1444 = vmatprep.subr.bf16.mxu0 %v266
    %1445 = vmatpush1.bf16.msra.mxu0 %v265
    %1446 = vmatprep.subr.bf16.mxu0 %v262
    %1447 = vmatpush1.bf16.msra.mxu0 %v261
    %1448 = vmatprep.subr.bf16.mxu0 %v258
    %1449 = vmatpush1.bf16.msra.mxu0 %v257
    %1450 = vmatprep.subr.bf16.mxu0 %v254
    %1451 = vmatpush1.bf16.msra.mxu0 %v253
    %1452 = vmatprep.subr.bf16.mxu0 %v250
    %1453 = vmatpush1.bf16.msra.mxu0 %v249
    %1454 = vmatprep.subr.bf16.mxu0 %v246
    %1455 = vmatpush1.bf16.msra.mxu0 %v245
    %1456 = vmatprep.subr.bf16.mxu0 0
    %1457 = vmatpush2.bf16.msra.mxu0 0
    %1458 = vmatprep.subr.bf16.mxu0 0
    %1459 = vmatpush2.bf16.msra.mxu0 0
    %1460 = vmatprep.subr.bf16.mxu0 0
    %1461 = vmatpush2.bf16.msra.mxu0 0
    %1462 = vmatprep.subr.bf16.mxu0 0
    %1463 = vmatpush2.bf16.msra.mxu0 0
    %1464 = vmatprep.subr.bf16.mxu0 0
    %1465 = vmatpush2.bf16.msra.mxu0 0
    %1466 = vmatprep.subr.bf16.mxu0 0
    %1467 = vmatpush2.bf16.msra.mxu0 0
    %1468 = vmatprep.subr.bf16.mxu0 0
    %1469 = vmatpush2.bf16.msra.mxu0 0
    %1470 = vmatprep.subr.bf16.mxu0 0
    %1471 = vmatpush2.bf16.msra.mxu0 0
    %1472 = vmatprep.mubr.bf16.mxu0 0
    %1473 = vmatmul.mubr.bf16.gmra.mxu0 %v1330
    %v1474 = vpop.f32.mrf.mxu0
    %v1475 = vadd.f32 0.0, %v1474
    %v1476 = vpop.f32.mrf.mxu0
    %v1477 = vadd.f32 0.0, %v1476
    %v1478 = vpop.f32.mrf.mxu0
    %v1479 = vpop.f32.mrf.mxu0
    %1480 = vdwg.mxu0
    %1481 = vmatprep.subr.bf16.mxu0 %v276
    %1482 = vmatpush1.bf16.msra.mxu0 %v275
    %1483 = vmatprep.subr.bf16.mxu0 %v272
    %1484 = vmatpush1.bf16.msra.mxu0 %v271
    %1485 = vmatprep.subr.bf16.mxu0 %v268
    %1486 = vmatpush1.bf16.msra.mxu0 %v267
    %1487 = vmatprep.subr.bf16.mxu0 %v264
    %1488 = vmatpush1.bf16.msra.mxu0 %v263
    %1489 = vmatprep.subr.bf16.mxu0 %v260
    %1490 = vmatpush1.bf16.msra.mxu0 %v259
    %1491 = vmatprep.subr.bf16.mxu0 %v256
    %1492 = vmatpush1.bf16.msra.mxu0 %v255
    %1493 = vmatprep.subr.bf16.mxu0 %v252
    %1494 = vmatpush1.bf16.msra.mxu0 %v251
    %1495 = vmatprep.subr.bf16.mxu0 %v248
    %1496 = vmatpush1.bf16.msra.mxu0 %v247
    %1497 = vmatprep.subr.bf16.mxu0 0
    %1498 = vmatpush2.bf16.msra.mxu0 0
    %1499 = vmatprep.subr.bf16.mxu0 0
    %1500 = vmatpush2.bf16.msra.mxu0 0
    %1501 = vmatprep.subr.bf16.mxu0 0
    %1502 = vmatpush2.bf16.msra.mxu0 0
    %1503 = vmatprep.subr.bf16.mxu0 0
    %1504 = vmatpush2.bf16.msra.mxu0 0
    %1505 = vmatprep.subr.bf16.mxu0 0
    %1506 = vmatpush2.bf16.msra.mxu0 0
    %1507 = vmatprep.subr.bf16.mxu0 0
    %1508 = vmatpush2.bf16.msra.mxu0 0
    %1509 = vmatprep.subr.bf16.mxu0 0
    %1510 = vmatpush2.bf16.msra.mxu0 0
    %1511 = vmatprep.subr.bf16.mxu0 0
    %1512 = vmatpush2.bf16.msra.mxu0 0
    %1513 = vmatprep.mubr.bf16.mxu0 0
    %1514 = vmatmul.mubr.bf16.gmra.mxu0 %v1330
    %v1515 = vpop.f32.mrf.mxu0
    %v1516 = vadd.f32 0.0, %v1515
    %v1517 = vpop.f32.mrf.mxu0
    %v1518 = vadd.f32 0.0, %v1517
    %v1519 = vpop.f32.mrf.mxu0
    %v1520 = vpop.f32.mrf.mxu0
    %1521 = vdwg.mxu0
    %v1526 = vcombine.low %v1475, %v1477
    %v1527 = vcombine.low %v1516, %v1518
    %v1529 = vunpack.c.l.s4 1966171168
    %v1530 = vunpack.c.0.s8 %v1529
    %v1531 = vlaneseq
    %v1532 = vshrl.u32 %v1531, 7
    %v1533 = vsub.s32 %v1530, %v1532
    %v1534 = vrot.slane %v1526, %v1533
    %v1536 = vunpack.c.l.s4 1966171168
    %v1537 = vunpack.c.0.s8 %v1536
    %v1538 = vlaneseq
    %v1539 = vshrl.u32 %v1538, 7
    %v1540 = vsub.s32 %v1537, %v1539
    %v1541 = vrot.slane %v1527, %v1540
    %v1542 = vcombine.low %v1534, %v1541
    %v1544 = vunpack.c.l.s4 1966171168
    %v1545 = vunpack.c.0.s8 %v1544
    %v1546 = vlaneseq
    %v1547 = vshrl.u32 %v1546, 7
    %v1548 = vsub.s32 %v1545, %v1547
    %v1549 = vrot.slane %v1542, %v1548
    %v1551 = vadd.f32 %v1439, %v1549
    %v1552 = vxor.u32 %v1551, 2147483648
    %v1553 = vmul.f32 %v1552, 1.442695
    %v1554 = vpow.pop %v1553
    %v1555 = vadd.f32 %v1554, 1.0
    %v1556 = vrcp.pop %v1555
    %v1557 = vmul.f32 1.0, %v1556
    %v1559 = vrot.slane %v1551, 3
    %v1561 = vtanh.pop %v1559
    %v1563 = vrot.slane %v1557, 1
    %v1565 = vmul.f32 %v1563, %v1325
    %v1566 = vmul.f32 %v1557, %v1561
    %v1567 = vadd.f32 %v1565, %v1566
    %v1568 = vtanh.pop %v1567
    %v1569 = vrot.slane %v1557, 2
    %v1571 = vmul.f32 %v1569, %v1568
    %v1572 = vpack.c.bf16 %v1571, %v1571
    %v1573 = vpack.c.bf16 %v1437, %v1437
    %1574 = vmatprep.subr.bf16.mxu0 %v728
    %1575 = vmatpush1.bf16.msra.mxu0 %v727
    %1576 = vmatprep.subr.bf16.mxu0 %v724
    %1577 = vmatpush1.bf16.msra.mxu0 %v723
    %1578 = vmatprep.subr.bf16.mxu0 %v720
    %1579 = vmatpush1.bf16.msra.mxu0 %v719
    %1580 = vmatprep.subr.bf16.mxu0 %v716
    %1581 = vmatpush1.bf16.msra.mxu0 %v715
    %1582 = vmatprep.subr.bf16.mxu0 %v712
    %1583 = vmatpush1.bf16.msra.mxu0 %v711
    %1584 = vmatprep.subr.bf16.mxu0 %v708
    %1585 = vmatpush1.bf16.msra.mxu0 %v707
    %1586 = vmatprep.subr.bf16.mxu0 %v704
    %1587 = vmatpush1.bf16.msra.mxu0 %v703
    %1588 = vmatprep.subr.bf16.mxu0 %v700
    %1589 = vmatpush1.bf16.msra.mxu0 %v699
    %1590 = vmatprep.subr.bf16.mxu0 %v760
    %1591 = vmatpush2.bf16.msra.mxu0 %v759
    %1592 = vmatprep.subr.bf16.mxu0 %v756
    %1593 = vmatpush2.bf16.msra.mxu0 %v755
    %1594 = vmatprep.subr.bf16.mxu0 %v752
    %1595 = vmatpush2.bf16.msra.mxu0 %v751
    %1596 = vmatprep.subr.bf16.mxu0 %v748
    %1597 = vmatpush2.bf16.msra.mxu0 %v747
    %1598 = vmatprep.subr.bf16.mxu0 %v744
    %1599 = vmatpush2.bf16.msra.mxu0 %v743
    %1600 = vmatprep.subr.bf16.mxu0 %v740
    %1601 = vmatpush2.bf16.msra.mxu0 %v739
    %1602 = vmatprep.subr.bf16.mxu0 %v736
    %1603 = vmatpush2.bf16.msra.mxu0 %v735
    %1604 = vmatprep.subr.bf16.mxu0 %v732
    %1605 = vmatpush2.bf16.msra.mxu0 %v731
    %1606 = vmatprep.mubr.bf16.mxu0 %v1573
    %1607 = vmatmul.mubr.bf16.gmra.mxu0 %v1572
    %v1608 = vpop.f32.mrf.mxu0
    %v1609 = vadd.f32 %v831, %v1608
    %v1610 = vpop.f32.mrf.mxu0
    %v1611 = vadd.f32 %v835, %v1610
    %v1612 = vpop.f32.mrf.mxu0
    %v1613 = vpop.f32.mrf.mxu0
    %1614 = vdwg.mxu0
    %1615 = vmatprep.subr.bf16.mxu0 %v730
    %1616 = vmatpush1.bf16.msra.mxu0 %v729
    %1617 = vmatprep.subr.bf16.mxu0 %v726
    %1618 = vmatpush1.bf16.msra.mxu0 %v725
    %1619 = vmatprep.subr.bf16.mxu0 %v722
    %1620 = vmatpush1.bf16.msra.mxu0 %v721
    %1621 = vmatprep.subr.bf16.mxu0 %v718
    %1622 = vmatpush1.bf16.msra.mxu0 %v717
    %1623 = vmatprep.subr.bf16.mxu0 %v714
    %1624 = vmatpush1.bf16.msra.mxu0 %v713
    %1625 = vmatprep.subr.bf16.mxu0 %v710
    %1626 = vmatpush1.bf16.msra.mxu0 %v709
    %1627 = vmatprep.subr.bf16.mxu0 %v706
    %1628 = vmatpush1.bf16.msra.mxu0 %v705
    %1629 = vmatprep.subr.bf16.mxu0 %v702
    %1630 = vmatpush1.bf16.msra.mxu0 %v701
    %1631 = vmatprep.subr.bf16.mxu0 %v762
    %1632 = vmatpush2.bf16.msra.mxu0 %v761
    %1633 = vmatprep.subr.bf16.mxu0 %v758
    %1634 = vmatpush2.bf16.msra.mxu0 %v757
    %1635 = vmatprep.subr.bf16.mxu0 %v754
    %1636 = vmatpush2.bf16.msra.mxu0 %v753
    %1637 = vmatprep.subr.bf16.mxu0 %v750
    %1638 = vmatpush2.bf16.msra.mxu0 %v749
    %1639 = vmatprep.subr.bf16.mxu0 %v746
    %1640 = vmatpush2.bf16.msra.mxu0 %v745
    %1641 = vmatprep.subr.bf16.mxu0 %v742
    %1642 = vmatpush2.bf16.msra.mxu0 %v741
    %1643 = vmatprep.subr.bf16.mxu0 %v738
    %1644 = vmatpush2.bf16.msra.mxu0 %v737
    %1645 = vmatprep.subr.bf16.mxu0 %v734
    %1646 = vmatpush2.bf16.msra.mxu0 %v733
    %1647 = vmatprep.mubr.bf16.mxu0 %v1573
    %1648 = vmatmul.mubr.bf16.gmra.mxu0 %v1572
    %v1649 = vpop.f32.mrf.mxu0
    %v1650 = vadd.f32 %v839, %v1649
    %v1651 = vpop.f32.mrf.mxu0
    %v1652 = vadd.f32 %v843, %v1651
    %v1653 = vpop.f32.mrf.mxu0
    %v1654 = vpop.f32.mrf.mxu0
    %1655 = vdwg.mxu0
    %v1656 = vxor.u32 %v1609, 2147483648
    %v1657 = vxor.u32 %v1611, 2147483648
    %v1658 = vxor.u32 %v1650, 2147483648
    %v1659 = vmul.f32 %v1656, 1.442695
    %v1660 = vpow.pop %v1659
    %v1661 = vmul.f32 %v1657, 1.442695
    %v1662 = vpow.pop %v1661
    %v1663 = vmul.f32 %v1658, 1.442695
    %v1664 = vpow.pop %v1663
    %v1665 = vadd.f32 %v1660, 1.0
    %v1666 = vadd.f32 %v1662, 1.0
    %v1667 = vadd.f32 %v1664, 1.0
    %v1668 = vrcp.pop %v1665
    %v1669 = vmul.f32 1.0, %v1668
    %v1670 = vrcp.pop %v1666
    %v1671 = vmul.f32 1.0, %v1670
    %v1672 = vrcp.pop %v1667
    %v1673 = vmul.f32 1.0, %v1672
    %v1674 = vtanh.pop %v1652
    %v1675 = vmul.f32 %v1671, %v1435
    %v1676 = vmul.f32 %v1669, %v1674
    %v1677 = vadd.f32 %v1675, %v1676
    %v1678 = vtanh.pop %v1677
    %v1679 = vmul.f32 %v1673, %v1678
    %s1680 = scalar_lea.vmem [#allocation2], 4
    %v1681 = vld [vmem:[%s1680] ss:$8 sm:$0xf]
    %1682 = vmatprep.subr.bf16.mxu0 %v274
    %1683 = vmatpush1.bf16.msra.mxu0 %v273
    %1684 = vmatprep.subr.bf16.mxu0 %v270
    %1685 = vmatpush1.bf16.msra.mxu0 %v269
    %1686 = vmatprep.subr.bf16.mxu0 %v266
    %1687 = vmatpush1.bf16.msra.mxu0 %v265
    %1688 = vmatprep.subr.bf16.mxu0 %v262
    %1689 = vmatpush1.bf16.msra.mxu0 %v261
    %1690 = vmatprep.subr.bf16.mxu0 %v258
    %1691 = vmatpush1.bf16.msra.mxu0 %v257
    %1692 = vmatprep.subr.bf16.mxu0 %v254
    %1693 = vmatpush1.bf16.msra.mxu0 %v253
    %1694 = vmatprep.subr.bf16.mxu0 %v250
    %1695 = vmatpush1.bf16.msra.mxu0 %v249
    %1696 = vmatprep.subr.bf16.mxu0 %v246
    %1697 = vmatpush1.bf16.msra.mxu0 %v245
    %1698 = vmatprep.subr.bf16.mxu0 0
    %1699 = vmatpush2.bf16.msra.mxu0 0
    %1700 = vmatprep.subr.bf16.mxu0 0
    %1701 = vmatpush2.bf16.msra.mxu0 0
    %1702 = vmatprep.subr.bf16.mxu0 0
    %1703 = vmatpush2.bf16.msra.mxu0 0
    %1704 = vmatprep.subr.bf16.mxu0 0
    %1705 = vmatpush2.bf16.msra.mxu0 0
    %1706 = vmatprep.subr.bf16.mxu0 0
    %1707 = vmatpush2.bf16.msra.mxu0 0
    %1708 = vmatprep.subr.bf16.mxu0 0
    %1709 = vmatpush2.bf16.msra.mxu0 0
    %1710 = vmatprep.subr.bf16.mxu0 0
    %1711 = vmatpush2.bf16.msra.mxu0 0
    %1712 = vmatprep.subr.bf16.mxu0 0
    %1713 = vmatpush2.bf16.msra.mxu0 0
    %1714 = vmatprep.mubr.bf16.mxu0 0
    %1715 = vmatmul.mubr.bf16.gmra.mxu0 %v1572
    %v1716 = vpop.f32.mrf.mxu0
    %v1717 = vadd.f32 0.0, %v1716
    %v1718 = vpop.f32.mrf.mxu0
    %v1719 = vadd.f32 0.0, %v1718
    %v1720 = vpop.f32.mrf.mxu0
    %v1721 = vpop.f32.mrf.mxu0
    %1722 = vdwg.mxu0
    %1723 = vmatprep.subr.bf16.mxu0 %v276
    %1724 = vmatpush1.bf16.msra.mxu0 %v275
    %1725 = vmatprep.subr.bf16.mxu0 %v272
    %1726 = vmatpush1.bf16.msra.mxu0 %v271
    %1727 = vmatprep.subr.bf16.mxu0 %v268
    %1728 = vmatpush1.bf16.msra.mxu0 %v267
    %1729 = vmatprep.subr.bf16.mxu0 %v264
    %1730 = vmatpush1.bf16.msra.mxu0 %v263
    %1731 = vmatprep.subr.bf16.mxu0 %v260
    %1732 = vmatpush1.bf16.msra.mxu0 %v259
    %1733 = vmatprep.subr.bf16.mxu0 %v256
    %1734 = vmatpush1.bf16.msra.mxu0 %v255
    %1735 = vmatprep.subr.bf16.mxu0 %v252
    %1736 = vmatpush1.bf16.msra.mxu0 %v251
    %1737 = vmatprep.subr.bf16.mxu0 %v248
    %1738 = vmatpush1.bf16.msra.mxu0 %v247
    %1739 = vmatprep.subr.bf16.mxu0 0
    %1740 = vmatpush2.bf16.msra.mxu0 0
    %1741 = vmatprep.subr.bf16.mxu0 0
    %1742 = vmatpush2.bf16.msra.mxu0 0
    %1743 = vmatprep.subr.bf16.mxu0 0
    %1744 = vmatpush2.bf16.msra.mxu0 0
    %1745 = vmatprep.subr.bf16.mxu0 0
    %1746 = vmatpush2.bf16.msra.mxu0 0
    %1747 = vmatprep.subr.bf16.mxu0 0
    %1748 = vmatpush2.bf16.msra.mxu0 0
    %1749 = vmatprep.subr.bf16.mxu0 0
    %1750 = vmatpush2.bf16.msra.mxu0 0
    %1751 = vmatprep.subr.bf16.mxu0 0
    %1752 = vmatpush2.bf16.msra.mxu0 0
    %1753 = vmatprep.subr.bf16.mxu0 0
    %1754 = vmatpush2.bf16.msra.mxu0 0
    %1755 = vmatprep.mubr.bf16.mxu0 0
    %1756 = vmatmul.mubr.bf16.gmra.mxu0 %v1572
    %v1757 = vpop.f32.mrf.mxu0
    %v1758 = vadd.f32 0.0, %v1757
    %v1759 = vpop.f32.mrf.mxu0
    %v1760 = vadd.f32 0.0, %v1759
    %v1761 = vpop.f32.mrf.mxu0
    %v1762 = vpop.f32.mrf.mxu0
    %1763 = vdwg.mxu0
    %v1768 = vcombine.low %v1717, %v1719
    %v1769 = vcombine.low %v1758, %v1760
    %v1771 = vunpack.c.l.s4 1966171168
    %v1772 = vunpack.c.0.s8 %v1771
    %v1773 = vlaneseq
    %v1774 = vshrl.u32 %v1773, 7
    %v1775 = vsub.s32 %v1772, %v1774
    %v1776 = vrot.slane %v1768, %v1775
    %v1778 = vunpack.c.l.s4 1966171168
    %v1779 = vunpack.c.0.s8 %v1778
    %v1780 = vlaneseq
    %v1781 = vshrl.u32 %v1780, 7
    %v1782 = vsub.s32 %v1779, %v1781
    %v1783 = vrot.slane %v1769, %v1782
    %v1784 = vcombine.low %v1776, %v1783
    %v1786 = vunpack.c.l.s4 1966171168
    %v1787 = vunpack.c.0.s8 %v1786
    %v1788 = vlaneseq
    %v1789 = vshrl.u32 %v1788, 7
    %v1790 = vsub.s32 %v1787, %v1789
    %v1791 = vrot.slane %v1784, %v1790
    %v1793 = vadd.f32 %v1681, %v1791
    %v1794 = vxor.u32 %v1793, 2147483648
    %v1795 = vmul.f32 %v1794, 1.442695
    %v1796 = vpow.pop %v1795
    %v1797 = vadd.f32 %v1796, 1.0
    %v1798 = vrcp.pop %v1797
    %v1799 = vmul.f32 1.0, %v1798
    %v1801 = vrot.slane %v1793, 3
    %v1803 = vtanh.pop %v1801
    %v1805 = vrot.slane %v1799, 1
    %v1807 = vmul.f32 %v1805, %v1567
    %v1808 = vmul.f32 %v1799, %v1803
    %v1809 = vadd.f32 %v1807, %v1808
    %v1810 = vtanh.pop %v1809
    %v1811 = vrot.slane %v1799, 2
    %v1813 = vmul.f32 %v1811, %v1810
    %v1814 = vpack.c.bf16 %v1813, %v1813
    %v1815 = vpack.c.bf16 %v1679, %v1679
    %1816 = vmatprep.subr.bf16.mxu0 %v728
    %1817 = vmatpush1.bf16.msra.mxu0 %v727
    %1818 = vmatprep.subr.bf16.mxu0 %v724
    %1819 = vmatpush1.bf16.msra.mxu0 %v723
    %1820 = vmatprep.subr.bf16.mxu0 %v720
    %1821 = vmatpush1.bf16.msra.mxu0 %v719
    %1822 = vmatprep.subr.bf16.mxu0 %v716
    %1823 = vmatpush1.bf16.msra.mxu0 %v715
    %1824 = vmatprep.subr.bf16.mxu0 %v712
    %1825 = vmatpush1.bf16.msra.mxu0 %v711
    %1826 = vmatprep.subr.bf16.mxu0 %v708
    %1827 = vmatpush1.bf16.msra.mxu0 %v707
    %1828 = vmatprep.subr.bf16.mxu0 %v704
    %1829 = vmatpush1.bf16.msra.mxu0 %v703
    %1830 = vmatprep.subr.bf16.mxu0 %v700
    %1831 = vmatpush1.bf16.msra.mxu0 %v699
    %1832 = vmatprep.subr.bf16.mxu0 %v760
    %1833 = vmatpush2.bf16.msra.mxu0 %v759
    %1834 = vmatprep.subr.bf16.mxu0 %v756
    %1835 = vmatpush2.bf16.msra.mxu0 %v755
    %1836 = vmatprep.subr.bf16.mxu0 %v752
    %1837 = vmatpush2.bf16.msra.mxu0 %v751
    %1838 = vmatprep.subr.bf16.mxu0 %v748
    %1839 = vmatpush2.bf16.msra.mxu0 %v747
    %1840 = vmatprep.subr.bf16.mxu0 %v744
    %1841 = vmatpush2.bf16.msra.mxu0 %v743
    %1842 = vmatprep.subr.bf16.mxu0 %v740
    %1843 = vmatpush2.bf16.msra.mxu0 %v739
    %1844 = vmatprep.subr.bf16.mxu0 %v736
    %1845 = vmatpush2.bf16.msra.mxu0 %v735
    %1846 = vmatprep.subr.bf16.mxu0 %v732
    %1847 = vmatpush2.bf16.msra.mxu0 %v731
    %1848 = vmatprep.mubr.bf16.mxu0 %v1815
    %1849 = vmatmul.mubr.bf16.gmra.mxu0 %v1814
    %v1850 = vpop.f32.mrf.mxu0
    %v1851 = vadd.f32 %v831, %v1850
    %v1852 = vpop.f32.mrf.mxu0
    %v1853 = vadd.f32 %v835, %v1852
    %v1854 = vpop.f32.mrf.mxu0
    %v1855 = vpop.f32.mrf.mxu0
    %1856 = vdwg.mxu0
    %1857 = vmatprep.subr.bf16.mxu0 %v730
    %1858 = vmatpush1.bf16.msra.mxu0 %v729
    %1859 = vmatprep.subr.bf16.mxu0 %v726
    %1860 = vmatpush1.bf16.msra.mxu0 %v725
    %1861 = vmatprep.subr.bf16.mxu0 %v722
    %1862 = vmatpush1.bf16.msra.mxu0 %v721
    %1863 = vmatprep.subr.bf16.mxu0 %v718
    %1864 = vmatpush1.bf16.msra.mxu0 %v717
    %1865 = vmatprep.subr.bf16.mxu0 %v714
    %1866 = vmatpush1.bf16.msra.mxu0 %v713
    %1867 = vmatprep.subr.bf16.mxu0 %v710
    %1868 = vmatpush1.bf16.msra.mxu0 %v709
    %1869 = vmatprep.subr.bf16.mxu0 %v706
    %1870 = vmatpush1.bf16.msra.mxu0 %v705
    %1871 = vmatprep.subr.bf16.mxu0 %v702
    %1872 = vmatpush1.bf16.msra.mxu0 %v701
    %1873 = vmatprep.subr.bf16.mxu0 %v762
    %1874 = vmatpush2.bf16.msra.mxu0 %v761
    %1875 = vmatprep.subr.bf16.mxu0 %v758
    %1876 = vmatpush2.bf16.msra.mxu0 %v757
    %1877 = vmatprep.subr.bf16.mxu0 %v754
    %1878 = vmatpush2.bf16.msra.mxu0 %v753
    %1879 = vmatprep.subr.bf16.mxu0 %v750
    %1880 = vmatpush2.bf16.msra.mxu0 %v749
    %1881 = vmatprep.subr.bf16.mxu0 %v746
    %1882 = vmatpush2.bf16.msra.mxu0 %v745
    %1883 = vmatprep.subr.bf16.mxu0 %v742
    %1884 = vmatpush2.bf16.msra.mxu0 %v741
    %1885 = vmatprep.subr.bf16.mxu0 %v738
    %1886 = vmatpush2.bf16.msra.mxu0 %v737
    %1887 = vmatprep.subr.bf16.mxu0 %v734
    %1888 = vmatpush2.bf16.msra.mxu0 %v733
    %1889 = vmatprep.mubr.bf16.mxu0 %v1815
    %1890 = vmatmul.mubr.bf16.gmra.mxu0 %v1814
    %v1891 = vpop.f32.mrf.mxu0
    %v1892 = vadd.f32 %v839, %v1891
    %v1893 = vpop.f32.mrf.mxu0
    %v1894 = vadd.f32 %v843, %v1893
    %v1895 = vpop.f32.mrf.mxu0
    %v1896 = vpop.f32.mrf.mxu0
    %1897 = vdwg.mxu0
    %v1898 = vxor.u32 %v1851, 2147483648
    %v1899 = vxor.u32 %v1853, 2147483648
    %v1900 = vxor.u32 %v1892, 2147483648
    %v1901 = vmul.f32 %v1898, 1.442695
    %v1902 = vpow.pop %v1901
    %v1903 = vmul.f32 %v1899, 1.442695
    %v1904 = vpow.pop %v1903
    %v1905 = vmul.f32 %v1900, 1.442695
    %v1906 = vpow.pop %v1905
    %v1907 = vadd.f32 %v1902, 1.0
    %v1908 = vadd.f32 %v1904, 1.0
    %v1909 = vadd.f32 %v1906, 1.0
    %v1910 = vrcp.pop %v1907
    %v1911 = vmul.f32 1.0, %v1910
    %v1912 = vrcp.pop %v1908
    %v1913 = vmul.f32 1.0, %v1912
    %v1914 = vrcp.pop %v1909
    %v1915 = vmul.f32 1.0, %v1914
    %v1916 = vtanh.pop %v1894
    %v1917 = vmul.f32 %v1913, %v1677
    %v1918 = vmul.f32 %v1911, %v1916
    %v1919 = vadd.f32 %v1917, %v1918
    %v1920 = vtanh.pop %v1919
    %v1921 = vmul.f32 %v1915, %v1920
    %s1922 = scalar_lea.vmem [#allocation2], 5
    %v1923 = vld [vmem:[%s1922] ss:$8 sm:$0xf]
    %1924 = vmatprep.subr.bf16.mxu0 %v274
    %1925 = vmatpush1.bf16.msra.mxu0 %v273
    %1926 = vmatprep.subr.bf16.mxu0 %v270
    %1927 = vmatpush1.bf16.msra.mxu0 %v269
    %1928 = vmatprep.subr.bf16.mxu0 %v266
    %1929 = vmatpush1.bf16.msra.mxu0 %v265
    %1930 = vmatprep.subr.bf16.mxu0 %v262
    %1931 = vmatpush1.bf16.msra.mxu0 %v261
    %1932 = vmatprep.subr.bf16.mxu0 %v258
    %1933 = vmatpush1.bf16.msra.mxu0 %v257
    %1934 = vmatprep.subr.bf16.mxu0 %v254
    %1935 = vmatpush1.bf16.msra.mxu0 %v253
    %1936 = vmatprep.subr.bf16.mxu0 %v250
    %1937 = vmatpush1.bf16.msra.mxu0 %v249
    %1938 = vmatprep.subr.bf16.mxu0 %v246
    %1939 = vmatpush1.bf16.msra.mxu0 %v245
    %1940 = vmatprep.subr.bf16.mxu0 0
    %1941 = vmatpush2.bf16.msra.mxu0 0
    %1942 = vmatprep.subr.bf16.mxu0 0
    %1943 = vmatpush2.bf16.msra.mxu0 0
    %1944 = vmatprep.subr.bf16.mxu0 0
    %1945 = vmatpush2.bf16.msra.mxu0 0
    %1946 = vmatprep.subr.bf16.mxu0 0
    %1947 = vmatpush2.bf16.msra.mxu0 0
    %1948 = vmatprep.subr.bf16.mxu0 0
    %1949 = vmatpush2.bf16.msra.mxu0 0
    %1950 = vmatprep.subr.bf16.mxu0 0
    %1951 = vmatpush2.bf16.msra.mxu0 0
    %1952 = vmatprep.subr.bf16.mxu0 0
    %1953 = vmatpush2.bf16.msra.mxu0 0
    %1954 = vmatprep.subr.bf16.mxu0 0
    %1955 = vmatpush2.bf16.msra.mxu0 0
    %1956 = vmatprep.mubr.bf16.mxu0 0
    %1957 = vmatmul.mubr.bf16.gmra.mxu0 %v1814
    %v1958 = vpop.f32.mrf.mxu0
    %v1959 = vadd.f32 0.0, %v1958
    %v1960 = vpop.f32.mrf.mxu0
    %v1961 = vadd.f32 0.0, %v1960
    %v1962 = vpop.f32.mrf.mxu0
    %v1963 = vpop.f32.mrf.mxu0
    %1964 = vdwg.mxu0
    %1965 = vmatprep.subr.bf16.mxu0 %v276
    %1966 = vmatpush1.bf16.msra.mxu0 %v275
    %1967 = vmatprep.subr.bf16.mxu0 %v272
    %1968 = vmatpush1.bf16.msra.mxu0 %v271
    %1969 = vmatprep.subr.bf16.mxu0 %v268
    %1970 = vmatpush1.bf16.msra.mxu0 %v267
    %1971 = vmatprep.subr.bf16.mxu0 %v264
    %1972 = vmatpush1.bf16.msra.mxu0 %v263
    %1973 = vmatprep.subr.bf16.mxu0 %v260
    %1974 = vmatpush1.bf16.msra.mxu0 %v259
    %1975 = vmatprep.subr.bf16.mxu0 %v256
    %1976 = vmatpush1.bf16.msra.mxu0 %v255
    %1977 = vmatprep.subr.bf16.mxu0 %v252
    %1978 = vmatpush1.bf16.msra.mxu0 %v251
    %1979 = vmatprep.subr.bf16.mxu0 %v248
    %1980 = vmatpush1.bf16.msra.mxu0 %v247
    %1981 = vmatprep.subr.bf16.mxu0 0
    %1982 = vmatpush2.bf16.msra.mxu0 0
    %1983 = vmatprep.subr.bf16.mxu0 0
    %1984 = vmatpush2.bf16.msra.mxu0 0
    %1985 = vmatprep.subr.bf16.mxu0 0
    %1986 = vmatpush2.bf16.msra.mxu0 0
    %1987 = vmatprep.subr.bf16.mxu0 0
    %1988 = vmatpush2.bf16.msra.mxu0 0
    %1989 = vmatprep.subr.bf16.mxu0 0
    %1990 = vmatpush2.bf16.msra.mxu0 0
    %1991 = vmatprep.subr.bf16.mxu0 0
    %1992 = vmatpush2.bf16.msra.mxu0 0
    %1993 = vmatprep.subr.bf16.mxu0 0
    %1994 = vmatpush2.bf16.msra.mxu0 0
    %1995 = vmatprep.subr.bf16.mxu0 0
    %1996 = vmatpush2.bf16.msra.mxu0 0
    %1997 = vmatprep.mubr.bf16.mxu0 0
    %1998 = vmatmul.mubr.bf16.gmra.mxu0 %v1814
    %v1999 = vpop.f32.mrf.mxu0
    %v2000 = vadd.f32 0.0, %v1999
    %v2001 = vpop.f32.mrf.mxu0
    %v2002 = vadd.f32 0.0, %v2001
    %v2003 = vpop.f32.mrf.mxu0
    %v2004 = vpop.f32.mrf.mxu0
    %2005 = vdwg.mxu0
    %v2010 = vcombine.low %v1959, %v1961
    %v2011 = vcombine.low %v2000, %v2002
    %v2013 = vunpack.c.l.s4 1966171168
    %v2014 = vunpack.c.0.s8 %v2013
    %v2015 = vlaneseq
    %v2016 = vshrl.u32 %v2015, 7
    %v2017 = vsub.s32 %v2014, %v2016
    %v2018 = vrot.slane %v2010, %v2017
    %v2020 = vunpack.c.l.s4 1966171168
    %v2021 = vunpack.c.0.s8 %v2020
    %v2022 = vlaneseq
    %v2023 = vshrl.u32 %v2022, 7
    %v2024 = vsub.s32 %v2021, %v2023
    %v2025 = vrot.slane %v2011, %v2024
    %v2026 = vcombine.low %v2018, %v2025
    %v2028 = vunpack.c.l.s4 1966171168
    %v2029 = vunpack.c.0.s8 %v2028
    %v2030 = vlaneseq
    %v2031 = vshrl.u32 %v2030, 7
    %v2032 = vsub.s32 %v2029, %v2031
    %v2033 = vrot.slane %v2026, %v2032
    %v2035 = vadd.f32 %v1923, %v2033
    %v2036 = vxor.u32 %v2035, 2147483648
    %v2037 = vmul.f32 %v2036, 1.442695
    %v2038 = vpow.pop %v2037
    %v2039 = vadd.f32 %v2038, 1.0
    %v2040 = vrcp.pop %v2039
    %v2041 = vmul.f32 1.0, %v2040
    %v2043 = vrot.slane %v2035, 3
    %v2045 = vtanh.pop %v2043
    %v2047 = vrot.slane %v2041, 1
    %v2049 = vmul.f32 %v2047, %v1809
    %v2050 = vmul.f32 %v2041, %v2045
    %v2051 = vadd.f32 %v2049, %v2050
    %v2052 = vtanh.pop %v2051
    %v2053 = vrot.slane %v2041, 2
    %v2055 = vmul.f32 %v2053, %v2052
    %v2056 = vpack.c.bf16 %v2055, %v2055
    %v2057 = vpack.c.bf16 %v1921, %v1921
    %2058 = vmatprep.subr.bf16.mxu0 %v728
    %2059 = vmatpush1.bf16.msra.mxu0 %v727
    %2060 = vmatprep.subr.bf16.mxu0 %v724
    %2061 = vmatpush1.bf16.msra.mxu0 %v723
    %2062 = vmatprep.subr.bf16.mxu0 %v720
    %2063 = vmatpush1.bf16.msra.mxu0 %v719
    %2064 = vmatprep.subr.bf16.mxu0 %v716
    %2065 = vmatpush1.bf16.msra.mxu0 %v715
    %2066 = vmatprep.subr.bf16.mxu0 %v712
    %2067 = vmatpush1.bf16.msra.mxu0 %v711
    %2068 = vmatprep.subr.bf16.mxu0 %v708
    %2069 = vmatpush1.bf16.msra.mxu0 %v707
    %2070 = vmatprep.subr.bf16.mxu0 %v704
    %2071 = vmatpush1.bf16.msra.mxu0 %v703
    %2072 = vmatprep.subr.bf16.mxu0 %v700
    %2073 = vmatpush1.bf16.msra.mxu0 %v699
    %2074 = vmatprep.subr.bf16.mxu0 %v760
    %2075 = vmatpush2.bf16.msra.mxu0 %v759
    %2076 = vmatprep.subr.bf16.mxu0 %v756
    %2077 = vmatpush2.bf16.msra.mxu0 %v755
    %2078 = vmatprep.subr.bf16.mxu0 %v752
    %2079 = vmatpush2.bf16.msra.mxu0 %v751
    %2080 = vmatprep.subr.bf16.mxu0 %v748
    %2081 = vmatpush2.bf16.msra.mxu0 %v747
    %2082 = vmatprep.subr.bf16.mxu0 %v744
    %2083 = vmatpush2.bf16.msra.mxu0 %v743
    %2084 = vmatprep.subr.bf16.mxu0 %v740
    %2085 = vmatpush2.bf16.msra.mxu0 %v739
    %2086 = vmatprep.subr.bf16.mxu0 %v736
    %2087 = vmatpush2.bf16.msra.mxu0 %v735
    %2088 = vmatprep.subr.bf16.mxu0 %v732
    %2089 = vmatpush2.bf16.msra.mxu0 %v731
    %2090 = vmatprep.mubr.bf16.mxu0 %v2057
    %2091 = vmatmul.mubr.bf16.gmra.mxu0 %v2056
    %v2092 = vpop.f32.mrf.mxu0
    %v2093 = vadd.f32 %v831, %v2092
    %v2094 = vpop.f32.mrf.mxu0
    %v2095 = vadd.f32 %v835, %v2094
    %v2096 = vpop.f32.mrf.mxu0
    %v2097 = vpop.f32.mrf.mxu0
    %2098 = vdwg.mxu0
    %2099 = vmatprep.subr.bf16.mxu0 %v730
    %2100 = vmatpush1.bf16.msra.mxu0 %v729
    %2101 = vmatprep.subr.bf16.mxu0 %v726
    %2102 = vmatpush1.bf16.msra.mxu0 %v725
    %2103 = vmatprep.subr.bf16.mxu0 %v722
    %2104 = vmatpush1.bf16.msra.mxu0 %v721
    %2105 = vmatprep.subr.bf16.mxu0 %v718
    %2106 = vmatpush1.bf16.msra.mxu0 %v717
    %2107 = vmatprep.subr.bf16.mxu0 %v714
    %2108 = vmatpush1.bf16.msra.mxu0 %v713
    %2109 = vmatprep.subr.bf16.mxu0 %v710
    %2110 = vmatpush1.bf16.msra.mxu0 %v709
    %2111 = vmatprep.subr.bf16.mxu0 %v706
    %2112 = vmatpush1.bf16.msra.mxu0 %v705
    %2113 = vmatprep.subr.bf16.mxu0 %v702
    %2114 = vmatpush1.bf16.msra.mxu0 %v701
    %2115 = vmatprep.subr.bf16.mxu0 %v762
    %2116 = vmatpush2.bf16.msra.mxu0 %v761
    %2117 = vmatprep.subr.bf16.mxu0 %v758
    %2118 = vmatpush2.bf16.msra.mxu0 %v757
    %2119 = vmatprep.subr.bf16.mxu0 %v754
    %2120 = vmatpush2.bf16.msra.mxu0 %v753
    %2121 = vmatprep.subr.bf16.mxu0 %v750
    %2122 = vmatpush2.bf16.msra.mxu0 %v749
    %2123 = vmatprep.subr.bf16.mxu0 %v746
    %2124 = vmatpush2.bf16.msra.mxu0 %v745
    %2125 = vmatprep.subr.bf16.mxu0 %v742
    %2126 = vmatpush2.bf16.msra.mxu0 %v741
    %2127 = vmatprep.subr.bf16.mxu0 %v738
    %2128 = vmatpush2.bf16.msra.mxu0 %v737
    %2129 = vmatprep.subr.bf16.mxu0 %v734
    %2130 = vmatpush2.bf16.msra.mxu0 %v733
    %2131 = vmatprep.mubr.bf16.mxu0 %v2057
    %2132 = vmatmul.mubr.bf16.gmra.mxu0 %v2056
    %v2133 = vpop.f32.mrf.mxu0
    %v2134 = vadd.f32 %v839, %v2133
    %v2135 = vpop.f32.mrf.mxu0
    %v2136 = vadd.f32 %v843, %v2135
    %v2137 = vpop.f32.mrf.mxu0
    %v2138 = vpop.f32.mrf.mxu0
    %2139 = vdwg.mxu0
    %v2140 = vxor.u32 %v2093, 2147483648
    %v2141 = vxor.u32 %v2095, 2147483648
    %v2142 = vxor.u32 %v2134, 2147483648
    %v2143 = vmul.f32 %v2140, 1.442695
    %v2144 = vpow.pop %v2143
    %v2145 = vmul.f32 %v2141, 1.442695
    %v2146 = vpow.pop %v2145
    %v2147 = vmul.f32 %v2142, 1.442695
    %v2148 = vpow.pop %v2147
    %v2149 = vadd.f32 %v2144, 1.0
    %v2150 = vadd.f32 %v2146, 1.0
    %v2151 = vadd.f32 %v2148, 1.0
    %v2152 = vrcp.pop %v2149
    %v2153 = vmul.f32 1.0, %v2152
    %v2154 = vrcp.pop %v2150
    %v2155 = vmul.f32 1.0, %v2154
    %v2156 = vrcp.pop %v2151
    %v2157 = vmul.f32 1.0, %v2156
    %v2158 = vtanh.pop %v2136
    %v2159 = vmul.f32 %v2155, %v1919
    %v2160 = vmul.f32 %v2153, %v2158
    %v2161 = vadd.f32 %v2159, %v2160
    %v2162 = vtanh.pop %v2161
    %v2163 = vmul.f32 %v2157, %v2162
    %s2164 = scalar_lea.vmem [#allocation2], 6
    %v2165 = vld [vmem:[%s2164] ss:$8 sm:$0xf]
    %2166 = vmatprep.subr.bf16.mxu0 %v274
    %2167 = vmatpush1.bf16.msra.mxu0 %v273
    %2168 = vmatprep.subr.bf16.mxu0 %v270
    %2169 = vmatpush1.bf16.msra.mxu0 %v269
    %2170 = vmatprep.subr.bf16.mxu0 %v266
    %2171 = vmatpush1.bf16.msra.mxu0 %v265
    %2172 = vmatprep.subr.bf16.mxu0 %v262
    %2173 = vmatpush1.bf16.msra.mxu0 %v261
    %2174 = vmatprep.subr.bf16.mxu0 %v258
    %2175 = vmatpush1.bf16.msra.mxu0 %v257
    %2176 = vmatprep.subr.bf16.mxu0 %v254
    %2177 = vmatpush1.bf16.msra.mxu0 %v253
    %2178 = vmatprep.subr.bf16.mxu0 %v250
    %2179 = vmatpush1.bf16.msra.mxu0 %v249
    %2180 = vmatprep.subr.bf16.mxu0 %v246
    %2181 = vmatpush1.bf16.msra.mxu0 %v245
    %2182 = vmatprep.subr.bf16.mxu0 0
    %2183 = vmatpush2.bf16.msra.mxu0 0
    %2184 = vmatprep.subr.bf16.mxu0 0
    %2185 = vmatpush2.bf16.msra.mxu0 0
    %2186 = vmatprep.subr.bf16.mxu0 0
    %2187 = vmatpush2.bf16.msra.mxu0 0
    %2188 = vmatprep.subr.bf16.mxu0 0
    %2189 = vmatpush2.bf16.msra.mxu0 0
    %2190 = vmatprep.subr.bf16.mxu0 0
    %2191 = vmatpush2.bf16.msra.mxu0 0
    %2192 = vmatprep.subr.bf16.mxu0 0
    %2193 = vmatpush2.bf16.msra.mxu0 0
    %2194 = vmatprep.subr.bf16.mxu0 0
    %2195 = vmatpush2.bf16.msra.mxu0 0
    %2196 = vmatprep.subr.bf16.mxu0 0
    %2197 = vmatpush2.bf16.msra.mxu0 0
    %2198 = vmatprep.mubr.bf16.mxu0 0
    %2199 = vmatmul.mubr.bf16.gmra.mxu0 %v2056
    %v2200 = vpop.f32.mrf.mxu0
    %v2201 = vadd.f32 0.0, %v2200
    %v2202 = vpop.f32.mrf.mxu0
    %v2203 = vadd.f32 0.0, %v2202
    %v2204 = vpop.f32.mrf.mxu0
    %v2205 = vpop.f32.mrf.mxu0
    %2206 = vdwg.mxu0
    %2207 = vmatprep.subr.bf16.mxu0 %v276
    %2208 = vmatpush1.bf16.msra.mxu0 %v275
    %2209 = vmatprep.subr.bf16.mxu0 %v272
    %2210 = vmatpush1.bf16.msra.mxu0 %v271
    %2211 = vmatprep.subr.bf16.mxu0 %v268
    %2212 = vmatpush1.bf16.msra.mxu0 %v267
    %2213 = vmatprep.subr.bf16.mxu0 %v264
    %2214 = vmatpush1.bf16.msra.mxu0 %v263
    %2215 = vmatprep.subr.bf16.mxu0 %v260
    %2216 = vmatpush1.bf16.msra.mxu0 %v259
    %2217 = vmatprep.subr.bf16.mxu0 %v256
    %2218 = vmatpush1.bf16.msra.mxu0 %v255
    %2219 = vmatprep.subr.bf16.mxu0 %v252
    %2220 = vmatpush1.bf16.msra.mxu0 %v251
    %2221 = vmatprep.subr.bf16.mxu0 %v248
    %2222 = vmatpush1.bf16.msra.mxu0 %v247
    %2223 = vmatprep.subr.bf16.mxu0 0
    %2224 = vmatpush2.bf16.msra.mxu0 0
    %2225 = vmatprep.subr.bf16.mxu0 0
    %2226 = vmatpush2.bf16.msra.mxu0 0
    %2227 = vmatprep.subr.bf16.mxu0 0
    %2228 = vmatpush2.bf16.msra.mxu0 0
    %2229 = vmatprep.subr.bf16.mxu0 0
    %2230 = vmatpush2.bf16.msra.mxu0 0
    %2231 = vmatprep.subr.bf16.mxu0 0
    %2232 = vmatpush2.bf16.msra.mxu0 0
    %2233 = vmatprep.subr.bf16.mxu0 0
    %2234 = vmatpush2.bf16.msra.mxu0 0
    %2235 = vmatprep.subr.bf16.mxu0 0
    %2236 = vmatpush2.bf16.msra.mxu0 0
    %2237 = vmatprep.subr.bf16.mxu0 0
    %2238 = vmatpush2.bf16.msra.mxu0 0
    %2239 = vmatprep.mubr.bf16.mxu0 0
    %2240 = vmatmul.mubr.bf16.gmra.mxu0 %v2056
    %v2241 = vpop.f32.mrf.mxu0
    %v2242 = vadd.f32 0.0, %v2241
    %v2243 = vpop.f32.mrf.mxu0
    %v2244 = vadd.f32 0.0, %v2243
    %v2245 = vpop.f32.mrf.mxu0
    %v2246 = vpop.f32.mrf.mxu0
    %2247 = vdwg.mxu0
    %v2252 = vcombine.low %v2201, %v2203
    %v2253 = vcombine.low %v2242, %v2244
    %v2255 = vunpack.c.l.s4 1966171168
    %v2256 = vunpack.c.0.s8 %v2255
    %v2257 = vlaneseq
    %v2258 = vshrl.u32 %v2257, 7
    %v2259 = vsub.s32 %v2256, %v2258
    %v2260 = vrot.slane %v2252, %v2259
    %v2262 = vunpack.c.l.s4 1966171168
    %v2263 = vunpack.c.0.s8 %v2262
    %v2264 = vlaneseq
    %v2265 = vshrl.u32 %v2264, 7
    %v2266 = vsub.s32 %v2263, %v2265
    %v2267 = vrot.slane %v2253, %v2266
    %v2268 = vcombine.low %v2260, %v2267
    %v2270 = vunpack.c.l.s4 1966171168
    %v2271 = vunpack.c.0.s8 %v2270
    %v2272 = vlaneseq
    %v2273 = vshrl.u32 %v2272, 7
    %v2274 = vsub.s32 %v2271, %v2273
    %v2275 = vrot.slane %v2268, %v2274
    %v2277 = vadd.f32 %v2165, %v2275
    %v2278 = vxor.u32 %v2277, 2147483648
    %v2279 = vmul.f32 %v2278, 1.442695
    %v2280 = vpow.pop %v2279
    %v2281 = vadd.f32 %v2280, 1.0
    %v2282 = vrcp.pop %v2281
    %v2283 = vmul.f32 1.0, %v2282
    %v2285 = vrot.slane %v2277, 3
    %v2287 = vtanh.pop %v2285
    %v2289 = vrot.slane %v2283, 1
    %v2291 = vmul.f32 %v2289, %v2051
    %v2292 = vmul.f32 %v2283, %v2287
    %v2293 = vadd.f32 %v2291, %v2292
    %v2294 = vtanh.pop %v2293
    %v2295 = vrot.slane %v2283, 2
    %v2297 = vmul.f32 %v2295, %v2294
    %v2298 = vpack.c.bf16 %v2297, %v2297
    %v2299 = vpack.c.bf16 %v2163, %v2163
    %2300 = vmatprep.subr.bf16.mxu0 %v728
    %2301 = vmatpush1.bf16.msra.mxu0 %v727
    %2302 = vmatprep.subr.bf16.mxu0 %v724
    %2303 = vmatpush1.bf16.msra.mxu0 %v723
    %2304 = vmatprep.subr.bf16.mxu0 %v720
    %2305 = vmatpush1.bf16.msra.mxu0 %v719
    %2306 = vmatprep.subr.bf16.mxu0 %v716
    %2307 = vmatpush1.bf16.msra.mxu0 %v715
    %2308 = vmatprep.subr.bf16.mxu0 %v712
    %2309 = vmatpush1.bf16.msra.mxu0 %v711
    %2310 = vmatprep.subr.bf16.mxu0 %v708
    %2311 = vmatpush1.bf16.msra.mxu0 %v707
    %2312 = vmatprep.subr.bf16.mxu0 %v704
    %2313 = vmatpush1.bf16.msra.mxu0 %v703
    %2314 = vmatprep.subr.bf16.mxu0 %v700
    %2315 = vmatpush1.bf16.msra.mxu0 %v699
    %2316 = vmatprep.subr.bf16.mxu0 %v760
    %2317 = vmatpush2.bf16.msra.mxu0 %v759
    %2318 = vmatprep.subr.bf16.mxu0 %v756
    %2319 = vmatpush2.bf16.msra.mxu0 %v755
    %2320 = vmatprep.subr.bf16.mxu0 %v752
    %2321 = vmatpush2.bf16.msra.mxu0 %v751
    %2322 = vmatprep.subr.bf16.mxu0 %v748
    %2323 = vmatpush2.bf16.msra.mxu0 %v747
    %2324 = vmatprep.subr.bf16.mxu0 %v744
    %2325 = vmatpush2.bf16.msra.mxu0 %v743
    %2326 = vmatprep.subr.bf16.mxu0 %v740
    %2327 = vmatpush2.bf16.msra.mxu0 %v739
    %2328 = vmatprep.subr.bf16.mxu0 %v736
    %2329 = vmatpush2.bf16.msra.mxu0 %v735
    %2330 = vmatprep.subr.bf16.mxu0 %v732
    %2331 = vmatpush2.bf16.msra.mxu0 %v731
    %2332 = vmatprep.mubr.bf16.mxu0 %v2299
    %2333 = vmatmul.mubr.bf16.gmra.mxu0 %v2298
    %v2334 = vpop.f32.mrf.mxu0
    %v2335 = vadd.f32 %v831, %v2334
    %v2336 = vpop.f32.mrf.mxu0
    %v2337 = vadd.f32 %v835, %v2336
    %v2338 = vpop.f32.mrf.mxu0
    %v2339 = vpop.f32.mrf.mxu0
    %2340 = vdwg.mxu0
    %2341 = vmatprep.subr.bf16.mxu0 %v730
    %2342 = vmatpush1.bf16.msra.mxu0 %v729
    %2343 = vmatprep.subr.bf16.mxu0 %v726
    %2344 = vmatpush1.bf16.msra.mxu0 %v725
    %2345 = vmatprep.subr.bf16.mxu0 %v722
    %2346 = vmatpush1.bf16.msra.mxu0 %v721
    %2347 = vmatprep.subr.bf16.mxu0 %v718
    %2348 = vmatpush1.bf16.msra.mxu0 %v717
    %2349 = vmatprep.subr.bf16.mxu0 %v714
    %2350 = vmatpush1.bf16.msra.mxu0 %v713
    %2351 = vmatprep.subr.bf16.mxu0 %v710
    %2352 = vmatpush1.bf16.msra.mxu0 %v709
    %2353 = vmatprep.subr.bf16.mxu0 %v706
    %2354 = vmatpush1.bf16.msra.mxu0 %v705
    %2355 = vmatprep.subr.bf16.mxu0 %v702
    %2356 = vmatpush1.bf16.msra.mxu0 %v701
    %2357 = vmatprep.subr.bf16.mxu0 %v762
    %2358 = vmatpush2.bf16.msra.mxu0 %v761
    %2359 = vmatprep.subr.bf16.mxu0 %v758
    %2360 = vmatpush2.bf16.msra.mxu0 %v757
    %2361 = vmatprep.subr.bf16.mxu0 %v754
    %2362 = vmatpush2.bf16.msra.mxu0 %v753
    %2363 = vmatprep.subr.bf16.mxu0 %v750
    %2364 = vmatpush2.bf16.msra.mxu0 %v749
    %2365 = vmatprep.subr.bf16.mxu0 %v746
    %2366 = vmatpush2.bf16.msra.mxu0 %v745
    %2367 = vmatprep.subr.bf16.mxu0 %v742
    %2368 = vmatpush2.bf16.msra.mxu0 %v741
    %2369 = vmatprep.subr.bf16.mxu0 %v738
    %2370 = vmatpush2.bf16.msra.mxu0 %v737
    %2371 = vmatprep.subr.bf16.mxu0 %v734
    %2372 = vmatpush2.bf16.msra.mxu0 %v733
    %2373 = vmatprep.mubr.bf16.mxu0 %v2299
    %2374 = vmatmul.mubr.bf16.gmra.mxu0 %v2298
    %v2375 = vpop.f32.mrf.mxu0
    %v2376 = vadd.f32 %v839, %v2375
    %v2377 = vpop.f32.mrf.mxu0
    %v2378 = vadd.f32 %v843, %v2377
    %v2379 = vpop.f32.mrf.mxu0
    %v2380 = vpop.f32.mrf.mxu0
    %2381 = vdwg.mxu0
    %v2382 = vxor.u32 %v2335, 2147483648
    %v2383 = vxor.u32 %v2337, 2147483648
    %v2384 = vxor.u32 %v2376, 2147483648
    %v2385 = vmul.f32 %v2382, 1.442695
    %v2386 = vpow.pop %v2385
    %v2387 = vmul.f32 %v2383, 1.442695
    %v2388 = vpow.pop %v2387
    %v2389 = vmul.f32 %v2384, 1.442695
    %v2390 = vpow.pop %v2389
    %v2391 = vadd.f32 %v2386, 1.0
    %v2392 = vadd.f32 %v2388, 1.0
    %v2393 = vadd.f32 %v2390, 1.0
    %v2394 = vrcp.pop %v2391
    %v2395 = vmul.f32 1.0, %v2394
    %v2396 = vrcp.pop %v2392
    %v2397 = vmul.f32 1.0, %v2396
    %v2398 = vrcp.pop %v2393
    %v2399 = vmul.f32 1.0, %v2398
    %v2400 = vtanh.pop %v2378
    %v2401 = vmul.f32 %v2397, %v2161
    %v2402 = vmul.f32 %v2395, %v2400
    %v2403 = vadd.f32 %v2401, %v2402
    %v2404 = vtanh.pop %v2403
    %v2405 = vmul.f32 %v2399, %v2404
    %s2406 = scalar_lea.vmem [#allocation2], 7
    %v2407 = vld [vmem:[%s2406] ss:$8 sm:$0xf]
    %2408 = vmatprep.subr.bf16.mxu0 %v274
    %2409 = vmatpush1.bf16.msra.mxu0 %v273
    %2410 = vmatprep.subr.bf16.mxu0 %v270
    %2411 = vmatpush1.bf16.msra.mxu0 %v269
    %2412 = vmatprep.subr.bf16.mxu0 %v266
    %2413 = vmatpush1.bf16.msra.mxu0 %v265
    %2414 = vmatprep.subr.bf16.mxu0 %v262
    %2415 = vmatpush1.bf16.msra.mxu0 %v261
    %2416 = vmatprep.subr.bf16.mxu0 %v258
    %2417 = vmatpush1.bf16.msra.mxu0 %v257
    %2418 = vmatprep.subr.bf16.mxu0 %v254
    %2419 = vmatpush1.bf16.msra.mxu0 %v253
    %2420 = vmatprep.subr.bf16.mxu0 %v250
    %2421 = vmatpush1.bf16.msra.mxu0 %v249
    %2422 = vmatprep.subr.bf16.mxu0 %v246
    %2423 = vmatpush1.bf16.msra.mxu0 %v245
    %2424 = vmatprep.subr.bf16.mxu0 0
    %2425 = vmatpush2.bf16.msra.mxu0 0
    %2426 = vmatprep.subr.bf16.mxu0 0
    %2427 = vmatpush2.bf16.msra.mxu0 0
    %2428 = vmatprep.subr.bf16.mxu0 0
    %2429 = vmatpush2.bf16.msra.mxu0 0
    %2430 = vmatprep.subr.bf16.mxu0 0
    %2431 = vmatpush2.bf16.msra.mxu0 0
    %2432 = vmatprep.subr.bf16.mxu0 0
    %2433 = vmatpush2.bf16.msra.mxu0 0
    %2434 = vmatprep.subr.bf16.mxu0 0
    %2435 = vmatpush2.bf16.msra.mxu0 0
    %2436 = vmatprep.subr.bf16.mxu0 0
    %2437 = vmatpush2.bf16.msra.mxu0 0
    %2438 = vmatprep.subr.bf16.mxu0 0
    %2439 = vmatpush2.bf16.msra.mxu0 0
    %2440 = vmatprep.mubr.bf16.mxu0 0
    %2441 = vmatmul.mubr.bf16.gmra.mxu0 %v2298
    %v2442 = vpop.f32.mrf.mxu0
    %v2443 = vadd.f32 0.0, %v2442
    %v2444 = vpop.f32.mrf.mxu0
    %v2445 = vadd.f32 0.0, %v2444
    %v2446 = vpop.f32.mrf.mxu0
    %v2447 = vpop.f32.mrf.mxu0
    %2448 = vdwg.mxu0
    %2449 = vmatprep.subr.bf16.mxu0 %v276
    %2450 = vmatpush1.bf16.msra.mxu0 %v275
    %2451 = vmatprep.subr.bf16.mxu0 %v272
    %2452 = vmatpush1.bf16.msra.mxu0 %v271
    %2453 = vmatprep.subr.bf16.mxu0 %v268
    %2454 = vmatpush1.bf16.msra.mxu0 %v267
    %2455 = vmatprep.subr.bf16.mxu0 %v264
    %2456 = vmatpush1.bf16.msra.mxu0 %v263
    %2457 = vmatprep.subr.bf16.mxu0 %v260
    %2458 = vmatpush1.bf16.msra.mxu0 %v259
    %2459 = vmatprep.subr.bf16.mxu0 %v256
    %2460 = vmatpush1.bf16.msra.mxu0 %v255
    %2461 = vmatprep.subr.bf16.mxu0 %v252
    %2462 = vmatpush1.bf16.msra.mxu0 %v251
    %2463 = vmatprep.subr.bf16.mxu0 %v248
    %2464 = vmatpush1.bf16.msra.mxu0 %v247
    %2465 = vmatprep.subr.bf16.mxu0 0
    %2466 = vmatpush2.bf16.msra.mxu0 0
    %2467 = vmatprep.subr.bf16.mxu0 0
    %2468 = vmatpush2.bf16.msra.mxu0 0
    %2469 = vmatprep.subr.bf16.mxu0 0
    %2470 = vmatpush2.bf16.msra.mxu0 0
    %2471 = vmatprep.subr.bf16.mxu0 0
    %2472 = vmatpush2.bf16.msra.mxu0 0
    %2473 = vmatprep.subr.bf16.mxu0 0
    %2474 = vmatpush2.bf16.msra.mxu0 0
    %2475 = vmatprep.subr.bf16.mxu0 0
    %2476 = vmatpush2.bf16.msra.mxu0 0
    %2477 = vmatprep.subr.bf16.mxu0 0
    %2478 = vmatpush2.bf16.msra.mxu0 0
    %2479 = vmatprep.subr.bf16.mxu0 0
    %2480 = vmatpush2.bf16.msra.mxu0 0
    %2481 = vmatprep.mubr.bf16.mxu0 0
    %2482 = vmatmul.mubr.bf16.gmra.mxu0 %v2298
    %v2483 = vpop.f32.mrf.mxu0
    %v2484 = vadd.f32 0.0, %v2483
    %v2485 = vpop.f32.mrf.mxu0
    %v2486 = vadd.f32 0.0, %v2485
    %v2487 = vpop.f32.mrf.mxu0
    %v2488 = vpop.f32.mrf.mxu0
    %2489 = vdwg.mxu0
    %v2494 = vcombine.low %v2443, %v2445
    %v2495 = vcombine.low %v2484, %v2486
    %v2497 = vunpack.c.l.s4 1966171168
    %v2498 = vunpack.c.0.s8 %v2497
    %v2499 = vlaneseq
    %v2500 = vshrl.u32 %v2499, 7
    %v2501 = vsub.s32 %v2498, %v2500
    %v2502 = vrot.slane %v2494, %v2501
    %v2504 = vunpack.c.l.s4 1966171168
    %v2505 = vunpack.c.0.s8 %v2504
    %v2506 = vlaneseq
    %v2507 = vshrl.u32 %v2506, 7
    %v2508 = vsub.s32 %v2505, %v2507
    %v2509 = vrot.slane %v2495, %v2508
    %v2510 = vcombine.low %v2502, %v2509
    %v2512 = vunpack.c.l.s4 1966171168
    %v2513 = vunpack.c.0.s8 %v2512
    %v2514 = vlaneseq
    %v2515 = vshrl.u32 %v2514, 7
    %v2516 = vsub.s32 %v2513, %v2515
    %v2517 = vrot.slane %v2510, %v2516
    %v2519 = vadd.f32 %v2407, %v2517
    %v2520 = vxor.u32 %v2519, 2147483648
    %v2521 = vmul.f32 %v2520, 1.442695
    %v2522 = vpow.pop %v2521
    %v2523 = vadd.f32 %v2522, 1.0
    %v2524 = vrcp.pop %v2523
    %v2525 = vmul.f32 1.0, %v2524
    %v2527 = vrot.slane %v2519, 3
    %v2529 = vtanh.pop %v2527
    %v2531 = vrot.slane %v2525, 1
    %v2533 = vmul.f32 %v2531, %v2293
    %v2534 = vmul.f32 %v2525, %v2529
    %v2535 = vadd.f32 %v2533, %v2534
    %v2536 = vtanh.pop %v2535
    %v2537 = vrot.slane %v2525, 2
    %v2539 = vmul.f32 %v2537, %v2536
    %v2540 = vpack.c.bf16 %v2539, %v2539
    %v2541 = vpack.c.bf16 %v2405, %v2405
    %2542 = vmatprep.subr.bf16.mxu0 %v728
    %2543 = vmatpush1.bf16.msra.mxu0 %v727
    %2544 = vmatprep.subr.bf16.mxu0 %v724
    %2545 = vmatpush1.bf16.msra.mxu0 %v723
    %2546 = vmatprep.subr.bf16.mxu0 %v720
    %2547 = vmatpush1.bf16.msra.mxu0 %v719
    %2548 = vmatprep.subr.bf16.mxu0 %v716
    %2549 = vmatpush1.bf16.msra.mxu0 %v715
    %2550 = vmatprep.subr.bf16.mxu0 %v712
    %2551 = vmatpush1.bf16.msra.mxu0 %v711
    %2552 = vmatprep.subr.bf16.mxu0 %v708
    %2553 = vmatpush1.bf16.msra.mxu0 %v707
    %2554 = vmatprep.subr.bf16.mxu0 %v704
    %2555 = vmatpush1.bf16.msra.mxu0 %v703
    %2556 = vmatprep.subr.bf16.mxu0 %v700
    %2557 = vmatpush1.bf16.msra.mxu0 %v699
    %2558 = vmatprep.subr.bf16.mxu0 %v760
    %2559 = vmatpush2.bf16.msra.mxu0 %v759
    %2560 = vmatprep.subr.bf16.mxu0 %v756
    %2561 = vmatpush2.bf16.msra.mxu0 %v755
    %2562 = vmatprep.subr.bf16.mxu0 %v752
    %2563 = vmatpush2.bf16.msra.mxu0 %v751
    %2564 = vmatprep.subr.bf16.mxu0 %v748
    %2565 = vmatpush2.bf16.msra.mxu0 %v747
    %2566 = vmatprep.subr.bf16.mxu0 %v744
    %2567 = vmatpush2.bf16.msra.mxu0 %v743
    %2568 = vmatprep.subr.bf16.mxu0 %v740
    %2569 = vmatpush2.bf16.msra.mxu0 %v739
    %2570 = vmatprep.subr.bf16.mxu0 %v736
    %2571 = vmatpush2.bf16.msra.mxu0 %v735
    %2572 = vmatprep.subr.bf16.mxu0 %v732
    %2573 = vmatpush2.bf16.msra.mxu0 %v731
    %2574 = vmatprep.mubr.bf16.mxu0 %v2541
    %2575 = vmatmul.mubr.bf16.gmra.mxu0 %v2540
    %v2576 = vpop.f32.mrf.mxu0
    %v2577 = vadd.f32 %v831, %v2576
    %v2578 = vpop.f32.mrf.mxu0
    %v2579 = vadd.f32 %v835, %v2578
    %v2580 = vpop.f32.mrf.mxu0
    %v2581 = vpop.f32.mrf.mxu0
    %2582 = vdwg.mxu0
    %2583 = vmatprep.subr.bf16.mxu0 %v730
    %2584 = vmatpush1.bf16.msra.mxu0 %v729
    %2585 = vmatprep.subr.bf16.mxu0 %v726
    %2586 = vmatpush1.bf16.msra.mxu0 %v725
    %2587 = vmatprep.subr.bf16.mxu0 %v722
    %2588 = vmatpush1.bf16.msra.mxu0 %v721
    %2589 = vmatprep.subr.bf16.mxu0 %v718
    %2590 = vmatpush1.bf16.msra.mxu0 %v717
    %2591 = vmatprep.subr.bf16.mxu0 %v714
    %2592 = vmatpush1.bf16.msra.mxu0 %v713
    %2593 = vmatprep.subr.bf16.mxu0 %v710
    %2594 = vmatpush1.bf16.msra.mxu0 %v709
    %2595 = vmatprep.subr.bf16.mxu0 %v706
    %2596 = vmatpush1.bf16.msra.mxu0 %v705
    %2597 = vmatprep.subr.bf16.mxu0 %v702
    %2598 = vmatpush1.bf16.msra.mxu0 %v701
    %2599 = vmatprep.subr.bf16.mxu0 %v762
    %2600 = vmatpush2.bf16.msra.mxu0 %v761
    %2601 = vmatprep.subr.bf16.mxu0 %v758
    %2602 = vmatpush2.bf16.msra.mxu0 %v757
    %2603 = vmatprep.subr.bf16.mxu0 %v754
    %2604 = vmatpush2.bf16.msra.mxu0 %v753
    %2605 = vmatprep.subr.bf16.mxu0 %v750
    %2606 = vmatpush2.bf16.msra.mxu0 %v749
    %2607 = vmatprep.subr.bf16.mxu0 %v746
    %2608 = vmatpush2.bf16.msra.mxu0 %v745
    %2609 = vmatprep.subr.bf16.mxu0 %v742
    %2610 = vmatpush2.bf16.msra.mxu0 %v741
    %2611 = vmatprep.subr.bf16.mxu0 %v738
    %2612 = vmatpush2.bf16.msra.mxu0 %v737
    %2613 = vmatprep.subr.bf16.mxu0 %v734
    %2614 = vmatpush2.bf16.msra.mxu0 %v733
    %2615 = vmatprep.mubr.bf16.mxu0 %v2541
    %2616 = vmatmul.mubr.bf16.gmra.mxu0 %v2540
    %v2617 = vpop.f32.mrf.mxu0
    %v2618 = vadd.f32 %v839, %v2617
    %v2619 = vpop.f32.mrf.mxu0
    %v2620 = vadd.f32 %v843, %v2619
    %v2621 = vpop.f32.mrf.mxu0
    %v2622 = vpop.f32.mrf.mxu0
    %2623 = vdwg.mxu0
    %v2624 = vxor.u32 %v2577, 2147483648
    %v2625 = vxor.u32 %v2579, 2147483648
    %v2626 = vxor.u32 %v2618, 2147483648
    %v2627 = vmul.f32 %v2624, 1.442695
    %v2628 = vpow.pop %v2627
    %v2629 = vmul.f32 %v2625, 1.442695
    %v2630 = vpow.pop %v2629
    %v2631 = vmul.f32 %v2626, 1.442695
    %v2632 = vpow.pop %v2631
    %v2633 = vadd.f32 %v2628, 1.0
    %v2634 = vadd.f32 %v2630, 1.0
    %v2635 = vadd.f32 %v2632, 1.0
    %v2636 = vrcp.pop %v2633
    %v2637 = vmul.f32 1.0, %v2636
    %v2638 = vrcp.pop %v2634
    %v2639 = vmul.f32 1.0, %v2638
    %v2640 = vrcp.pop %v2635
    %v2641 = vmul.f32 1.0, %v2640
    %v2642 = vtanh.pop %v2620
    %v2643 = vmul.f32 %v2639, %v2403
    %v2644 = vmul.f32 %v2637, %v2642
    %v2645 = vadd.f32 %v2643, %v2644
    %v2646 = vtanh.pop %v2645
    %v2647 = vmul.f32 %v2641, %v2646
    %2648 = vst [vmem:[#allocation8] sm:$0x1] %v2647
    // Predicated region
    $region34: #{tpu_custom_call.1} parent=1 // pred_check
      _
    $region35: #{tpu_custom_call.1} parent=1 // pred_check_branch
      %2650 = sbr.rel (0) target = $region37
    $region36: #{tpu_custom_call.1} parent=1 // pred_region
      %s2652 = ssub.s32 16, 16
      %2653 = vsyncadd [#allocation5], %s2652
      %s2655 = sshll.u32 [#allocation8], 4
      %s2656 = int_to_ptr.vmem [resolvable:$true] %s2655
      %2658 = dma.vmem_to_hbm [thread:$0]  %s2656, 16, %s6, [#allocation5]
    $region37: #{tpu_custom_call.1} parent=1 // pred_fallthru
      _
    // Predicated region
    $region38: #{tpu_custom_call.1} parent=1 // pred_check
      _
    $region39: #{tpu_custom_call.1} parent=1 // pred_check_branch
      %2660 = sbr.rel (0) target = $region41
    $region40: #{tpu_custom_call.1} parent=1 // pred_region
      %2661 = dma.done [#allocation5], 16
    $region41: #{tpu_custom_call.1} parent=1 // pred_fallthru
      _
    %2662 = vsyncpa [#allocation4], 1
    %2663 = vsyncpa [#allocation7], 1
    %2664 = vsyncpa [#allocation5], 1

</llo_original>
